<compile_context>
chip_gen: v5e
topology: v5e:2x2
jax: 0.10.0
libtpu: 0.0.40
codegen_flags: <defaults>
</compile_context>

<pallas_src>
import functools

import jax
import jax.numpy as jnp
from jax.experimental import pallas as pl
from jax.experimental.pallas import tpu as pltpu


def _lstm_mlp_kernel(x_ref,
                     wih0_ref, whh0_ref, b0_ref,
                     wih1_ref, whh1_ref, b1_ref,
                     fc1w_ref, fc1b_ref,
                     fcw_ref, fcb_ref,
                     out_ref,
                     gx0_ref, gx1_ref, h_all_ref, hflat_ref,
                     *, seq_len, hidden):
    """Whole forward pass in VMEM.

    x_ref:     (T, TB, D)   bf16   t-major input block
    wih0_ref:  (D, 4H) bf16  whh0_ref: (H, 4H) bf16  b0_ref: (1, 4H) f32
    wih1_ref:  (H, 4H) bf16  whh1_ref: (H, 4H) bf16  b1_ref: (1, 4H) f32
    fc1w_ref:  (T*H, 128) bf16  fc1b_ref: (1, 128) f32
    fcw_ref:   (128, Cpad) bf16 fcb_ref:  (1, Cpad) f32 (-1e30 in pad lanes)
    out_ref:   (TB, Cpad) f32 log-probabilities (pad lanes ~ -1e30)
    gx0_ref:   (T*TB, 4H) f32 scratch, layer-0 pre-gates, t-major
    gx1_ref:   (T*TB, 4H) f32 scratch, layer-1 pre-gates, t-major
    h_all_ref: (T*TB, H)  f32 scratch, layer-0 hidden states, t-major
    hflat_ref: (TB, T*H)  f32 scratch, relu(layer-1 hidden) flattened
    """
    T = seq_len
    H = hidden
    TB = x_ref.shape[1]
    D = x_ref.shape[2]
    bf16 = jnp.bfloat16

    def sigmoid(v):
        # One EUP push (tanh) instead of exp + reciprocal; exact identity.
        return 0.5 * jnp.tanh(0.5 * v) + 0.5

    def lstm_step(g_pre, hb_prev, whh, c_prev):
        # g_pre already holds x_t @ W_ih + (b_ih + b_hh); one recurrent K=H
        # matmul per step. Gate math stays f32 (v5e has no bf16 VPU/EUP).
        gates = g_pre + jnp.dot(hb_prev, whh,
                                preferred_element_type=jnp.float32)
        i = sigmoid(gates[:, 0 * H:1 * H])
        f = sigmoid(gates[:, 1 * H:2 * H])
        g = jnp.tanh(gates[:, 2 * H:3 * H])
        o = sigmoid(gates[:, 3 * H:4 * H])
        c = f * c_prev + i * g
        h = o * jnp.tanh(c)
        return h, h.astype(bf16), c

    # ---- layer 0: one batched input-to-hidden GEMM, t-major rows ----
    # f32 round-trip makes the (T, TB, D) -> (T*TB, D) collapse a pure
    # layout-preserving shape cast (TB is a multiple of 8); matmul is bf16.
    x2 = x_ref[...].astype(jnp.float32).reshape(T * TB, D).astype(bf16)
    gx0_ref[...] = (jnp.dot(x2, wih0_ref[...],
                            preferred_element_type=jnp.float32)
                    + b0_ref[...])              # bias folded once

    whh0 = whh0_ref[...]
    whh1 = whh1_ref[...]

    hb = jnp.zeros((TB, H), dtype=bf16)
    c = jnp.zeros((TB, H), dtype=jnp.float32)
    for t in range(T):                          # T static & small: unrolled
        h, hb, c = lstm_step(gx0_ref[t * TB:(t + 1) * TB, :], hb, whh0, c)
        h_all_ref[t * TB:(t + 1) * TB, :] = h   # t-major rows

    # ---- layer 1: batched input-to-hidden GEMM on the layer-0 outputs ----
    gx1_ref[...] = (jnp.dot(h_all_ref[...].astype(bf16), wih1_ref[...],
                            preferred_element_type=jnp.float32)
                    + b1_ref[...])              # (T*TB, 4H), t-major rows

    hb = jnp.zeros((TB, H), dtype=bf16)
    c = jnp.zeros((TB, H), dtype=jnp.float32)
    for t in range(T):
        h, hb, c = lstm_step(gx1_ref[t * TB:(t + 1) * TB, :], hb, whh1, c)
        # torch flatten is flat[b, t*H + h]; ReLU applied before fc_1.
        hflat_ref[:, t * H:(t + 1) * H] = jnp.maximum(h, 0.0)

    # ---- MLP head, off the recurrent critical path ----
    z = (jnp.dot(hflat_ref[...].astype(bf16), fc1w_ref[...],
                 preferred_element_type=jnp.float32)
         + fc1b_ref[...])
    z = jnp.maximum(z, 0.0)
    logits = (jnp.dot(z.astype(bf16), fcw_ref[...],
                      preferred_element_type=jnp.float32)
              + fcb_ref[...])                   # (TB, Cpad); pad lanes ~ -1e30

    # LogSoftmax(dim=1); padded lanes contribute exp(-1e30) == 0.
    m = jnp.max(logits, axis=1, keepdims=True)
    lse = jnp.log(jnp.sum(jnp.exp(logits - m), axis=1, keepdims=True)) + m
    out_ref[...] = logits - lse


def lstm_forward(line, params, *, max_len, hidden_size, num_classes,
                 batch_block=None):
    """line: (B, T, D) float32. Returns (B, num_classes) log-probs."""
    B, T, D = line.shape
    assert T == max_len
    H = hidden_size

    # Sublane-fill: pad the batch to a multiple of 8 (>= 8). Padded rows are
    # computed (cheaply) and sliced off at the end.
    B_pad = ((B + 7) // 8) * 8
    if B_pad != B:
        line = jnp.pad(line, ((0, B_pad - B), (0, 0), (0, 0)))

    if batch_block is None:
        # Cap blocks at 64 rows (VMEM headroom on v7x's 64 MiB) and, when the
        # batch allows, keep >=2 grid steps so the "parallel" axis can shard
        # across both v7x TensorCores.
        cap = min(64, max(8, (B_pad // 2 // 8) * 8)) if B_pad >= 16 else B_pad
        TB = B_pad
        for cand in range((cap // 8) * 8, 7, -8):
            if B_pad % cand == 0:
                TB = cand
                break
    else:
        TB = batch_block
    assert B_pad % TB == 0 and TB % 8 == 0

    C = num_classes
    C_pad = ((C + 127) // 128) * 128
    pad = C_pad - C
    # Lane-dense output: pad fc to 128 classes; -1e30 bias in pad lanes keeps
    # the in-kernel log-softmax numerically identical on the real classes.
    fc_w_p = jnp.pad(params["fc_w"], ((0, 0), (0, pad)))
    fc_b_p = jnp.pad(params["fc_b"], ((0, 0), (0, pad)), constant_values=-1e30)

    bf16 = jnp.bfloat16
    # t-major, bf16 input: halves the HBM->VMEM bytes of the only streamed
    # per-grid-step operand and makes the per-step pre-gate slice contiguous.
    x_tbd = jnp.transpose(line, (1, 0, 2)).astype(bf16)   # (T, B_pad, D)

    inputs = (
        x_tbd,
        params["wih0"].astype(bf16), params["whh0"].astype(bf16),
        params["b0"].astype(jnp.float32),
        params["wih1"].astype(bf16), params["whh1"].astype(bf16),
        params["b1"].astype(jnp.float32),
        params["fc1_w"].astype(bf16), params["fc1_b"].astype(jnp.float32),
        fc_w_p.astype(bf16), fc_b_p.astype(jnp.float32),
    )

    def full_spec(a):
        return pl.BlockSpec(a.shape, lambda b, _nd=a.ndim: (0,) * _nd)

    in_specs = [pl.BlockSpec((T, TB, D), lambda b: (0, b, 0))]
    in_specs += [full_spec(a) for a in inputs[1:]]
    out_specs = pl.BlockSpec((TB, C_pad), lambda b: (b, 0))

    kernel = functools.partial(_lstm_mlp_kernel, seq_len=T, hidden=H)

    out_padded = pl.pallas_call(
        kernel,
        out_shape=jax.ShapeDtypeStruct((B_pad, C_pad), jnp.float32),
        grid=(B_pad // TB,),
        in_specs=in_specs,
        out_specs=out_specs,
        scratch_shapes=[
            pltpu.VMEM((T * TB, 4 * H), jnp.float32),   # gx0 (layer-0 pregates)
            pltpu.VMEM((T * TB, 4 * H), jnp.float32),   # gx1 (layer-1 pregates)
            pltpu.VMEM((T * TB, H), jnp.float32),       # layer-0 hiddens
            pltpu.VMEM((TB, T * H), jnp.float32),       # relu(layer-1) flat
        ],
        compiler_params=pltpu.CompilerParams(
            dimension_semantics=("parallel",)),
    )(*inputs)
    return out_padded[:B, :C]


def init_params(key, *, input_size, hidden_size, max_len, num_classes):
    """PyTorch-style uniform init. Weights pre-transposed so the kernel
    computes x @ W, and the two LSTM biases (b_ih + b_hh) are summed."""
    H = hidden_size
    k = 1.0 / jnp.sqrt(H)
    keys = jax.random.split(key, 12)

    def u(k_, shape, bound):
        return jax.random.uniform(k_, shape, jnp.float32, -bound, bound)

    # layer 0: W_ih (4H, D), W_hh (4H, H), b_ih (4H,), b_hh (4H,)
    wih0 = u(keys[0], (4 * H, input_size), k).T          # (D, 4H)
    whh0 = u(keys[1], (4 * H, H), k).T                   # (H, 4H)
    b0 = (u(keys[2], (4 * H,), k) + u(keys[3], (4 * H,), k)).reshape(1, 4 * H)
    # layer 1: input is hidden of layer 0
    wih1 = u(keys[4], (4 * H, H), k).T                   # (H, 4H)
    whh1 = u(keys[5], (4 * H, H), k).T                   # (H, 4H)
    b1 = (u(keys[6], (4 * H,), k) + u(keys[7], (4 * H,), k)).reshape(1, 4 * H)

    # fc_1: Linear(H * max_len, 128)
    k1 = 1.0 / jnp.sqrt(H * max_len)
    fc1_w = u(keys[8], (128, H * max_len), k1).T         # (T*H, 128)
    fc1_b = u(keys[9], (128,), k1).reshape(1, 128)
    # fc: Linear(128, num_classes)
    k2 = 1.0 / jnp.sqrt(128)
    fc_w = u(keys[10], (num_classes, 128), k2).T         # (128, C)
    fc_b = u(keys[11], (num_classes,), k2).reshape(1, num_classes)

    return dict(wih0=wih0, whh0=whh0, b0=b0,
                wih1=wih1, whh1=whh1, b1=b1,
                fc1_w=fc1_w, fc1_b=fc1_b, fc_w=fc_w, fc_b=fc_b)


def _reference_forward(line, params):
    """Pure-JAX f32 reference matching the PyTorch module (eval mode)."""
    B, T, D = line.shape
    H = 128

    def cell(x_t, h, c, wih, whh, b):
        gates = x_t @ wih + h @ whh + b
        i = jax.nn.sigmoid(gates[:, 0 * H:1 * H])
        f = jax.nn.sigmoid(gates[:, 1 * H:2 * H])
        g = jnp.tanh(gates[:, 2 * H:3 * H])
        o = jax.nn.sigmoid(gates[:, 3 * H:4 * H])
        c = f * c + i * g
        h = o * jnp.tanh(c)
        return h, c

    h0 = jnp.zeros((B, H)); c0 = jnp.zeros((B, H))
    h1 = jnp.zeros((B, H)); c1 = jnp.zeros((B, H))
    outs = []
    for t in range(T):
        h0, c0 = cell(line[:, t, :], h0, c0,
                      params["wih0"], params["whh0"], params["b0"])
        h1, c1 = cell(h0, h1, c1,
                      params["wih1"], params["whh1"], params["b1"])
        outs.append(h1)
    flat = jnp.concatenate(outs, axis=1)                 # flat[b, t*H + h]
    z = jnp.maximum(flat, 0.0) @ params["fc1_w"] + params["fc1_b"]
    z = jnp.maximum(z, 0.0)
    logits = z @ params["fc_w"] + params["fc_b"]
    return jax.nn.log_softmax(logits, axis=1)


if __name__ == "__main__":
    # hidden_size=128 and num_layers=2 are hard-coded by the reference forward.
    BATCH = 2
    MAX_LEN = 8
    INPUT_SIZE = 64
    HIDDEN = 128
    NUM_CLASSES = 4

    key = jax.random.PRNGKey(0)
    k_x, k_p = jax.random.split(key)
    line = jax.random.normal(k_x, (BATCH, MAX_LEN, INPUT_SIZE),
                             dtype=jnp.float32)
    params = init_params(k_p, input_size=INPUT_SIZE, hidden_size=HIDDEN,
                         max_len=MAX_LEN, num_classes=NUM_CLASSES)

    out = lstm_forward(line, params, max_len=MAX_LEN,
                       hidden_size=HIDDEN, num_classes=NUM_CLASSES)
    out = jax.block_until_ready(out)

    assert out.shape == (BATCH, NUM_CLASSES)
    # log-softmax rows should (log-)sum to ~0
    assert jnp.allclose(jnp.sum(jnp.exp(out), axis=1), 1.0, atol=1e-4)
    # match the pure-JAX f32 reference up to bf16-operand rounding
    ref = _reference_forward(line, params)
    assert jnp.max(jnp.abs(out - ref)) < 0.1, float(jnp.max(jnp.abs(out - ref)))
    print("KERNEL_OK")
</pallas_src>

<mosaic_0001>
module attributes {stable_mosaic.version = 11 : i64} {
  func.func @_lstm_mlp_kernel(%arg0: i32, %arg1: memref<8x8x64xbf16, #tpu.memory_space<vmem>>, %arg2: memref<64x512xbf16, #tpu.memory_space<vmem>>, %arg3: memref<128x512xbf16, #tpu.memory_space<vmem>>, %arg4: memref<1x512xf32, #tpu.memory_space<vmem>>, %arg5: memref<128x512xbf16, #tpu.memory_space<vmem>>, %arg6: memref<128x512xbf16, #tpu.memory_space<vmem>>, %arg7: memref<1x512xf32, #tpu.memory_space<vmem>>, %arg8: memref<1024x128xbf16, #tpu.memory_space<vmem>>, %arg9: memref<1x128xf32, #tpu.memory_space<vmem>>, %arg10: memref<128x128xbf16, #tpu.memory_space<vmem>>, %arg11: memref<1x128xf32, #tpu.memory_space<vmem>>, %arg12: memref<8x128xf32, #tpu.memory_space<vmem>>, %arg13: memref<64x512xf32, #tpu.memory_space<vmem>>, %arg14: memref<64x512xf32, #tpu.memory_space<vmem>>, %arg15: memref<64x128xf32, #tpu.memory_space<vmem>>, %arg16: memref<8x1024xf32, #tpu.memory_space<vmem>>) attributes {dimension_semantics = [#tpu.dimension_semantics<parallel>], iteration_bounds = array<i64: 1>, scalar_prefetch = 0 : i64, scratch_operands = 4 : i64, tpu.core_type = #tpu.core_type<tc>, window_params = [{transform_indices = @transform_0, window_bounds = array<i64: 8, 8, 64>}, {pipeline_mode = #tpu.pipeline_mode<synchronous>, transform_indices = @transform_1, window_bounds = array<i64: 64, 512>}, {pipeline_mode = #tpu.pipeline_mode<synchronous>, transform_indices = @transform_2, window_bounds = array<i64: 128, 512>}, {pipeline_mode = #tpu.pipeline_mode<synchronous>, transform_indices = @transform_3, window_bounds = array<i64: 1, 512>}, {pipeline_mode = #tpu.pipeline_mode<synchronous>, transform_indices = @transform_4, window_bounds = array<i64: 128, 512>}, {pipeline_mode = #tpu.pipeline_mode<synchronous>, transform_indices = @transform_5, window_bounds = array<i64: 128, 512>}, {pipeline_mode = #tpu.pipeline_mode<synchronous>, transform_indices = @transform_6, window_bounds = array<i64: 1, 512>}, {pipeline_mode = #tpu.pipeline_mode<synchronous>, transform_indices = @transform_7, window_bounds = array<i64: 1024, 128>}, {pipeline_mode = #tpu.pipeline_mode<synchronous>, transform_indices = @transform_8, window_bounds = array<i64: 1, 128>}, {pipeline_mode = #tpu.pipeline_mode<synchronous>, transform_indices = @transform_9, window_bounds = array<i64: 128, 128>}, {pipeline_mode = #tpu.pipeline_mode<synchronous>, transform_indices = @transform_10, window_bounds = array<i64: 1, 128>}, {transform_indices = @transform_11, window_bounds = array<i64: 8, 128>}]} {
    %c0 = arith.constant 0 : index
    %c0_0 = arith.constant 0 : index
    %c0_1 = arith.constant 0 : index
    %0 = vector.load %arg1[%c0, %c0_0, %c0_1] : memref<8x8x64xbf16, #tpu.memory_space<vmem>>, vector<8x8x64xbf16>
    %1 = arith.extf %0 : vector<8x8x64xbf16> to vector<8x8x64xf32>
    %2 = vector.shape_cast %1 : vector<8x8x64xf32> to vector<64x64xf32>
    %3 = arith.truncf %2 : vector<64x64xf32> to vector<64x64xbf16>
    %c0_2 = arith.constant 0 : index
    %c0_3 = arith.constant 0 : index
    %4 = vector.load %arg2[%c0_2, %c0_3] : memref<64x512xbf16, #tpu.memory_space<vmem>>, vector<64x512xbf16>
    %cst = arith.constant dense<0.000000e+00> : vector<64x512xf32>
    %5 = tpu.matmul %3, %4, %cst {dimension_numbers = #tpu.dot_dimension_numbers<[1], [0], [0], [1], [0, 0, 1, 1], [], []>} : vector<64x64xbf16>, vector<64x512xbf16>, vector<64x512xf32> -> vector<64x512xf32>
    %c0_4 = arith.constant 0 : index
    %c0_5 = arith.constant 0 : index
    %6 = vector.load %arg4[%c0_4, %c0_5] : memref<1x512xf32, #tpu.memory_space<vmem>>, vector<1x512xf32>
    %7 = vector.broadcast %6 : vector<1x512xf32> to vector<64x512xf32>
    %8 = arith.addf %5, %7 : vector<64x512xf32>
    %c0_6 = arith.constant 0 : index
    %c0_7 = arith.constant 0 : index
    %9 = vector.load %arg13[%c0_6, %c0_7] : memref<64x512xf32, #tpu.memory_space<vmem>>, vector<64x512xf32>
    tpu.vector_store %arg13[%c0_6, %c0_7], %8 {strides = array<i32>} : memref<64x512xf32, #tpu.memory_space<vmem>>, vector<64x512xf32>,
    %c0_8 = arith.constant 0 : index
    %c0_9 = arith.constant 0 : index
    %10 = vector.load %arg3[%c0_8, %c0_9] : memref<128x512xbf16, #tpu.memory_space<vmem>>, vector<128x512xbf16>
    %c0_10 = arith.constant 0 : index
    %c0_11 = arith.constant 0 : index
    %11 = vector.load %arg6[%c0_10, %c0_11] : memref<128x512xbf16, #tpu.memory_space<vmem>>, vector<128x512xbf16>
    %cst_12 = arith.constant 0.000000e+00 : bf16
    %12 = vector.broadcast %cst_12 : bf16 to vector<8x128xbf16>
    %cst_13 = arith.constant 0.000000e+00 : f32
    %13 = vector.broadcast %cst_13 : f32 to vector<8x128xf32>
    %c0_14 = arith.constant 0 : index
    %c0_15 = arith.constant 0 : index
    %14 = vector.load %arg13[%c0_14, %c0_15] : memref<64x512xf32, #tpu.memory_space<vmem>>, vector<8x512xf32>
    %cst_16 = arith.constant dense<0.000000e+00> : vector<8x512xf32>
    %15 = tpu.matmul %12, %10, %cst_16 {dimension_numbers = #tpu.dot_dimension_numbers<[1], [0], [0], [1], [0, 0, 1, 1], [], []>} : vector<8x128xbf16>, vector<128x512xbf16>, vector<8x512xf32> -> vector<8x512xf32>
    %16 = arith.addf %14, %15 : vector<8x512xf32>
    %17 = vector.extract_strided_slice %16 {offsets = [0, 0], sizes = [8, 128], strides = [1, 1]} : vector<8x512xf32> to vector<8x128xf32>
    %cst_17 = arith.constant 5.000000e-01 : f32
    %18 = vector.broadcast %cst_17 : f32 to vector<8x128xf32>
    %19 = arith.mulf %18, %17 : vector<8x128xf32>
    %20 = math.tanh %19 : vector<8x128xf32>
    %cst_18 = arith.constant 5.000000e-01 : f32
    %21 = vector.broadcast %cst_18 : f32 to vector<8x128xf32>
    %22 = arith.mulf %21, %20 : vector<8x128xf32>
    %cst_19 = arith.constant 5.000000e-01 : f32
    %23 = vector.broadcast %cst_19 : f32 to vector<8x128xf32>
    %24 = arith.addf %22, %23 : vector<8x128xf32>
    %25 = vector.extract_strided_slice %16 {offsets = [0, 128], sizes = [8, 128], strides = [1, 1]} : vector<8x512xf32> to vector<8x128xf32>
    %cst_20 = arith.constant 5.000000e-01 : f32
    %26 = vector.broadcast %cst_20 : f32 to vector<8x128xf32>
    %27 = arith.mulf %26, %25 : vector<8x128xf32>
    %28 = math.tanh %27 : vector<8x128xf32>
    %cst_21 = arith.constant 5.000000e-01 : f32
    %29 = vector.broadcast %cst_21 : f32 to vector<8x128xf32>
    %30 = arith.mulf %29, %28 : vector<8x128xf32>
    %cst_22 = arith.constant 5.000000e-01 : f32
    %31 = vector.broadcast %cst_22 : f32 to vector<8x128xf32>
    %32 = arith.addf %30, %31 : vector<8x128xf32>
    %33 = vector.extract_strided_slice %16 {offsets = [0, 256], sizes = [8, 128], strides = [1, 1]} : vector<8x512xf32> to vector<8x128xf32>
    %34 = math.tanh %33 : vector<8x128xf32>
    %35 = vector.extract_strided_slice %16 {offsets = [0, 384], sizes = [8, 128], strides = [1, 1]} : vector<8x512xf32> to vector<8x128xf32>
    %cst_23 = arith.constant 5.000000e-01 : f32
    %36 = vector.broadcast %cst_23 : f32 to vector<8x128xf32>
    %37 = arith.mulf %36, %35 : vector<8x128xf32>
    %38 = math.tanh %37 : vector<8x128xf32>
    %cst_24 = arith.constant 5.000000e-01 : f32
    %39 = vector.broadcast %cst_24 : f32 to vector<8x128xf32>
    %40 = arith.mulf %39, %38 : vector<8x128xf32>
    %cst_25 = arith.constant 5.000000e-01 : f32
    %41 = vector.broadcast %cst_25 : f32 to vector<8x128xf32>
    %42 = arith.addf %40, %41 : vector<8x128xf32>
    %43 = arith.mulf %32, %13 : vector<8x128xf32>
    %44 = arith.mulf %24, %34 : vector<8x128xf32>
    %45 = arith.addf %43, %44 : vector<8x128xf32>
    %46 = math.tanh %45 : vector<8x128xf32>
    %47 = arith.mulf %42, %46 : vector<8x128xf32>
    %48 = arith.truncf %47 : vector<8x128xf32> to vector<8x128xbf16>
    %c0_26 = arith.constant 0 : index
    %c0_27 = arith.constant 0 : index
    %49 = vector.load %arg15[%c0_26, %c0_27] : memref<64x128xf32, #tpu.memory_space<vmem>>, vector<8x128xf32>
    tpu.vector_store %arg15[%c0_26, %c0_27], %47 {strides = array<i32>} : memref<64x128xf32, #tpu.memory_space<vmem>>, vector<8x128xf32>,
    %c8 = arith.constant 8 : index
    %c0_28 = arith.constant 0 : index
    %50 = vector.load %arg13[%c8, %c0_28] : memref<64x512xf32, #tpu.memory_space<vmem>>, vector<8x512xf32>
    %cst_29 = arith.constant dense<0.000000e+00> : vector<8x512xf32>
    %51 = tpu.matmul %48, %10, %cst_29 {dimension_numbers = #tpu.dot_dimension_numbers<[1], [0], [0], [1], [0, 0, 1, 1], [], []>} : vector<8x128xbf16>, vector<128x512xbf16>, vector<8x512xf32> -> vector<8x512xf32>
    %52 = arith.addf %50, %51 : vector<8x512xf32>
    %53 = vector.extract_strided_slice %52 {offsets = [0, 0], sizes = [8, 128], strides = [1, 1]} : vector<8x512xf32> to vector<8x128xf32>
    %cst_30 = arith.constant 5.000000e-01 : f32
    %54 = vector.broadcast %cst_30 : f32 to vector<8x128xf32>
    %55 = arith.mulf %54, %53 : vector<8x128xf32>
    %56 = math.tanh %55 : vector<8x128xf32>
    %cst_31 = arith.constant 5.000000e-01 : f32
    %57 = vector.broadcast %cst_31 : f32 to vector<8x128xf32>
    %58 = arith.mulf %57, %56 : vector<8x128xf32>
    %cst_32 = arith.constant 5.000000e-01 : f32
    %59 = vector.broadcast %cst_32 : f32 to vector<8x128xf32>
    %60 = arith.addf %58, %59 : vector<8x128xf32>
    %61 = vector.extract_strided_slice %52 {offsets = [0, 128], sizes = [8, 128], strides = [1, 1]} : vector<8x512xf32> to vector<8x128xf32>
    %cst_33 = arith.constant 5.000000e-01 : f32
    %62 = vector.broadcast %cst_33 : f32 to vector<8x128xf32>
    %63 = arith.mulf %62, %61 : vector<8x128xf32>
    %64 = math.tanh %63 : vector<8x128xf32>
    %cst_34 = arith.constant 5.000000e-01 : f32
    %65 = vector.broadcast %cst_34 : f32 to vector<8x128xf32>
    %66 = arith.mulf %65, %64 : vector<8x128xf32>
    %cst_35 = arith.constant 5.000000e-01 : f32
    %67 = vector.broadcast %cst_35 : f32 to vector<8x128xf32>
    %68 = arith.addf %66, %67 : vector<8x128xf32>
    %69 = vector.extract_strided_slice %52 {offsets = [0, 256], sizes = [8, 128], strides = [1, 1]} : vector<8x512xf32> to vector<8x128xf32>
    %70 = math.tanh %69 : vector<8x128xf32>
    %71 = vector.extract_strided_slice %52 {offsets = [0, 384], sizes = [8, 128], strides = [1, 1]} : vector<8x512xf32> to vector<8x128xf32>
    %cst_36 = arith.constant 5.000000e-01 : f32
    %72 = vector.broadcast %cst_36 : f32 to vector<8x128xf32>
    %73 = arith.mulf %72, %71 : vector<8x128xf32>
    %74 = math.tanh %73 : vector<8x128xf32>
    %cst_37 = arith.constant 5.000000e-01 : f32
    %75 = vector.broadcast %cst_37 : f32 to vector<8x128xf32>
    %76 = arith.mulf %75, %74 : vector<8x128xf32>
    %cst_38 = arith.constant 5.000000e-01 : f32
    %77 = vector.broadcast %cst_38 : f32 to vector<8x128xf32>
    %78 = arith.addf %76, %77 : vector<8x128xf32>
    %79 = arith.mulf %68, %45 : vector<8x128xf32>
    %80 = arith.mulf %60, %70 : vector<8x128xf32>
    %81 = arith.addf %79, %80 : vector<8x128xf32>
    %82 = math.tanh %81 : vector<8x128xf32>
    %83 = arith.mulf %78, %82 : vector<8x128xf32>
    %84 = arith.truncf %83 : vector<8x128xf32> to vector<8x128xbf16>
    %c8_39 = arith.constant 8 : index
    %c0_40 = arith.constant 0 : index
    %85 = vector.load %arg15[%c8_39, %c0_40] : memref<64x128xf32, #tpu.memory_space<vmem>>, vector<8x128xf32>
    tpu.vector_store %arg15[%c8_39, %c0_40], %83 {strides = array<i32>} : memref<64x128xf32, #tpu.memory_space<vmem>>, vector<8x128xf32>,
    %c16 = arith.constant 16 : index
    %c0_41 = arith.constant 0 : index
    %86 = vector.load %arg13[%c16, %c0_41] : memref<64x512xf32, #tpu.memory_space<vmem>>, vector<8x512xf32>
    %cst_42 = arith.constant dense<0.000000e+00> : vector<8x512xf32>
    %87 = tpu.matmul %84, %10, %cst_42 {dimension_numbers = #tpu.dot_dimension_numbers<[1], [0], [0], [1], [0, 0, 1, 1], [], []>} : vector<8x128xbf16>, vector<128x512xbf16>, vector<8x512xf32> -> vector<8x512xf32>
    %88 = arith.addf %86, %87 : vector<8x512xf32>
    %89 = vector.extract_strided_slice %88 {offsets = [0, 0], sizes = [8, 128], strides = [1, 1]} : vector<8x512xf32> to vector<8x128xf32>
    %cst_43 = arith.constant 5.000000e-01 : f32
    %90 = vector.broadcast %cst_43 : f32 to vector<8x128xf32>
    %91 = arith.mulf %90, %89 : vector<8x128xf32>
    %92 = math.tanh %91 : vector<8x128xf32>
    %cst_44 = arith.constant 5.000000e-01 : f32
    %93 = vector.broadcast %cst_44 : f32 to vector<8x128xf32>
    %94 = arith.mulf %93, %92 : vector<8x128xf32>
    %cst_45 = arith.constant 5.000000e-01 : f32
    %95 = vector.broadcast %cst_45 : f32 to vector<8x128xf32>
    %96 = arith.addf %94, %95 : vector<8x128xf32>
    %97 = vector.extract_strided_slice %88 {offsets = [0, 128], sizes = [8, 128], strides = [1, 1]} : vector<8x512xf32> to vector<8x128xf32>
    %cst_46 = arith.constant 5.000000e-01 : f32
    %98 = vector.broadcast %cst_46 : f32 to vector<8x128xf32>
    %99 = arith.mulf %98, %97 : vector<8x128xf32>
    %100 = math.tanh %99 : vector<8x128xf32>
    %cst_47 = arith.constant 5.000000e-01 : f32
    %101 = vector.broadcast %cst_47 : f32 to vector<8x128xf32>
    %102 = arith.mulf %101, %100 : vector<8x128xf32>
    %cst_48 = arith.constant 5.000000e-01 : f32
    %103 = vector.broadcast %cst_48 : f32 to vector<8x128xf32>
    %104 = arith.addf %102, %103 : vector<8x128xf32>
    %105 = vector.extract_strided_slice %88 {offsets = [0, 256], sizes = [8, 128], strides = [1, 1]} : vector<8x512xf32> to vector<8x128xf32>
    %106 = math.tanh %105 : vector<8x128xf32>
    %107 = vector.extract_strided_slice %88 {offsets = [0, 384], sizes = [8, 128], strides = [1, 1]} : vector<8x512xf32> to vector<8x128xf32>
    %cst_49 = arith.constant 5.000000e-01 : f32
    %108 = vector.broadcast %cst_49 : f32 to vector<8x128xf32>
    %109 = arith.mulf %108, %107 : vector<8x128xf32>
    %110 = math.tanh %109 : vector<8x128xf32>
    %cst_50 = arith.constant 5.000000e-01 : f32
    %111 = vector.broadcast %cst_50 : f32 to vector<8x128xf32>
    %112 = arith.mulf %111, %110 : vector<8x128xf32>
    %cst_51 = arith.constant 5.000000e-01 : f32
    %113 = vector.broadcast %cst_51 : f32 to vector<8x128xf32>
    %114 = arith.addf %112, %113 : vector<8x128xf32>
    %115 = arith.mulf %104, %81 : vector<8x128xf32>
    %116 = arith.mulf %96, %106 : vector<8x128xf32>
    %117 = arith.addf %115, %116 : vector<8x128xf32>
    %118 = math.tanh %117 : vector<8x128xf32>
    %119 = arith.mulf %114, %118 : vector<8x128xf32>
    %120 = arith.truncf %119 : vector<8x128xf32> to vector<8x128xbf16>
    %c16_52 = arith.constant 16 : index
    %c0_53 = arith.constant 0 : index
    %121 = vector.load %arg15[%c16_52, %c0_53] : memref<64x128xf32, #tpu.memory_space<vmem>>, vector<8x128xf32>
    tpu.vector_store %arg15[%c16_52, %c0_53], %119 {strides = array<i32>} : memref<64x128xf32, #tpu.memory_space<vmem>>, vector<8x128xf32>,
    %c24 = arith.constant 24 : index
    %c0_54 = arith.constant 0 : index
    %122 = vector.load %arg13[%c24, %c0_54] : memref<64x512xf32, #tpu.memory_space<vmem>>, vector<8x512xf32>
    %cst_55 = arith.constant dense<0.000000e+00> : vector<8x512xf32>
    %123 = tpu.matmul %120, %10, %cst_55 {dimension_numbers = #tpu.dot_dimension_numbers<[1], [0], [0], [1], [0, 0, 1, 1], [], []>} : vector<8x128xbf16>, vector<128x512xbf16>, vector<8x512xf32> -> vector<8x512xf32>
    %124 = arith.addf %122, %123 : vector<8x512xf32>
    %125 = vector.extract_strided_slice %124 {offsets = [0, 0], sizes = [8, 128], strides = [1, 1]} : vector<8x512xf32> to vector<8x128xf32>
    %cst_56 = arith.constant 5.000000e-01 : f32
    %126 = vector.broadcast %cst_56 : f32 to vector<8x128xf32>
    %127 = arith.mulf %126, %125 : vector<8x128xf32>
    %128 = math.tanh %127 : vector<8x128xf32>
    %cst_57 = arith.constant 5.000000e-01 : f32
    %129 = vector.broadcast %cst_57 : f32 to vector<8x128xf32>
    %130 = arith.mulf %129, %128 : vector<8x128xf32>
    %cst_58 = arith.constant 5.000000e-01 : f32
    %131 = vector.broadcast %cst_58 : f32 to vector<8x128xf32>
    %132 = arith.addf %130, %131 : vector<8x128xf32>
    %133 = vector.extract_strided_slice %124 {offsets = [0, 128], sizes = [8, 128], strides = [1, 1]} : vector<8x512xf32> to vector<8x128xf32>
    %cst_59 = arith.constant 5.000000e-01 : f32
    %134 = vector.broadcast %cst_59 : f32 to vector<8x128xf32>
    %135 = arith.mulf %134, %133 : vector<8x128xf32>
    %136 = math.tanh %135 : vector<8x128xf32>
    %cst_60 = arith.constant 5.000000e-01 : f32
    %137 = vector.broadcast %cst_60 : f32 to vector<8x128xf32>
    %138 = arith.mulf %137, %136 : vector<8x128xf32>
    %cst_61 = arith.constant 5.000000e-01 : f32
    %139 = vector.broadcast %cst_61 : f32 to vector<8x128xf32>
    %140 = arith.addf %138, %139 : vector<8x128xf32>
    %141 = vector.extract_strided_slice %124 {offsets = [0, 256], sizes = [8, 128], strides = [1, 1]} : vector<8x512xf32> to vector<8x128xf32>
    %142 = math.tanh %141 : vector<8x128xf32>
    %143 = vector.extract_strided_slice %124 {offsets = [0, 384], sizes = [8, 128], strides = [1, 1]} : vector<8x512xf32> to vector<8x128xf32>
    %cst_62 = arith.constant 5.000000e-01 : f32
    %144 = vector.broadcast %cst_62 : f32 to vector<8x128xf32>
    %145 = arith.mulf %144, %143 : vector<8x128xf32>
    %146 = math.tanh %145 : vector<8x128xf32>
    %cst_63 = arith.constant 5.000000e-01 : f32
    %147 = vector.broadcast %cst_63 : f32 to vector<8x128xf32>
    %148 = arith.mulf %147, %146 : vector<8x128xf32>
    %cst_64 = arith.constant 5.000000e-01 : f32
    %149 = vector.broadcast %cst_64 : f32 to vector<8x128xf32>
    %150 = arith.addf %148, %149 : vector<8x128xf32>
    %151 = arith.mulf %140, %117 : vector<8x128xf32>
    %152 = arith.mulf %132, %142 : vector<8x128xf32>
    %153 = arith.addf %151, %152 : vector<8x128xf32>
    %154 = math.tanh %153 : vector<8x128xf32>
    %155 = arith.mulf %150, %154 : vector<8x128xf32>
    %156 = arith.truncf %155 : vector<8x128xf32> to vector<8x128xbf16>
    %c24_65 = arith.constant 24 : index
    %c0_66 = arith.constant 0 : index
    %157 = vector.load %arg15[%c24_65, %c0_66] : memref<64x128xf32, #tpu.memory_space<vmem>>, vector<8x128xf32>
    tpu.vector_store %arg15[%c24_65, %c0_66], %155 {strides = array<i32>} : memref<64x128xf32, #tpu.memory_space<vmem>>, vector<8x128xf32>,
    %c32 = arith.constant 32 : index
    %c0_67 = arith.constant 0 : index
    %158 = vector.load %arg13[%c32, %c0_67] : memref<64x512xf32, #tpu.memory_space<vmem>>, vector<8x512xf32>
    %cst_68 = arith.constant dense<0.000000e+00> : vector<8x512xf32>
    %159 = tpu.matmul %156, %10, %cst_68 {dimension_numbers = #tpu.dot_dimension_numbers<[1], [0], [0], [1], [0, 0, 1, 1], [], []>} : vector<8x128xbf16>, vector<128x512xbf16>, vector<8x512xf32> -> vector<8x512xf32>
    %160 = arith.addf %158, %159 : vector<8x512xf32>
    %161 = vector.extract_strided_slice %160 {offsets = [0, 0], sizes = [8, 128], strides = [1, 1]} : vector<8x512xf32> to vector<8x128xf32>
    %cst_69 = arith.constant 5.000000e-01 : f32
    %162 = vector.broadcast %cst_69 : f32 to vector<8x128xf32>
    %163 = arith.mulf %162, %161 : vector<8x128xf32>
    %164 = math.tanh %163 : vector<8x128xf32>
    %cst_70 = arith.constant 5.000000e-01 : f32
    %165 = vector.broadcast %cst_70 : f32 to vector<8x128xf32>
    %166 = arith.mulf %165, %164 : vector<8x128xf32>
    %cst_71 = arith.constant 5.000000e-01 : f32
    %167 = vector.broadcast %cst_71 : f32 to vector<8x128xf32>
    %168 = arith.addf %166, %167 : vector<8x128xf32>
    %169 = vector.extract_strided_slice %160 {offsets = [0, 128], sizes = [8, 128], strides = [1, 1]} : vector<8x512xf32> to vector<8x128xf32>
    %cst_72 = arith.constant 5.000000e-01 : f32
    %170 = vector.broadcast %cst_72 : f32 to vector<8x128xf32>
    %171 = arith.mulf %170, %169 : vector<8x128xf32>
    %172 = math.tanh %171 : vector<8x128xf32>
    %cst_73 = arith.constant 5.000000e-01 : f32
    %173 = vector.broadcast %cst_73 : f32 to vector<8x128xf32>
    %174 = arith.mulf %173, %172 : vector<8x128xf32>
    %cst_74 = arith.constant 5.000000e-01 : f32
    %175 = vector.broadcast %cst_74 : f32 to vector<8x128xf32>
    %176 = arith.addf %174, %175 : vector<8x128xf32>
    %177 = vector.extract_strided_slice %160 {offsets = [0, 256], sizes = [8, 128], strides = [1, 1]} : vector<8x512xf32> to vector<8x128xf32>
    %178 = math.tanh %177 : vector<8x128xf32>
    %179 = vector.extract_strided_slice %160 {offsets = [0, 384], sizes = [8, 128], strides = [1, 1]} : vector<8x512xf32> to vector<8x128xf32>
    %cst_75 = arith.constant 5.000000e-01 : f32
    %180 = vector.broadcast %cst_75 : f32 to vector<8x128xf32>
    %181 = arith.mulf %180, %179 : vector<8x128xf32>
    %182 = math.tanh %181 : vector<8x128xf32>
    %cst_76 = arith.constant 5.000000e-01 : f32
    %183 = vector.broadcast %cst_76 : f32 to vector<8x128xf32>
    %184 = arith.mulf %183, %182 : vector<8x128xf32>
    %cst_77 = arith.constant 5.000000e-01 : f32
    %185 = vector.broadcast %cst_77 : f32 to vector<8x128xf32>
    %186 = arith.addf %184, %185 : vector<8x128xf32>
    %187 = arith.mulf %176, %153 : vector<8x128xf32>
    %188 = arith.mulf %168, %178 : vector<8x128xf32>
    %189 = arith.addf %187, %188 : vector<8x128xf32>
    %190 = math.tanh %189 : vector<8x128xf32>
    %191 = arith.mulf %186, %190 : vector<8x128xf32>
    %192 = arith.truncf %191 : vector<8x128xf32> to vector<8x128xbf16>
    %c32_78 = arith.constant 32 : index
    %c0_79 = arith.constant 0 : index
    %193 = vector.load %arg15[%c32_78, %c0_79] : memref<64x128xf32, #tpu.memory_space<vmem>>, vector<8x128xf32>
    tpu.vector_store %arg15[%c32_78, %c0_79], %191 {strides = array<i32>} : memref<64x128xf32, #tpu.memory_space<vmem>>, vector<8x128xf32>,
    %c40 = arith.constant 40 : index
    %c0_80 = arith.constant 0 : index
    %194 = vector.load %arg13[%c40, %c0_80] : memref<64x512xf32, #tpu.memory_space<vmem>>, vector<8x512xf32>
    %cst_81 = arith.constant dense<0.000000e+00> : vector<8x512xf32>
    %195 = tpu.matmul %192, %10, %cst_81 {dimension_numbers = #tpu.dot_dimension_numbers<[1], [0], [0], [1], [0, 0, 1, 1], [], []>} : vector<8x128xbf16>, vector<128x512xbf16>, vector<8x512xf32> -> vector<8x512xf32>
    %196 = arith.addf %194, %195 : vector<8x512xf32>
    %197 = vector.extract_strided_slice %196 {offsets = [0, 0], sizes = [8, 128], strides = [1, 1]} : vector<8x512xf32> to vector<8x128xf32>
    %cst_82 = arith.constant 5.000000e-01 : f32
    %198 = vector.broadcast %cst_82 : f32 to vector<8x128xf32>
    %199 = arith.mulf %198, %197 : vector<8x128xf32>
    %200 = math.tanh %199 : vector<8x128xf32>
    %cst_83 = arith.constant 5.000000e-01 : f32
    %201 = vector.broadcast %cst_83 : f32 to vector<8x128xf32>
    %202 = arith.mulf %201, %200 : vector<8x128xf32>
    %cst_84 = arith.constant 5.000000e-01 : f32
    %203 = vector.broadcast %cst_84 : f32 to vector<8x128xf32>
    %204 = arith.addf %202, %203 : vector<8x128xf32>
    %205 = vector.extract_strided_slice %196 {offsets = [0, 128], sizes = [8, 128], strides = [1, 1]} : vector<8x512xf32> to vector<8x128xf32>
    %cst_85 = arith.constant 5.000000e-01 : f32
    %206 = vector.broadcast %cst_85 : f32 to vector<8x128xf32>
    %207 = arith.mulf %206, %205 : vector<8x128xf32>
    %208 = math.tanh %207 : vector<8x128xf32>
    %cst_86 = arith.constant 5.000000e-01 : f32
    %209 = vector.broadcast %cst_86 : f32 to vector<8x128xf32>
    %210 = arith.mulf %209, %208 : vector<8x128xf32>
    %cst_87 = arith.constant 5.000000e-01 : f32
    %211 = vector.broadcast %cst_87 : f32 to vector<8x128xf32>
    %212 = arith.addf %210, %211 : vector<8x128xf32>
    %213 = vector.extract_strided_slice %196 {offsets = [0, 256], sizes = [8, 128], strides = [1, 1]} : vector<8x512xf32> to vector<8x128xf32>
    %214 = math.tanh %213 : vector<8x128xf32>
    %215 = vector.extract_strided_slice %196 {offsets = [0, 384], sizes = [8, 128], strides = [1, 1]} : vector<8x512xf32> to vector<8x128xf32>
    %cst_88 = arith.constant 5.000000e-01 : f32
    %216 = vector.broadcast %cst_88 : f32 to vector<8x128xf32>
    %217 = arith.mulf %216, %215 : vector<8x128xf32>
    %218 = math.tanh %217 : vector<8x128xf32>
    %cst_89 = arith.constant 5.000000e-01 : f32
    %219 = vector.broadcast %cst_89 : f32 to vector<8x128xf32>
    %220 = arith.mulf %219, %218 : vector<8x128xf32>
    %cst_90 = arith.constant 5.000000e-01 : f32
    %221 = vector.broadcast %cst_90 : f32 to vector<8x128xf32>
    %222 = arith.addf %220, %221 : vector<8x128xf32>
    %223 = arith.mulf %212, %189 : vector<8x128xf32>
    %224 = arith.mulf %204, %214 : vector<8x128xf32>
    %225 = arith.addf %223, %224 : vector<8x128xf32>
    %226 = math.tanh %225 : vector<8x128xf32>
    %227 = arith.mulf %222, %226 : vector<8x128xf32>
    %228 = arith.truncf %227 : vector<8x128xf32> to vector<8x128xbf16>
    %c40_91 = arith.constant 40 : index
    %c0_92 = arith.constant 0 : index
    %229 = vector.load %arg15[%c40_91, %c0_92] : memref<64x128xf32, #tpu.memory_space<vmem>>, vector<8x128xf32>
    tpu.vector_store %arg15[%c40_91, %c0_92], %227 {strides = array<i32>} : memref<64x128xf32, #tpu.memory_space<vmem>>, vector<8x128xf32>,
    %c48 = arith.constant 48 : index
    %c0_93 = arith.constant 0 : index
    %230 = vector.load %arg13[%c48, %c0_93] : memref<64x512xf32, #tpu.memory_space<vmem>>, vector<8x512xf32>
    %cst_94 = arith.constant dense<0.000000e+00> : vector<8x512xf32>
    %231 = tpu.matmul %228, %10, %cst_94 {dimension_numbers = #tpu.dot_dimension_numbers<[1], [0], [0], [1], [0, 0, 1, 1], [], []>} : vector<8x128xbf16>, vector<128x512xbf16>, vector<8x512xf32> -> vector<8x512xf32>
    %232 = arith.addf %230, %231 : vector<8x512xf32>
    %233 = vector.extract_strided_slice %232 {offsets = [0, 0], sizes = [8, 128], strides = [1, 1]} : vector<8x512xf32> to vector<8x128xf32>
    %cst_95 = arith.constant 5.000000e-01 : f32
    %234 = vector.broadcast %cst_95 : f32 to vector<8x128xf32>
    %235 = arith.mulf %234, %233 : vector<8x128xf32>
    %236 = math.tanh %235 : vector<8x128xf32>
    %cst_96 = arith.constant 5.000000e-01 : f32
    %237 = vector.broadcast %cst_96 : f32 to vector<8x128xf32>
    %238 = arith.mulf %237, %236 : vector<8x128xf32>
    %cst_97 = arith.constant 5.000000e-01 : f32
    %239 = vector.broadcast %cst_97 : f32 to vector<8x128xf32>
    %240 = arith.addf %238, %239 : vector<8x128xf32>
    %241 = vector.extract_strided_slice %232 {offsets = [0, 128], sizes = [8, 128], strides = [1, 1]} : vector<8x512xf32> to vector<8x128xf32>
    %cst_98 = arith.constant 5.000000e-01 : f32
    %242 = vector.broadcast %cst_98 : f32 to vector<8x128xf32>
    %243 = arith.mulf %242, %241 : vector<8x128xf32>
    %244 = math.tanh %243 : vector<8x128xf32>
    %cst_99 = arith.constant 5.000000e-01 : f32
    %245 = vector.broadcast %cst_99 : f32 to vector<8x128xf32>
    %246 = arith.mulf %245, %244 : vector<8x128xf32>
    %cst_100 = arith.constant 5.000000e-01 : f32
    %247 = vector.broadcast %cst_100 : f32 to vector<8x128xf32>
    %248 = arith.addf %246, %247 : vector<8x128xf32>
    %249 = vector.extract_strided_slice %232 {offsets = [0, 256], sizes = [8, 128], strides = [1, 1]} : vector<8x512xf32> to vector<8x128xf32>
    %250 = math.tanh %249 : vector<8x128xf32>
    %251 = vector.extract_strided_slice %232 {offsets = [0, 384], sizes = [8, 128], strides = [1, 1]} : vector<8x512xf32> to vector<8x128xf32>
    %cst_101 = arith.constant 5.000000e-01 : f32
    %252 = vector.broadcast %cst_101 : f32 to vector<8x128xf32>
    %253 = arith.mulf %252, %251 : vector<8x128xf32>
    %254 = math.tanh %253 : vector<8x128xf32>
    %cst_102 = arith.constant 5.000000e-01 : f32
    %255 = vector.broadcast %cst_102 : f32 to vector<8x128xf32>
    %256 = arith.mulf %255, %254 : vector<8x128xf32>
    %cst_103 = arith.constant 5.000000e-01 : f32
    %257 = vector.broadcast %cst_103 : f32 to vector<8x128xf32>
    %258 = arith.addf %256, %257 : vector<8x128xf32>
    %259 = arith.mulf %248, %225 : vector<8x128xf32>
    %260 = arith.mulf %240, %250 : vector<8x128xf32>
    %261 = arith.addf %259, %260 : vector<8x128xf32>
    %262 = math.tanh %261 : vector<8x128xf32>
    %263 = arith.mulf %258, %262 : vector<8x128xf32>
    %264 = arith.truncf %263 : vector<8x128xf32> to vector<8x128xbf16>
    %c48_104 = arith.constant 48 : index
    %c0_105 = arith.constant 0 : index
    %265 = vector.load %arg15[%c48_104, %c0_105] : memref<64x128xf32, #tpu.memory_space<vmem>>, vector<8x128xf32>
    tpu.vector_store %arg15[%c48_104, %c0_105], %263 {strides = array<i32>} : memref<64x128xf32, #tpu.memory_space<vmem>>, vector<8x128xf32>,
    %c56 = arith.constant 56 : index
    %c0_106 = arith.constant 0 : index
    %266 = vector.load %arg13[%c56, %c0_106] : memref<64x512xf32, #tpu.memory_space<vmem>>, vector<8x512xf32>
    %cst_107 = arith.constant dense<0.000000e+00> : vector<8x512xf32>
    %267 = tpu.matmul %264, %10, %cst_107 {dimension_numbers = #tpu.dot_dimension_numbers<[1], [0], [0], [1], [0, 0, 1, 1], [], []>} : vector<8x128xbf16>, vector<128x512xbf16>, vector<8x512xf32> -> vector<8x512xf32>
    %268 = arith.addf %266, %267 : vector<8x512xf32>
    %269 = vector.extract_strided_slice %268 {offsets = [0, 0], sizes = [8, 128], strides = [1, 1]} : vector<8x512xf32> to vector<8x128xf32>
    %cst_108 = arith.constant 5.000000e-01 : f32
    %270 = vector.broadcast %cst_108 : f32 to vector<8x128xf32>
    %271 = arith.mulf %270, %269 : vector<8x128xf32>
    %272 = math.tanh %271 : vector<8x128xf32>
    %cst_109 = arith.constant 5.000000e-01 : f32
    %273 = vector.broadcast %cst_109 : f32 to vector<8x128xf32>
    %274 = arith.mulf %273, %272 : vector<8x128xf32>
    %cst_110 = arith.constant 5.000000e-01 : f32
    %275 = vector.broadcast %cst_110 : f32 to vector<8x128xf32>
    %276 = arith.addf %274, %275 : vector<8x128xf32>
    %277 = vector.extract_strided_slice %268 {offsets = [0, 128], sizes = [8, 128], strides = [1, 1]} : vector<8x512xf32> to vector<8x128xf32>
    %cst_111 = arith.constant 5.000000e-01 : f32
    %278 = vector.broadcast %cst_111 : f32 to vector<8x128xf32>
    %279 = arith.mulf %278, %277 : vector<8x128xf32>
    %280 = math.tanh %279 : vector<8x128xf32>
    %cst_112 = arith.constant 5.000000e-01 : f32
    %281 = vector.broadcast %cst_112 : f32 to vector<8x128xf32>
    %282 = arith.mulf %281, %280 : vector<8x128xf32>
    %cst_113 = arith.constant 5.000000e-01 : f32
    %283 = vector.broadcast %cst_113 : f32 to vector<8x128xf32>
    %284 = arith.addf %282, %283 : vector<8x128xf32>
    %285 = vector.extract_strided_slice %268 {offsets = [0, 256], sizes = [8, 128], strides = [1, 1]} : vector<8x512xf32> to vector<8x128xf32>
    %286 = math.tanh %285 : vector<8x128xf32>
    %287 = vector.extract_strided_slice %268 {offsets = [0, 384], sizes = [8, 128], strides = [1, 1]} : vector<8x512xf32> to vector<8x128xf32>
    %cst_114 = arith.constant 5.000000e-01 : f32
    %288 = vector.broadcast %cst_114 : f32 to vector<8x128xf32>
    %289 = arith.mulf %288, %287 : vector<8x128xf32>
    %290 = math.tanh %289 : vector<8x128xf32>
    %cst_115 = arith.constant 5.000000e-01 : f32
    %291 = vector.broadcast %cst_115 : f32 to vector<8x128xf32>
    %292 = arith.mulf %291, %290 : vector<8x128xf32>
    %cst_116 = arith.constant 5.000000e-01 : f32
    %293 = vector.broadcast %cst_116 : f32 to vector<8x128xf32>
    %294 = arith.addf %292, %293 : vector<8x128xf32>
    %295 = arith.mulf %284, %261 : vector<8x128xf32>
    %296 = arith.mulf %276, %286 : vector<8x128xf32>
    %297 = arith.addf %295, %296 : vector<8x128xf32>
    %298 = math.tanh %297 : vector<8x128xf32>
    %299 = arith.mulf %294, %298 : vector<8x128xf32>
    %c56_117 = arith.constant 56 : index
    %c0_118 = arith.constant 0 : index
    %300 = vector.load %arg15[%c56_117, %c0_118] : memref<64x128xf32, #tpu.memory_space<vmem>>, vector<8x128xf32>
    tpu.vector_store %arg15[%c56_117, %c0_118], %299 {strides = array<i32>} : memref<64x128xf32, #tpu.memory_space<vmem>>, vector<8x128xf32>,
    %c0_119 = arith.constant 0 : index
    %c0_120 = arith.constant 0 : index
    %301 = vector.load %arg15[%c0_119, %c0_120] : memref<64x128xf32, #tpu.memory_space<vmem>>, vector<64x128xf32>
    %302 = arith.truncf %301 : vector<64x128xf32> to vector<64x128xbf16>
    %c0_121 = arith.constant 0 : index
    %c0_122 = arith.constant 0 : index
    %303 = vector.load %arg5[%c0_121, %c0_122] : memref<128x512xbf16, #tpu.memory_space<vmem>>, vector<128x512xbf16>
    %cst_123 = arith.constant dense<0.000000e+00> : vector<64x512xf32>
    %304 = tpu.matmul %302, %303, %cst_123 {dimension_numbers = #tpu.dot_dimension_numbers<[1], [0], [0], [1], [0, 0, 1, 1], [], []>} : vector<64x128xbf16>, vector<128x512xbf16>, vector<64x512xf32> -> vector<64x512xf32>
    %c0_124 = arith.constant 0 : index
    %c0_125 = arith.constant 0 : index
    %305 = vector.load %arg7[%c0_124, %c0_125] : memref<1x512xf32, #tpu.memory_space<vmem>>, vector<1x512xf32>
    %306 = vector.broadcast %305 : vector<1x512xf32> to vector<64x512xf32>
    %307 = arith.addf %304, %306 : vector<64x512xf32>
    %c0_126 = arith.constant 0 : index
    %c0_127 = arith.constant 0 : index
    %308 = vector.load %arg14[%c0_126, %c0_127] : memref<64x512xf32, #tpu.memory_space<vmem>>, vector<64x512xf32>
    tpu.vector_store %arg14[%c0_126, %c0_127], %307 {strides = array<i32>} : memref<64x512xf32, #tpu.memory_space<vmem>>, vector<64x512xf32>,
    %cst_128 = arith.constant 0.000000e+00 : bf16
    %309 = vector.broadcast %cst_128 : bf16 to vector<8x128xbf16>
    %cst_129 = arith.constant 0.000000e+00 : f32
    %310 = vector.broadcast %cst_129 : f32 to vector<8x128xf32>
    %c0_130 = arith.constant 0 : index
    %c0_131 = arith.constant 0 : index
    %311 = vector.load %arg14[%c0_130, %c0_131] : memref<64x512xf32, #tpu.memory_space<vmem>>, vector<8x512xf32>
    %cst_132 = arith.constant dense<0.000000e+00> : vector<8x512xf32>
    %312 = tpu.matmul %309, %11, %cst_132 {dimension_numbers = #tpu.dot_dimension_numbers<[1], [0], [0], [1], [0, 0, 1, 1], [], []>} : vector<8x128xbf16>, vector<128x512xbf16>, vector<8x512xf32> -> vector<8x512xf32>
    %313 = arith.addf %311, %312 : vector<8x512xf32>
    %314 = vector.extract_strided_slice %313 {offsets = [0, 0], sizes = [8, 128], strides = [1, 1]} : vector<8x512xf32> to vector<8x128xf32>
    %cst_133 = arith.constant 5.000000e-01 : f32
    %315 = vector.broadcast %cst_133 : f32 to vector<8x128xf32>
    %316 = arith.mulf %315, %314 : vector<8x128xf32>
    %317 = math.tanh %316 : vector<8x128xf32>
    %cst_134 = arith.constant 5.000000e-01 : f32
    %318 = vector.broadcast %cst_134 : f32 to vector<8x128xf32>
    %319 = arith.mulf %318, %317 : vector<8x128xf32>
    %cst_135 = arith.constant 5.000000e-01 : f32
    %320 = vector.broadcast %cst_135 : f32 to vector<8x128xf32>
    %321 = arith.addf %319, %320 : vector<8x128xf32>
    %322 = vector.extract_strided_slice %313 {offsets = [0, 128], sizes = [8, 128], strides = [1, 1]} : vector<8x512xf32> to vector<8x128xf32>
    %cst_136 = arith.constant 5.000000e-01 : f32
    %323 = vector.broadcast %cst_136 : f32 to vector<8x128xf32>
    %324 = arith.mulf %323, %322 : vector<8x128xf32>
    %325 = math.tanh %324 : vector<8x128xf32>
    %cst_137 = arith.constant 5.000000e-01 : f32
    %326 = vector.broadcast %cst_137 : f32 to vector<8x128xf32>
    %327 = arith.mulf %326, %325 : vector<8x128xf32>
    %cst_138 = arith.constant 5.000000e-01 : f32
    %328 = vector.broadcast %cst_138 : f32 to vector<8x128xf32>
    %329 = arith.addf %327, %328 : vector<8x128xf32>
    %330 = vector.extract_strided_slice %313 {offsets = [0, 256], sizes = [8, 128], strides = [1, 1]} : vector<8x512xf32> to vector<8x128xf32>
    %331 = math.tanh %330 : vector<8x128xf32>
    %332 = vector.extract_strided_slice %313 {offsets = [0, 384], sizes = [8, 128], strides = [1, 1]} : vector<8x512xf32> to vector<8x128xf32>
    %cst_139 = arith.constant 5.000000e-01 : f32
    %333 = vector.broadcast %cst_139 : f32 to vector<8x128xf32>
    %334 = arith.mulf %333, %332 : vector<8x128xf32>
    %335 = math.tanh %334 : vector<8x128xf32>
    %cst_140 = arith.constant 5.000000e-01 : f32
    %336 = vector.broadcast %cst_140 : f32 to vector<8x128xf32>
    %337 = arith.mulf %336, %335 : vector<8x128xf32>
    %cst_141 = arith.constant 5.000000e-01 : f32
    %338 = vector.broadcast %cst_141 : f32 to vector<8x128xf32>
    %339 = arith.addf %337, %338 : vector<8x128xf32>
    %340 = arith.mulf %329, %310 : vector<8x128xf32>
    %341 = arith.mulf %321, %331 : vector<8x128xf32>
    %342 = arith.addf %340, %341 : vector<8x128xf32>
    %343 = math.tanh %342 : vector<8x128xf32>
    %344 = arith.mulf %339, %343 : vector<8x128xf32>
    %345 = arith.truncf %344 : vector<8x128xf32> to vector<8x128xbf16>
    %cst_142 = arith.constant 0.000000e+00 : f32
    %346 = vector.broadcast %cst_142 : f32 to vector<8x128xf32>
    %347 = arith.maximumf %344, %346 : vector<8x128xf32>
    %c0_143 = arith.constant 0 : index
    %c0_144 = arith.constant 0 : index
    %348 = vector.load %arg16[%c0_143, %c0_144] : memref<8x1024xf32, #tpu.memory_space<vmem>>, vector<8x128xf32>
    tpu.vector_store %arg16[%c0_143, %c0_144], %347 {strides = array<i32>} : memref<8x1024xf32, #tpu.memory_space<vmem>>, vector<8x128xf32>,
    %c8_145 = arith.constant 8 : index
    %c0_146 = arith.constant 0 : index
    %349 = vector.load %arg14[%c8_145, %c0_146] : memref<64x512xf32, #tpu.memory_space<vmem>>, vector<8x512xf32>
    %cst_147 = arith.constant dense<0.000000e+00> : vector<8x512xf32>
    %350 = tpu.matmul %345, %11, %cst_147 {dimension_numbers = #tpu.dot_dimension_numbers<[1], [0], [0], [1], [0, 0, 1, 1], [], []>} : vector<8x128xbf16>, vector<128x512xbf16>, vector<8x512xf32> -> vector<8x512xf32>
    %351 = arith.addf %349, %350 : vector<8x512xf32>
    %352 = vector.extract_strided_slice %351 {offsets = [0, 0], sizes = [8, 128], strides = [1, 1]} : vector<8x512xf32> to vector<8x128xf32>
    %cst_148 = arith.constant 5.000000e-01 : f32
    %353 = vector.broadcast %cst_148 : f32 to vector<8x128xf32>
    %354 = arith.mulf %353, %352 : vector<8x128xf32>
    %355 = math.tanh %354 : vector<8x128xf32>
    %cst_149 = arith.constant 5.000000e-01 : f32
    %356 = vector.broadcast %cst_149 : f32 to vector<8x128xf32>
    %357 = arith.mulf %356, %355 : vector<8x128xf32>
    %cst_150 = arith.constant 5.000000e-01 : f32
    %358 = vector.broadcast %cst_150 : f32 to vector<8x128xf32>
    %359 = arith.addf %357, %358 : vector<8x128xf32>
    %360 = vector.extract_strided_slice %351 {offsets = [0, 128], sizes = [8, 128], strides = [1, 1]} : vector<8x512xf32> to vector<8x128xf32>
    %cst_151 = arith.constant 5.000000e-01 : f32
    %361 = vector.broadcast %cst_151 : f32 to vector<8x128xf32>
    %362 = arith.mulf %361, %360 : vector<8x128xf32>
    %363 = math.tanh %362 : vector<8x128xf32>
    %cst_152 = arith.constant 5.000000e-01 : f32
    %364 = vector.broadcast %cst_152 : f32 to vector<8x128xf32>
    %365 = arith.mulf %364, %363 : vector<8x128xf32>
    %cst_153 = arith.constant 5.000000e-01 : f32
    %366 = vector.broadcast %cst_153 : f32 to vector<8x128xf32>
    %367 = arith.addf %365, %366 : vector<8x128xf32>
    %368 = vector.extract_strided_slice %351 {offsets = [0, 256], sizes = [8, 128], strides = [1, 1]} : vector<8x512xf32> to vector<8x128xf32>
    %369 = math.tanh %368 : vector<8x128xf32>
    %370 = vector.extract_strided_slice %351 {offsets = [0, 384], sizes = [8, 128], strides = [1, 1]} : vector<8x512xf32> to vector<8x128xf32>
    %cst_154 = arith.constant 5.000000e-01 : f32
    %371 = vector.broadcast %cst_154 : f32 to vector<8x128xf32>
    %372 = arith.mulf %371, %370 : vector<8x128xf32>
    %373 = math.tanh %372 : vector<8x128xf32>
    %cst_155 = arith.constant 5.000000e-01 : f32
    %374 = vector.broadcast %cst_155 : f32 to vector<8x128xf32>
    %375 = arith.mulf %374, %373 : vector<8x128xf32>
    %cst_156 = arith.constant 5.000000e-01 : f32
    %376 = vector.broadcast %cst_156 : f32 to vector<8x128xf32>
    %377 = arith.addf %375, %376 : vector<8x128xf32>
    %378 = arith.mulf %367, %342 : vector<8x128xf32>
    %379 = arith.mulf %359, %369 : vector<8x128xf32>
    %380 = arith.addf %378, %379 : vector<8x128xf32>
    %381 = math.tanh %380 : vector<8x128xf32>
    %382 = arith.mulf %377, %381 : vector<8x128xf32>
    %383 = arith.truncf %382 : vector<8x128xf32> to vector<8x128xbf16>
    %cst_157 = arith.constant 0.000000e+00 : f32
    %384 = vector.broadcast %cst_157 : f32 to vector<8x128xf32>
    %385 = arith.maximumf %382, %384 : vector<8x128xf32>
    %c0_158 = arith.constant 0 : index
    %c128 = arith.constant 128 : index
    %386 = vector.load %arg16[%c0_158, %c128] : memref<8x1024xf32, #tpu.memory_space<vmem>>, vector<8x128xf32>
    tpu.vector_store %arg16[%c0_158, %c128], %385 {strides = array<i32>} : memref<8x1024xf32, #tpu.memory_space<vmem>>, vector<8x128xf32>,
    %c16_159 = arith.constant 16 : index
    %c0_160 = arith.constant 0 : index
    %387 = vector.load %arg14[%c16_159, %c0_160] : memref<64x512xf32, #tpu.memory_space<vmem>>, vector<8x512xf32>
    %cst_161 = arith.constant dense<0.000000e+00> : vector<8x512xf32>
    %388 = tpu.matmul %383, %11, %cst_161 {dimension_numbers = #tpu.dot_dimension_numbers<[1], [0], [0], [1], [0, 0, 1, 1], [], []>} : vector<8x128xbf16>, vector<128x512xbf16>, vector<8x512xf32> -> vector<8x512xf32>
    %389 = arith.addf %387, %388 : vector<8x512xf32>
    %390 = vector.extract_strided_slice %389 {offsets = [0, 0], sizes = [8, 128], strides = [1, 1]} : vector<8x512xf32> to vector<8x128xf32>
    %cst_162 = arith.constant 5.000000e-01 : f32
    %391 = vector.broadcast %cst_162 : f32 to vector<8x128xf32>
    %392 = arith.mulf %391, %390 : vector<8x128xf32>
    %393 = math.tanh %392 : vector<8x128xf32>
    %cst_163 = arith.constant 5.000000e-01 : f32
    %394 = vector.broadcast %cst_163 : f32 to vector<8x128xf32>
    %395 = arith.mulf %394, %393 : vector<8x128xf32>
    %cst_164 = arith.constant 5.000000e-01 : f32
    %396 = vector.broadcast %cst_164 : f32 to vector<8x128xf32>
    %397 = arith.addf %395, %396 : vector<8x128xf32>
    %398 = vector.extract_strided_slice %389 {offsets = [0, 128], sizes = [8, 128], strides = [1, 1]} : vector<8x512xf32> to vector<8x128xf32>
    %cst_165 = arith.constant 5.000000e-01 : f32
    %399 = vector.broadcast %cst_165 : f32 to vector<8x128xf32>
    %400 = arith.mulf %399, %398 : vector<8x128xf32>
    %401 = math.tanh %400 : vector<8x128xf32>
    %cst_166 = arith.constant 5.000000e-01 : f32
    %402 = vector.broadcast %cst_166 : f32 to vector<8x128xf32>
    %403 = arith.mulf %402, %401 : vector<8x128xf32>
    %cst_167 = arith.constant 5.000000e-01 : f32
    %404 = vector.broadcast %cst_167 : f32 to vector<8x128xf32>
    %405 = arith.addf %403, %404 : vector<8x128xf32>
    %406 = vector.extract_strided_slice %389 {offsets = [0, 256], sizes = [8, 128], strides = [1, 1]} : vector<8x512xf32> to vector<8x128xf32>
    %407 = math.tanh %406 : vector<8x128xf32>
    %408 = vector.extract_strided_slice %389 {offsets = [0, 384], sizes = [8, 128], strides = [1, 1]} : vector<8x512xf32> to vector<8x128xf32>
    %cst_168 = arith.constant 5.000000e-01 : f32
    %409 = vector.broadcast %cst_168 : f32 to vector<8x128xf32>
    %410 = arith.mulf %409, %408 : vector<8x128xf32>
    %411 = math.tanh %410 : vector<8x128xf32>
    %cst_169 = arith.constant 5.000000e-01 : f32
    %412 = vector.broadcast %cst_169 : f32 to vector<8x128xf32>
    %413 = arith.mulf %412, %411 : vector<8x128xf32>
    %cst_170 = arith.constant 5.000000e-01 : f32
    %414 = vector.broadcast %cst_170 : f32 to vector<8x128xf32>
    %415 = arith.addf %413, %414 : vector<8x128xf32>
    %416 = arith.mulf %405, %380 : vector<8x128xf32>
    %417 = arith.mulf %397, %407 : vector<8x128xf32>
    %418 = arith.addf %416, %417 : vector<8x128xf32>
    %419 = math.tanh %418 : vector<8x128xf32>
    %420 = arith.mulf %415, %419 : vector<8x128xf32>
    %421 = arith.truncf %420 : vector<8x128xf32> to vector<8x128xbf16>
    %cst_171 = arith.constant 0.000000e+00 : f32
    %422 = vector.broadcast %cst_171 : f32 to vector<8x128xf32>
    %423 = arith.maximumf %420, %422 : vector<8x128xf32>
    %c0_172 = arith.constant 0 : index
    %c256 = arith.constant 256 : index
    %424 = vector.load %arg16[%c0_172, %c256] : memref<8x1024xf32, #tpu.memory_space<vmem>>, vector<8x128xf32>
    tpu.vector_store %arg16[%c0_172, %c256], %423 {strides = array<i32>} : memref<8x1024xf32, #tpu.memory_space<vmem>>, vector<8x128xf32>,
    %c24_173 = arith.constant 24 : index
    %c0_174 = arith.constant 0 : index
    %425 = vector.load %arg14[%c24_173, %c0_174] : memref<64x512xf32, #tpu.memory_space<vmem>>, vector<8x512xf32>
    %cst_175 = arith.constant dense<0.000000e+00> : vector<8x512xf32>
    %426 = tpu.matmul %421, %11, %cst_175 {dimension_numbers = #tpu.dot_dimension_numbers<[1], [0], [0], [1], [0, 0, 1, 1], [], []>} : vector<8x128xbf16>, vector<128x512xbf16>, vector<8x512xf32> -> vector<8x512xf32>
    %427 = arith.addf %425, %426 : vector<8x512xf32>
    %428 = vector.extract_strided_slice %427 {offsets = [0, 0], sizes = [8, 128], strides = [1, 1]} : vector<8x512xf32> to vector<8x128xf32>
    %cst_176 = arith.constant 5.000000e-01 : f32
    %429 = vector.broadcast %cst_176 : f32 to vector<8x128xf32>
    %430 = arith.mulf %429, %428 : vector<8x128xf32>
    %431 = math.tanh %430 : vector<8x128xf32>
    %cst_177 = arith.constant 5.000000e-01 : f32
    %432 = vector.broadcast %cst_177 : f32 to vector<8x128xf32>
    %433 = arith.mulf %432, %431 : vector<8x128xf32>
    %cst_178 = arith.constant 5.000000e-01 : f32
    %434 = vector.broadcast %cst_178 : f32 to vector<8x128xf32>
    %435 = arith.addf %433, %434 : vector<8x128xf32>
    %436 = vector.extract_strided_slice %427 {offsets = [0, 128], sizes = [8, 128], strides = [1, 1]} : vector<8x512xf32> to vector<8x128xf32>
    %cst_179 = arith.constant 5.000000e-01 : f32
    %437 = vector.broadcast %cst_179 : f32 to vector<8x128xf32>
    %438 = arith.mulf %437, %436 : vector<8x128xf32>
    %439 = math.tanh %438 : vector<8x128xf32>
    %cst_180 = arith.constant 5.000000e-01 : f32
    %440 = vector.broadcast %cst_180 : f32 to vector<8x128xf32>
    %441 = arith.mulf %440, %439 : vector<8x128xf32>
    %cst_181 = arith.constant 5.000000e-01 : f32
    %442 = vector.broadcast %cst_181 : f32 to vector<8x128xf32>
    %443 = arith.addf %441, %442 : vector<8x128xf32>
    %444 = vector.extract_strided_slice %427 {offsets = [0, 256], sizes = [8, 128], strides = [1, 1]} : vector<8x512xf32> to vector<8x128xf32>
    %445 = math.tanh %444 : vector<8x128xf32>
    %446 = vector.extract_strided_slice %427 {offsets = [0, 384], sizes = [8, 128], strides = [1, 1]} : vector<8x512xf32> to vector<8x128xf32>
    %cst_182 = arith.constant 5.000000e-01 : f32
    %447 = vector.broadcast %cst_182 : f32 to vector<8x128xf32>
    %448 = arith.mulf %447, %446 : vector<8x128xf32>
    %449 = math.tanh %448 : vector<8x128xf32>
    %cst_183 = arith.constant 5.000000e-01 : f32
    %450 = vector.broadcast %cst_183 : f32 to vector<8x128xf32>
    %451 = arith.mulf %450, %449 : vector<8x128xf32>
    %cst_184 = arith.constant 5.000000e-01 : f32
    %452 = vector.broadcast %cst_184 : f32 to vector<8x128xf32>
    %453 = arith.addf %451, %452 : vector<8x128xf32>
    %454 = arith.mulf %443, %418 : vector<8x128xf32>
    %455 = arith.mulf %435, %445 : vector<8x128xf32>
    %456 = arith.addf %454, %455 : vector<8x128xf32>
    %457 = math.tanh %456 : vector<8x128xf32>
    %458 = arith.mulf %453, %457 : vector<8x128xf32>
    %459 = arith.truncf %458 : vector<8x128xf32> to vector<8x128xbf16>
    %cst_185 = arith.constant 0.000000e+00 : f32
    %460 = vector.broadcast %cst_185 : f32 to vector<8x128xf32>
    %461 = arith.maximumf %458, %460 : vector<8x128xf32>
    %c0_186 = arith.constant 0 : index
    %c384 = arith.constant 384 : index
    %462 = vector.load %arg16[%c0_186, %c384] : memref<8x1024xf32, #tpu.memory_space<vmem>>, vector<8x128xf32>
    tpu.vector_store %arg16[%c0_186, %c384], %461 {strides = array<i32>} : memref<8x1024xf32, #tpu.memory_space<vmem>>, vector<8x128xf32>,
    %c32_187 = arith.constant 32 : index
    %c0_188 = arith.constant 0 : index
    %463 = vector.load %arg14[%c32_187, %c0_188] : memref<64x512xf32, #tpu.memory_space<vmem>>, vector<8x512xf32>
    %cst_189 = arith.constant dense<0.000000e+00> : vector<8x512xf32>
    %464 = tpu.matmul %459, %11, %cst_189 {dimension_numbers = #tpu.dot_dimension_numbers<[1], [0], [0], [1], [0, 0, 1, 1], [], []>} : vector<8x128xbf16>, vector<128x512xbf16>, vector<8x512xf32> -> vector<8x512xf32>
    %465 = arith.addf %463, %464 : vector<8x512xf32>
    %466 = vector.extract_strided_slice %465 {offsets = [0, 0], sizes = [8, 128], strides = [1, 1]} : vector<8x512xf32> to vector<8x128xf32>
    %cst_190 = arith.constant 5.000000e-01 : f32
    %467 = vector.broadcast %cst_190 : f32 to vector<8x128xf32>
    %468 = arith.mulf %467, %466 : vector<8x128xf32>
    %469 = math.tanh %468 : vector<8x128xf32>
    %cst_191 = arith.constant 5.000000e-01 : f32
    %470 = vector.broadcast %cst_191 : f32 to vector<8x128xf32>
    %471 = arith.mulf %470, %469 : vector<8x128xf32>
    %cst_192 = arith.constant 5.000000e-01 : f32
    %472 = vector.broadcast %cst_192 : f32 to vector<8x128xf32>
    %473 = arith.addf %471, %472 : vector<8x128xf32>
    %474 = vector.extract_strided_slice %465 {offsets = [0, 128], sizes = [8, 128], strides = [1, 1]} : vector<8x512xf32> to vector<8x128xf32>
    %cst_193 = arith.constant 5.000000e-01 : f32
    %475 = vector.broadcast %cst_193 : f32 to vector<8x128xf32>
    %476 = arith.mulf %475, %474 : vector<8x128xf32>
    %477 = math.tanh %476 : vector<8x128xf32>
    %cst_194 = arith.constant 5.000000e-01 : f32
    %478 = vector.broadcast %cst_194 : f32 to vector<8x128xf32>
    %479 = arith.mulf %478, %477 : vector<8x128xf32>
    %cst_195 = arith.constant 5.000000e-01 : f32
    %480 = vector.broadcast %cst_195 : f32 to vector<8x128xf32>
    %481 = arith.addf %479, %480 : vector<8x128xf32>
    %482 = vector.extract_strided_slice %465 {offsets = [0, 256], sizes = [8, 128], strides = [1, 1]} : vector<8x512xf32> to vector<8x128xf32>
    %483 = math.tanh %482 : vector<8x128xf32>
    %484 = vector.extract_strided_slice %465 {offsets = [0, 384], sizes = [8, 128], strides = [1, 1]} : vector<8x512xf32> to vector<8x128xf32>
    %cst_196 = arith.constant 5.000000e-01 : f32
    %485 = vector.broadcast %cst_196 : f32 to vector<8x128xf32>
    %486 = arith.mulf %485, %484 : vector<8x128xf32>
    %487 = math.tanh %486 : vector<8x128xf32>
    %cst_197 = arith.constant 5.000000e-01 : f32
    %488 = vector.broadcast %cst_197 : f32 to vector<8x128xf32>
    %489 = arith.mulf %488, %487 : vector<8x128xf32>
    %cst_198 = arith.constant 5.000000e-01 : f32
    %490 = vector.broadcast %cst_198 : f32 to vector<8x128xf32>
    %491 = arith.addf %489, %490 : vector<8x128xf32>
    %492 = arith.mulf %481, %456 : vector<8x128xf32>
    %493 = arith.mulf %473, %483 : vector<8x128xf32>
    %494 = arith.addf %492, %493 : vector<8x128xf32>
    %495 = math.tanh %494 : vector<8x128xf32>
    %496 = arith.mulf %491, %495 : vector<8x128xf32>
    %497 = arith.truncf %496 : vector<8x128xf32> to vector<8x128xbf16>
    %cst_199 = arith.constant 0.000000e+00 : f32
    %498 = vector.broadcast %cst_199 : f32 to vector<8x128xf32>
    %499 = arith.maximumf %496, %498 : vector<8x128xf32>
    %c0_200 = arith.constant 0 : index
    %c512 = arith.constant 512 : index
    %500 = vector.load %arg16[%c0_200, %c512] : memref<8x1024xf32, #tpu.memory_space<vmem>>, vector<8x128xf32>
    tpu.vector_store %arg16[%c0_200, %c512], %499 {strides = array<i32>} : memref<8x1024xf32, #tpu.memory_space<vmem>>, vector<8x128xf32>,
    %c40_201 = arith.constant 40 : index
    %c0_202 = arith.constant 0 : index
    %501 = vector.load %arg14[%c40_201, %c0_202] : memref<64x512xf32, #tpu.memory_space<vmem>>, vector<8x512xf32>
    %cst_203 = arith.constant dense<0.000000e+00> : vector<8x512xf32>
    %502 = tpu.matmul %497, %11, %cst_203 {dimension_numbers = #tpu.dot_dimension_numbers<[1], [0], [0], [1], [0, 0, 1, 1], [], []>} : vector<8x128xbf16>, vector<128x512xbf16>, vector<8x512xf32> -> vector<8x512xf32>
    %503 = arith.addf %501, %502 : vector<8x512xf32>
    %504 = vector.extract_strided_slice %503 {offsets = [0, 0], sizes = [8, 128], strides = [1, 1]} : vector<8x512xf32> to vector<8x128xf32>
    %cst_204 = arith.constant 5.000000e-01 : f32
    %505 = vector.broadcast %cst_204 : f32 to vector<8x128xf32>
    %506 = arith.mulf %505, %504 : vector<8x128xf32>
    %507 = math.tanh %506 : vector<8x128xf32>
    %cst_205 = arith.constant 5.000000e-01 : f32
    %508 = vector.broadcast %cst_205 : f32 to vector<8x128xf32>
    %509 = arith.mulf %508, %507 : vector<8x128xf32>
    %cst_206 = arith.constant 5.000000e-01 : f32
    %510 = vector.broadcast %cst_206 : f32 to vector<8x128xf32>
    %511 = arith.addf %509, %510 : vector<8x128xf32>
    %512 = vector.extract_strided_slice %503 {offsets = [0, 128], sizes = [8, 128], strides = [1, 1]} : vector<8x512xf32> to vector<8x128xf32>
    %cst_207 = arith.constant 5.000000e-01 : f32
    %513 = vector.broadcast %cst_207 : f32 to vector<8x128xf32>
    %514 = arith.mulf %513, %512 : vector<8x128xf32>
    %515 = math.tanh %514 : vector<8x128xf32>
    %cst_208 = arith.constant 5.000000e-01 : f32
    %516 = vector.broadcast %cst_208 : f32 to vector<8x128xf32>
    %517 = arith.mulf %516, %515 : vector<8x128xf32>
    %cst_209 = arith.constant 5.000000e-01 : f32
    %518 = vector.broadcast %cst_209 : f32 to vector<8x128xf32>
    %519 = arith.addf %517, %518 : vector<8x128xf32>
    %520 = vector.extract_strided_slice %503 {offsets = [0, 256], sizes = [8, 128], strides = [1, 1]} : vector<8x512xf32> to vector<8x128xf32>
    %521 = math.tanh %520 : vector<8x128xf32>
    %522 = vector.extract_strided_slice %503 {offsets = [0, 384], sizes = [8, 128], strides = [1, 1]} : vector<8x512xf32> to vector<8x128xf32>
    %cst_210 = arith.constant 5.000000e-01 : f32
    %523 = vector.broadcast %cst_210 : f32 to vector<8x128xf32>
    %524 = arith.mulf %523, %522 : vector<8x128xf32>
    %525 = math.tanh %524 : vector<8x128xf32>
    %cst_211 = arith.constant 5.000000e-01 : f32
    %526 = vector.broadcast %cst_211 : f32 to vector<8x128xf32>
    %527 = arith.mulf %526, %525 : vector<8x128xf32>
    %cst_212 = arith.constant 5.000000e-01 : f32
    %528 = vector.broadcast %cst_212 : f32 to vector<8x128xf32>
    %529 = arith.addf %527, %528 : vector<8x128xf32>
    %530 = arith.mulf %519, %494 : vector<8x128xf32>
    %531 = arith.mulf %511, %521 : vector<8x128xf32>
    %532 = arith.addf %530, %531 : vector<8x128xf32>
    %533 = math.tanh %532 : vector<8x128xf32>
    %534 = arith.mulf %529, %533 : vector<8x128xf32>
    %535 = arith.truncf %534 : vector<8x128xf32> to vector<8x128xbf16>
    %cst_213 = arith.constant 0.000000e+00 : f32
    %536 = vector.broadcast %cst_213 : f32 to vector<8x128xf32>
    %537 = arith.maximumf %534, %536 : vector<8x128xf32>
    %c0_214 = arith.constant 0 : index
    %c640 = arith.constant 640 : index
    %538 = vector.load %arg16[%c0_214, %c640] : memref<8x1024xf32, #tpu.memory_space<vmem>>, vector<8x128xf32>
    tpu.vector_store %arg16[%c0_214, %c640], %537 {strides = array<i32>} : memref<8x1024xf32, #tpu.memory_space<vmem>>, vector<8x128xf32>,
    %c48_215 = arith.constant 48 : index
    %c0_216 = arith.constant 0 : index
    %539 = vector.load %arg14[%c48_215, %c0_216] : memref<64x512xf32, #tpu.memory_space<vmem>>, vector<8x512xf32>
    %cst_217 = arith.constant dense<0.000000e+00> : vector<8x512xf32>
    %540 = tpu.matmul %535, %11, %cst_217 {dimension_numbers = #tpu.dot_dimension_numbers<[1], [0], [0], [1], [0, 0, 1, 1], [], []>} : vector<8x128xbf16>, vector<128x512xbf16>, vector<8x512xf32> -> vector<8x512xf32>
    %541 = arith.addf %539, %540 : vector<8x512xf32>
    %542 = vector.extract_strided_slice %541 {offsets = [0, 0], sizes = [8, 128], strides = [1, 1]} : vector<8x512xf32> to vector<8x128xf32>
    %cst_218 = arith.constant 5.000000e-01 : f32
    %543 = vector.broadcast %cst_218 : f32 to vector<8x128xf32>
    %544 = arith.mulf %543, %542 : vector<8x128xf32>
    %545 = math.tanh %544 : vector<8x128xf32>
    %cst_219 = arith.constant 5.000000e-01 : f32
    %546 = vector.broadcast %cst_219 : f32 to vector<8x128xf32>
    %547 = arith.mulf %546, %545 : vector<8x128xf32>
    %cst_220 = arith.constant 5.000000e-01 : f32
    %548 = vector.broadcast %cst_220 : f32 to vector<8x128xf32>
    %549 = arith.addf %547, %548 : vector<8x128xf32>
    %550 = vector.extract_strided_slice %541 {offsets = [0, 128], sizes = [8, 128], strides = [1, 1]} : vector<8x512xf32> to vector<8x128xf32>
    %cst_221 = arith.constant 5.000000e-01 : f32
    %551 = vector.broadcast %cst_221 : f32 to vector<8x128xf32>
    %552 = arith.mulf %551, %550 : vector<8x128xf32>
    %553 = math.tanh %552 : vector<8x128xf32>
    %cst_222 = arith.constant 5.000000e-01 : f32
    %554 = vector.broadcast %cst_222 : f32 to vector<8x128xf32>
    %555 = arith.mulf %554, %553 : vector<8x128xf32>
    %cst_223 = arith.constant 5.000000e-01 : f32
    %556 = vector.broadcast %cst_223 : f32 to vector<8x128xf32>
    %557 = arith.addf %555, %556 : vector<8x128xf32>
    %558 = vector.extract_strided_slice %541 {offsets = [0, 256], sizes = [8, 128], strides = [1, 1]} : vector<8x512xf32> to vector<8x128xf32>
    %559 = math.tanh %558 : vector<8x128xf32>
    %560 = vector.extract_strided_slice %541 {offsets = [0, 384], sizes = [8, 128], strides = [1, 1]} : vector<8x512xf32> to vector<8x128xf32>
    %cst_224 = arith.constant 5.000000e-01 : f32
    %561 = vector.broadcast %cst_224 : f32 to vector<8x128xf32>
    %562 = arith.mulf %561, %560 : vector<8x128xf32>
    %563 = math.tanh %562 : vector<8x128xf32>
    %cst_225 = arith.constant 5.000000e-01 : f32
    %564 = vector.broadcast %cst_225 : f32 to vector<8x128xf32>
    %565 = arith.mulf %564, %563 : vector<8x128xf32>
    %cst_226 = arith.constant 5.000000e-01 : f32
    %566 = vector.broadcast %cst_226 : f32 to vector<8x128xf32>
    %567 = arith.addf %565, %566 : vector<8x128xf32>
    %568 = arith.mulf %557, %532 : vector<8x128xf32>
    %569 = arith.mulf %549, %559 : vector<8x128xf32>
    %570 = arith.addf %568, %569 : vector<8x128xf32>
    %571 = math.tanh %570 : vector<8x128xf32>
    %572 = arith.mulf %567, %571 : vector<8x128xf32>
    %573 = arith.truncf %572 : vector<8x128xf32> to vector<8x128xbf16>
    %cst_227 = arith.constant 0.000000e+00 : f32
    %574 = vector.broadcast %cst_227 : f32 to vector<8x128xf32>
    %575 = arith.maximumf %572, %574 : vector<8x128xf32>
    %c0_228 = arith.constant 0 : index
    %c768 = arith.constant 768 : index
    %576 = vector.load %arg16[%c0_228, %c768] : memref<8x1024xf32, #tpu.memory_space<vmem>>, vector<8x128xf32>
    tpu.vector_store %arg16[%c0_228, %c768], %575 {strides = array<i32>} : memref<8x1024xf32, #tpu.memory_space<vmem>>, vector<8x128xf32>,
    %c56_229 = arith.constant 56 : index
    %c0_230 = arith.constant 0 : index
    %577 = vector.load %arg14[%c56_229, %c0_230] : memref<64x512xf32, #tpu.memory_space<vmem>>, vector<8x512xf32>
    %cst_231 = arith.constant dense<0.000000e+00> : vector<8x512xf32>
    %578 = tpu.matmul %573, %11, %cst_231 {dimension_numbers = #tpu.dot_dimension_numbers<[1], [0], [0], [1], [0, 0, 1, 1], [], []>} : vector<8x128xbf16>, vector<128x512xbf16>, vector<8x512xf32> -> vector<8x512xf32>
    %579 = arith.addf %577, %578 : vector<8x512xf32>
    %580 = vector.extract_strided_slice %579 {offsets = [0, 0], sizes = [8, 128], strides = [1, 1]} : vector<8x512xf32> to vector<8x128xf32>
    %cst_232 = arith.constant 5.000000e-01 : f32
    %581 = vector.broadcast %cst_232 : f32 to vector<8x128xf32>
    %582 = arith.mulf %581, %580 : vector<8x128xf32>
    %583 = math.tanh %582 : vector<8x128xf32>
    %cst_233 = arith.constant 5.000000e-01 : f32
    %584 = vector.broadcast %cst_233 : f32 to vector<8x128xf32>
    %585 = arith.mulf %584, %583 : vector<8x128xf32>
    %cst_234 = arith.constant 5.000000e-01 : f32
    %586 = vector.broadcast %cst_234 : f32 to vector<8x128xf32>
    %587 = arith.addf %585, %586 : vector<8x128xf32>
    %588 = vector.extract_strided_slice %579 {offsets = [0, 128], sizes = [8, 128], strides = [1, 1]} : vector<8x512xf32> to vector<8x128xf32>
    %cst_235 = arith.constant 5.000000e-01 : f32
    %589 = vector.broadcast %cst_235 : f32 to vector<8x128xf32>
    %590 = arith.mulf %589, %588 : vector<8x128xf32>
    %591 = math.tanh %590 : vector<8x128xf32>
    %cst_236 = arith.constant 5.000000e-01 : f32
    %592 = vector.broadcast %cst_236 : f32 to vector<8x128xf32>
    %593 = arith.mulf %592, %591 : vector<8x128xf32>
    %cst_237 = arith.constant 5.000000e-01 : f32
    %594 = vector.broadcast %cst_237 : f32 to vector<8x128xf32>
    %595 = arith.addf %593, %594 : vector<8x128xf32>
    %596 = vector.extract_strided_slice %579 {offsets = [0, 256], sizes = [8, 128], strides = [1, 1]} : vector<8x512xf32> to vector<8x128xf32>
    %597 = math.tanh %596 : vector<8x128xf32>
    %598 = vector.extract_strided_slice %579 {offsets = [0, 384], sizes = [8, 128], strides = [1, 1]} : vector<8x512xf32> to vector<8x128xf32>
    %cst_238 = arith.constant 5.000000e-01 : f32
    %599 = vector.broadcast %cst_238 : f32 to vector<8x128xf32>
    %600 = arith.mulf %599, %598 : vector<8x128xf32>
    %601 = math.tanh %600 : vector<8x128xf32>
    %cst_239 = arith.constant 5.000000e-01 : f32
    %602 = vector.broadcast %cst_239 : f32 to vector<8x128xf32>
    %603 = arith.mulf %602, %601 : vector<8x128xf32>
    %cst_240 = arith.constant 5.000000e-01 : f32
    %604 = vector.broadcast %cst_240 : f32 to vector<8x128xf32>
    %605 = arith.addf %603, %604 : vector<8x128xf32>
    %606 = arith.mulf %595, %570 : vector<8x128xf32>
    %607 = arith.mulf %587, %597 : vector<8x128xf32>
    %608 = arith.addf %606, %607 : vector<8x128xf32>
    %609 = math.tanh %608 : vector<8x128xf32>
    %610 = arith.mulf %605, %609 : vector<8x128xf32>
    %cst_241 = arith.constant 0.000000e+00 : f32
    %611 = vector.broadcast %cst_241 : f32 to vector<8x128xf32>
    %612 = arith.maximumf %610, %611 : vector<8x128xf32>
    %c0_242 = arith.constant 0 : index
    %c896 = arith.constant 896 : index
    %613 = vector.load %arg16[%c0_242, %c896] : memref<8x1024xf32, #tpu.memory_space<vmem>>, vector<8x128xf32>
    tpu.vector_store %arg16[%c0_242, %c896], %612 {strides = array<i32>} : memref<8x1024xf32, #tpu.memory_space<vmem>>, vector<8x128xf32>,
    %c0_243 = arith.constant 0 : index
    %c0_244 = arith.constant 0 : index
    %614 = vector.load %arg16[%c0_243, %c0_244] : memref<8x1024xf32, #tpu.memory_space<vmem>>, vector<8x1024xf32>
    %615 = arith.truncf %614 : vector<8x1024xf32> to vector<8x1024xbf16>
    %c0_245 = arith.constant 0 : index
    %c0_246 = arith.constant 0 : index
    %616 = vector.load %arg8[%c0_245, %c0_246] : memref<1024x128xbf16, #tpu.memory_space<vmem>>, vector<1024x128xbf16>
    %cst_247 = arith.constant dense<0.000000e+00> : vector<8x128xf32>
    %617 = tpu.matmul %615, %616, %cst_247 {dimension_numbers = #tpu.dot_dimension_numbers<[1], [0], [0], [1], [0, 0, 1, 1], [], []>} : vector<8x1024xbf16>, vector<1024x128xbf16>, vector<8x128xf32> -> vector<8x128xf32>
    %c0_248 = arith.constant 0 : index
    %c0_249 = arith.constant 0 : index
    %618 = vector.load %arg9[%c0_248, %c0_249] : memref<1x128xf32, #tpu.memory_space<vmem>>, vector<1x128xf32>
    %619 = vector.broadcast %618 : vector<1x128xf32> to vector<8x128xf32>
    %620 = arith.addf %617, %619 : vector<8x128xf32>
    %cst_250 = arith.constant 0.000000e+00 : f32
    %621 = vector.broadcast %cst_250 : f32 to vector<8x128xf32>
    %622 = arith.maximumf %620, %621 : vector<8x128xf32>
    %623 = arith.truncf %622 : vector<8x128xf32> to vector<8x128xbf16>
    %c0_251 = arith.constant 0 : index
    %c0_252 = arith.constant 0 : index
    %624 = vector.load %arg10[%c0_251, %c0_252] : memref<128x128xbf16, #tpu.memory_space<vmem>>, vector<128x128xbf16>
    %cst_253 = arith.constant dense<0.000000e+00> : vector<8x128xf32>
    %625 = tpu.matmul %623, %624, %cst_253 {dimension_numbers = #tpu.dot_dimension_numbers<[1], [0], [0], [1], [0, 0, 1, 1], [], []>} : vector<8x128xbf16>, vector<128x128xbf16>, vector<8x128xf32> -> vector<8x128xf32>
    %c0_254 = arith.constant 0 : index
    %c0_255 = arith.constant 0 : index
    %626 = vector.load %arg11[%c0_254, %c0_255] : memref<1x128xf32, #tpu.memory_space<vmem>>, vector<1x128xf32>
    %627 = vector.broadcast %626 : vector<1x128xf32> to vector<8x128xf32>
    %628 = arith.addf %625, %627 : vector<8x128xf32>
    %cst_256 = arith.constant dense<0xFF800000> : vector<8xf32>
    %629 = vector.multi_reduction <maximumf>, %628, %cst_256 [1] : vector<8x128xf32> to vector<8xf32>
    %630 = vector.shape_cast %629 : vector<8xf32> to vector<8x1xf32>
    %631 = vector.broadcast %630 : vector<8x1xf32> to vector<8x128xf32>
    %632 = arith.subf %628, %631 : vector<8x128xf32>
    %633 = math.exp %632 : vector<8x128xf32>
    %cst_257 = arith.constant dense<0.000000e+00> : vector<8xf32>
    %634 = vector.multi_reduction <add>, %633, %cst_257 [1] : vector<8x128xf32> to vector<8xf32>
    %635 = vector.shape_cast %634 : vector<8xf32> to vector<8x1xf32>
    %636 = math.log %635 : vector<8x1xf32>
    %637 = arith.addf %636, %630 : vector<8x1xf32>
    %638 = vector.broadcast %637 : vector<8x1xf32> to vector<8x128xf32>
    %639 = arith.subf %628, %638 : vector<8x128xf32>
    %c0_258 = arith.constant 0 : index
    %c0_259 = arith.constant 0 : index
    %640 = vector.load %arg12[%c0_258, %c0_259] : memref<8x128xf32, #tpu.memory_space<vmem>>, vector<8x128xf32>
    tpu.vector_store %arg12[%c0_258, %c0_259], %639 {strides = array<i32>} : memref<8x128xf32, #tpu.memory_space<vmem>>, vector<8x128xf32>,
    return
  }
  func.func @transform_0(%arg0: i32) -> (i32, i32, i32) {
    %c0_i32 = arith.constant 0 : i32
    %c0_i32_0 = arith.constant 0 : i32
    %c0_i32_1 = arith.constant 0 : i32
    return %c0_i32, %arg0, %c0_i32_0 : i32, i32, i32
  }
  func.func @transform_1(%arg0: i32) -> (i32, i32) {
    %c0_i32 = arith.constant 0 : i32
    %c0_i32_0 = arith.constant 0 : i32
    %c0_i32_1 = arith.constant 0 : i32
    return %c0_i32, %c0_i32_0 : i32, i32
  }
  func.func @transform_2(%arg0: i32) -> (i32, i32) {
    %c0_i32 = arith.constant 0 : i32
    %c0_i32_0 = arith.constant 0 : i32
    %c0_i32_1 = arith.constant 0 : i32
    return %c0_i32, %c0_i32_0 : i32, i32
  }
  func.func @transform_3(%arg0: i32) -> (i32, i32) {
    %c0_i32 = arith.constant 0 : i32
    %c0_i32_0 = arith.constant 0 : i32
    %c0_i32_1 = arith.constant 0 : i32
    return %c0_i32, %c0_i32_0 : i32, i32
  }
  func.func @transform_4(%arg0: i32) -> (i32, i32) {
    %c0_i32 = arith.constant 0 : i32
    %c0_i32_0 = arith.constant 0 : i32
    %c0_i32_1 = arith.constant 0 : i32
    return %c0_i32, %c0_i32_0 : i32, i32
  }
  func.func @transform_5(%arg0: i32) -> (i32, i32) {
    %c0_i32 = arith.constant 0 : i32
    %c0_i32_0 = arith.constant 0 : i32
    %c0_i32_1 = arith.constant 0 : i32
    return %c0_i32, %c0_i32_0 : i32, i32
  }
  func.func @transform_6(%arg0: i32) -> (i32, i32) {
    %c0_i32 = arith.constant 0 : i32
    %c0_i32_0 = arith.constant 0 : i32
    %c0_i32_1 = arith.constant 0 : i32
    return %c0_i32, %c0_i32_0 : i32, i32
  }
  func.func @transform_7(%arg0: i32) -> (i32, i32) {
    %c0_i32 = arith.constant 0 : i32
    %c0_i32_0 = arith.constant 0 : i32
    %c0_i32_1 = arith.constant 0 : i32
    return %c0_i32, %c0_i32_0 : i32, i32
  }
  func.func @transform_8(%arg0: i32) -> (i32, i32) {
    %c0_i32 = arith.constant 0 : i32
    %c0_i32_0 = arith.constant 0 : i32
    %c0_i32_1 = arith.constant 0 : i32
    return %c0_i32, %c0_i32_0 : i32, i32
  }
  func.func @transform_9(%arg0: i32) -> (i32, i32) {
    %c0_i32 = arith.constant 0 : i32
    %c0_i32_0 = arith.constant 0 : i32
    %c0_i32_1 = arith.constant 0 : i32
    return %c0_i32, %c0_i32_0 : i32, i32
  }
  func.func @transform_10(%arg0: i32) -> (i32, i32) {
    %c0_i32 = arith.constant 0 : i32
    %c0_i32_0 = arith.constant 0 : i32
    %c0_i32_1 = arith.constant 0 : i32
    return %c0_i32, %c0_i32_0 : i32, i32
  }
  func.func @transform_11(%arg0: i32) -> (i32, i32) {
    %c0_i32 = arith.constant 0 : i32
    %c0_i32_0 = arith.constant 0 : i32
    return %arg0, %c0_i32 : i32, i32
  }
}

</mosaic_0001>

<llo_original>
// kernel: tpu_custom_call.1
$region0: #{tpu_custom_call.1}
  #allocation0 [shape = 'u32[]', space=smem, size = 0x4, offset = 0x4, fixed_abs, tag = 'smem constant byte address 0x4 - core index']
  #allocation1 [shape = 'u32[72,128]{1,0:T(1,128)}', space=vmem, size = 0x9000, scoped, tag = 'internal scratch']
  #allocation2 [shape = 'f32[64,512]{1,0:T(8,128)}', space=vmem, size = 0x20000, scoped, tag = 'scratch operand']
  #allocation3 [shape = 'f32[64,512]{1,0:T(8,128)}', space=vmem, size = 0x20000, scoped, tag = 'scratch operand']
  #allocation4 [shape = 'f32[64,128]{1,0:T(8,128)}', space=vmem, size = 0x8000, scoped, tag = 'scratch operand']
  #allocation5 [shape = 'f32[8,1024]{1,0:T(8,128)}', space=vmem, size = 0x8000, scoped, tag = 'scratch operand']
  %s0 = inlined_call_operand.hbm [shape: bf16[8,8,64], index: 0, kind: input, shape index: {}]
  %s1 = inlined_call_operand.hbm [shape: bf16[64,512], index: 1, kind: input, shape index: {}]
  %s2 = inlined_call_operand.hbm [shape: bf16[128,512], index: 2, kind: input, shape index: {}]
  %s3 = inlined_call_operand.hbm [shape: f32[1,512], index: 3, kind: input, shape index: {}]
  %s4 = inlined_call_operand.hbm [shape: bf16[128,512], index: 4, kind: input, shape index: {}]
  %s5 = inlined_call_operand.hbm [shape: bf16[128,512], index: 5, kind: input, shape index: {}]
  %s6 = inlined_call_operand.vmem [shape: f32[1,512], index: 6, kind: input, shape index: {}]
  %s7 = inlined_call_operand.hbm [shape: bf16[1024,128], index: 7, kind: input, shape index: {}]
  %s8 = inlined_call_operand.vmem [shape: f32[1,128], index: 8, kind: input, shape index: {}]
  %s9 = inlined_call_operand.hbm [shape: bf16[128,128], index: 9, kind: input, shape index: {}]
  %s10 = inlined_call_operand.vmem [shape: f32[1,128], index: 10, kind: input, shape index: {}]
  %s11 = inlined_call_operand.hbm [shape: f32[8,128], index: 11, kind: output, shape index: {}]
  %s12 = sld [smem:[#allocation0]]
  $region86: #{tpu_custom_call.1} parent=0
    _
  %s14 = ssub.s32 1, %s12
  %s15 = scalar_select 0, %s14, %s12
  $region1: #{tpu_custom_call.1} parent=0
    #allocation6 [shape = 'u8[16384]{0}', space=vmem, size = 0x4000, scoped, tag = 'input window, operand 0, single buffered']
    #allocation7 [shape = 's32[1]{0}', space=sflag, size = 0x4, scoped, tag = 'scoped memory for tpu_custom_call.1']
    #allocation8 [shape = 's32[1]{0}', space=sflag, size = 0x4, scoped, tag = 'scoped memory for tpu_custom_call.1']
    #allocation9 [shape = 'u8[65536]{0}', space=vmem, size = 0x10000, scoped, tag = 'input window, operand 1, single buffered']
    #allocation10 [shape = 's32[1]{0}', space=sflag, size = 0x4, scoped, tag = 'scoped memory for tpu_custom_call.1']
    #allocation11 [shape = 'u8[131072]{0}', space=vmem, size = 0x20000, scoped, tag = 'input window, operand 2, single buffered']
    #allocation12 [shape = 'u8[2048]{0}', space=vmem, size = 0x800, scoped, tag = 'input window, operand 3, single buffered']
    #allocation13 [shape = 's32[1]{0}', space=sflag, size = 0x4, scoped, tag = 'scoped memory for tpu_custom_call.1']
    #allocation14 [shape = 'u8[131072]{0}', space=vmem, size = 0x20000, scoped, tag = 'input window, operand 4, single buffered']
    #allocation15 [shape = 'u8[131072]{0}', space=vmem, size = 0x20000, scoped, tag = 'input window, operand 5, single buffered']
    #allocation16 [shape = 's32[1]{0}', space=sflag, size = 0x4, scoped, tag = 'scoped memory for tpu_custom_call.1']
    #allocation17 [shape = 'u8[262144]{0}', space=vmem, size = 0x40000, scoped, tag = 'input window, operand 7, single buffered']
    #allocation18 [shape = 'u8[32768]{0}', space=vmem, size = 0x8000, scoped, tag = 'input window, operand 9, single buffered']
    #allocation19 [shape = 's32[1]{0}', space=sflag, size = 0x4, scoped, tag = 'scoped memory for tpu_custom_call.1']
    #allocation20 [shape = 'u8[4096]{0}', space=vmem, size = 0x1000, scoped, tag = 'output window, operand 0, single buffered']
    %16 = vsyncpa [#allocation7], 0
    %17 = vsyncpa [#allocation10], 0
    %18 = vsyncpa [#allocation13], 0
    %19 = vsyncpa [#allocation16], 0
    %20 = vsyncpa [#allocation19], 0
    %21 = vsyncpa [#allocation8], 0
    // Predicated region
    $region2: #{tpu_custom_call.1} parent=1 // pred_check
      _
    $region3: #{tpu_custom_call.1} parent=1 // pred_check_branch
      %23 = sbr.rel (0) target = $region5
    $region4: #{tpu_custom_call.1} parent=1 // pred_region
      %25 = vsyncadd [#allocation7], 0
      %s26 = sshll.u32 %s0, 4
      %s27 = int_to_ptr.hbm [resolvable:$true] %s26
      %s28 = sshll.u32 [#allocation6], 4
      %s29 = int_to_ptr.vmem [resolvable:$true] %s28
      %34 = dma.hbm_to_vmem [thread:$0]  %s27, 512, %s29, [#allocation7], 64, 64, 4
    $region5: #{tpu_custom_call.1} parent=1 // pred_fallthru
      _
    // Predicated region
    $region6: #{tpu_custom_call.1} parent=1 // pred_check
      _
    $region7: #{tpu_custom_call.1} parent=1 // pred_check_branch
      %36 = sbr.rel (0) target = $region9
    $region8: #{tpu_custom_call.1} parent=1 // pred_region
      %38 = vsyncadd [#allocation10], 0
      %s39 = sshll.u32 %s1, 4
      %s40 = int_to_ptr.hbm [resolvable:$true] %s39
      %s41 = sshll.u32 [#allocation9], 4
      %s42 = int_to_ptr.vmem [resolvable:$true] %s41
      %47 = dma.hbm_to_vmem [thread:$0]  %s40, 2048, %s42, [#allocation10], 256, 256, 16
    $region9: #{tpu_custom_call.1} parent=1 // pred_fallthru
      _
    // Predicated region
    $region10: #{tpu_custom_call.1} parent=1 // pred_check
      _
    $region11: #{tpu_custom_call.1} parent=1 // pred_check_branch
      %49 = sbr.rel (0) target = $region13
    $region12: #{tpu_custom_call.1} parent=1 // pred_region
      %51 = vsyncadd [#allocation10], 0
      %s52 = sshll.u32 %s2, 4
      %s53 = int_to_ptr.hbm [resolvable:$true] %s52
      %s54 = sshll.u32 [#allocation11], 4
      %s55 = int_to_ptr.vmem [resolvable:$true] %s54
      %60 = dma.hbm_to_vmem [thread:$0]  %s53, 4096, %s55, [#allocation10], 256, 256, 16
    $region13: #{tpu_custom_call.1} parent=1 // pred_fallthru
      _
    // Predicated region
    $region14: #{tpu_custom_call.1} parent=1 // pred_check
      _
    $region15: #{tpu_custom_call.1} parent=1 // pred_check_branch
      %62 = sbr.rel (0) target = $region17
    $region16: #{tpu_custom_call.1} parent=1 // pred_region
      %64 = vsyncadd [#allocation13], 0
      %s66 = sshll.u32 %s3, 4
      %s67 = int_to_ptr.hbm [resolvable:$true] %s66
      %s68 = sshll.u32 [#allocation12], 4
      %s69 = int_to_ptr.vmem [resolvable:$true] %s68
      %71 = dma.hbm_to_vmem [thread:$0]  %s67, 64, %s69, [#allocation13]
    $region17: #{tpu_custom_call.1} parent=1 // pred_fallthru
      _
    // Predicated region
    $region18: #{tpu_custom_call.1} parent=1 // pred_check
      _
    $region19: #{tpu_custom_call.1} parent=1 // pred_check_branch
      %73 = sbr.rel (0) target = $region21
    $region20: #{tpu_custom_call.1} parent=1 // pred_region
      %75 = vsyncadd [#allocation13], 0
      %s76 = sshll.u32 %s4, 4
      %s77 = int_to_ptr.hbm [resolvable:$true] %s76
      %s78 = sshll.u32 [#allocation14], 4
      %s79 = int_to_ptr.vmem [resolvable:$true] %s78
      %84 = dma.hbm_to_vmem [thread:$0]  %s77, 4096, %s79, [#allocation13], 256, 256, 16
    $region21: #{tpu_custom_call.1} parent=1 // pred_fallthru
      _
    // Predicated region
    $region22: #{tpu_custom_call.1} parent=1 // pred_check
      _
    $region23: #{tpu_custom_call.1} parent=1 // pred_check_branch
      %86 = sbr.rel (0) target = $region25
    $region24: #{tpu_custom_call.1} parent=1 // pred_region
      %88 = vsyncadd [#allocation16], 0
      %s89 = sshll.u32 %s5, 4
      %s90 = int_to_ptr.hbm [resolvable:$true] %s89
      %s91 = sshll.u32 [#allocation15], 4
      %s92 = int_to_ptr.vmem [resolvable:$true] %s91
      %97 = dma.hbm_to_vmem [thread:$0]  %s90, 4096, %s92, [#allocation16], 256, 256, 16
    $region25: #{tpu_custom_call.1} parent=1 // pred_fallthru
      _
    // Predicated region
    $region26: #{tpu_custom_call.1} parent=1 // pred_check
      _
    $region27: #{tpu_custom_call.1} parent=1 // pred_check_branch
      %99 = sbr.rel (0) target = $region29
    $region28: #{tpu_custom_call.1} parent=1 // pred_region
      _
    $region29: #{tpu_custom_call.1} parent=1 // pred_fallthru
      _
    // Predicated region
    $region30: #{tpu_custom_call.1} parent=1 // pred_check
      _
    $region31: #{tpu_custom_call.1} parent=1 // pred_check_branch
      %101 = sbr.rel (0) target = $region33
    $region32: #{tpu_custom_call.1} parent=1 // pred_region
      %103 = vsyncadd [#allocation16], 0
      %s104 = sshll.u32 %s7, 4
      %s105 = int_to_ptr.hbm [resolvable:$true] %s104
      %s106 = sshll.u32 [#allocation17], 4
      %s107 = int_to_ptr.vmem [resolvable:$true] %s106
      %112 = dma.hbm_to_vmem [thread:$0]  %s105, 8192, %s107, [#allocation16], 64, 64, 4
    $region33: #{tpu_custom_call.1} parent=1 // pred_fallthru
      _
    // Predicated region
    $region34: #{tpu_custom_call.1} parent=1 // pred_check
      _
    $region35: #{tpu_custom_call.1} parent=1 // pred_check_branch
      %114 = sbr.rel (0) target = $region37
    $region36: #{tpu_custom_call.1} parent=1 // pred_region
      _
    $region37: #{tpu_custom_call.1} parent=1 // pred_fallthru
      _
    // Predicated region
    $region38: #{tpu_custom_call.1} parent=1 // pred_check
      _
    $region39: #{tpu_custom_call.1} parent=1 // pred_check_branch
      %116 = sbr.rel (0) target = $region41
    $region40: #{tpu_custom_call.1} parent=1 // pred_region
      %118 = vsyncadd [#allocation19], 0
      %s119 = sshll.u32 %s9, 4
      %s120 = int_to_ptr.hbm [resolvable:$true] %s119
      %s121 = sshll.u32 [#allocation18], 4
      %s122 = int_to_ptr.vmem [resolvable:$true] %s121
      %127 = dma.hbm_to_vmem [thread:$0]  %s120, 1024, %s122, [#allocation19], 64, 64, 4
    $region41: #{tpu_custom_call.1} parent=1 // pred_fallthru
      _
    // Predicated region
    $region42: #{tpu_custom_call.1} parent=1 // pred_check
      _
    $region43: #{tpu_custom_call.1} parent=1 // pred_check_branch
      %129 = sbr.rel (0) target = $region45
    $region44: #{tpu_custom_call.1} parent=1 // pred_region
      _
    $region45: #{tpu_custom_call.1} parent=1 // pred_fallthru
      _
    // Predicated region
    $region46: #{tpu_custom_call.1} parent=1 // pred_check
      _
    $region47: #{tpu_custom_call.1} parent=1 // pred_check_branch
      %131 = sbr.rel (0) target = $region49
    $region48: #{tpu_custom_call.1} parent=1 // pred_region
      %133 = dma.done [#allocation7], 512
    $region49: #{tpu_custom_call.1} parent=1 // pred_fallthru
      _
    // Predicated region
    $region50: #{tpu_custom_call.1} parent=1 // pred_check
      _
    $region51: #{tpu_custom_call.1} parent=1 // pred_check_branch
      %135 = sbr.rel (0) target = $region53
    $region52: #{tpu_custom_call.1} parent=1 // pred_region
      %137 = dma.done [#allocation10], 2048
    $region53: #{tpu_custom_call.1} parent=1 // pred_fallthru
      _
    // Predicated region
    $region54: #{tpu_custom_call.1} parent=1 // pred_check
      _
    $region55: #{tpu_custom_call.1} parent=1 // pred_check_branch
      %139 = sbr.rel (0) target = $region57
    $region56: #{tpu_custom_call.1} parent=1 // pred_region
      %141 = dma.done [#allocation10], 4096
    $region57: #{tpu_custom_call.1} parent=1 // pred_fallthru
      _
    // Predicated region
    $region58: #{tpu_custom_call.1} parent=1 // pred_check
      _
    $region59: #{tpu_custom_call.1} parent=1 // pred_check_branch
      %143 = sbr.rel (0) target = $region61
    $region60: #{tpu_custom_call.1} parent=1 // pred_region
      %145 = dma.done [#allocation13], 64
    $region61: #{tpu_custom_call.1} parent=1 // pred_fallthru
      _
    // Predicated region
    $region62: #{tpu_custom_call.1} parent=1 // pred_check
      _
    $region63: #{tpu_custom_call.1} parent=1 // pred_check_branch
      %147 = sbr.rel (0) target = $region65
    $region64: #{tpu_custom_call.1} parent=1 // pred_region
      %149 = dma.done [#allocation13], 4096
    $region65: #{tpu_custom_call.1} parent=1 // pred_fallthru
      _
    // Predicated region
    $region66: #{tpu_custom_call.1} parent=1 // pred_check
      _
    $region67: #{tpu_custom_call.1} parent=1 // pred_check_branch
      %151 = sbr.rel (0) target = $region69
    $region68: #{tpu_custom_call.1} parent=1 // pred_region
      %153 = dma.done [#allocation16], 4096
    $region69: #{tpu_custom_call.1} parent=1 // pred_fallthru
      _
    // Predicated region
    $region70: #{tpu_custom_call.1} parent=1 // pred_check
      _
    $region71: #{tpu_custom_call.1} parent=1 // pred_check_branch
      %155 = sbr.rel (0) target = $region73
    $region72: #{tpu_custom_call.1} parent=1 // pred_region
      %157 = dma.done [#allocation16], 8192
    $region73: #{tpu_custom_call.1} parent=1 // pred_fallthru
      _
    // Predicated region
    $region74: #{tpu_custom_call.1} parent=1 // pred_check
      _
    $region75: #{tpu_custom_call.1} parent=1 // pred_check_branch
      %159 = sbr.rel (0) target = $region77
    $region76: #{tpu_custom_call.1} parent=1 // pred_region
      %161 = dma.done [#allocation19], 1024
    $region77: #{tpu_custom_call.1} parent=1 // pred_fallthru
      _
    %v163 = vld [vmem:[#allocation6] sm:$0xf]
    %v164 = vld [vmem:[#allocation6 + $0x4] sm:$0xf]
    %v165 = vld [vmem:[#allocation6 + $0x8] sm:$0xf]
    %v166 = vld [vmem:[#allocation6 + $0xc] sm:$0xf]
    %v167 = vld [vmem:[#allocation6 + $0x10] sm:$0xf]
    %v168 = vld [vmem:[#allocation6 + $0x14] sm:$0xf]
    %v169 = vld [vmem:[#allocation6 + $0x18] sm:$0xf]
    %v170 = vld [vmem:[#allocation6 + $0x1c] sm:$0xf]
    %v171 = vunpack.c.l.bf16 %v163
    %v172 = vunpack.c.l.bf16 %v164
    %v173 = vunpack.c.l.bf16 %v165
    %v174 = vunpack.c.l.bf16 %v166
    %v175 = vunpack.c.l.bf16 %v167
    %v176 = vunpack.c.l.bf16 %v168
    %v177 = vunpack.c.l.bf16 %v169
    %v178 = vunpack.c.l.bf16 %v170
    %v179 = vpack.c.bf16 %v172, %v171
    %v180 = vpack.c.bf16 %v174, %v173
    %v181 = vpack.c.bf16 %v176, %v175
    %v182 = vpack.c.bf16 %v178, %v177
    %v183 = vld [vmem:[#allocation9] sm:$0xff]
    %v184 = vld [vmem:[#allocation9 + $0x8] sm:$0xff]
    %v185 = vld [vmem:[#allocation9 + $0x10] sm:$0xff]
    %v186 = vld [vmem:[#allocation9 + $0x18] sm:$0xff]
    %v187 = vld [vmem:[#allocation9 + $0x20] sm:$0xff]
    %v188 = vld [vmem:[#allocation9 + $0x28] sm:$0xff]
    %v189 = vld [vmem:[#allocation9 + $0x30] sm:$0xff]
    %v190 = vld [vmem:[#allocation9 + $0x38] sm:$0xff]
    %v191 = vld [vmem:[#allocation9 + $0x40] sm:$0xff]
    %v192 = vld [vmem:[#allocation9 + $0x48] sm:$0xff]
    %v193 = vld [vmem:[#allocation9 + $0x50] sm:$0xff]
    %v194 = vld [vmem:[#allocation9 + $0x58] sm:$0xff]
    %v195 = vld [vmem:[#allocation9 + $0x60] sm:$0xff]
    %v196 = vld [vmem:[#allocation9 + $0x68] sm:$0xff]
    %v197 = vld [vmem:[#allocation9 + $0x70] sm:$0xff]
    %v198 = vld [vmem:[#allocation9 + $0x78] sm:$0xff]
    %v199 = vld [vmem:[#allocation12] sm:$0xf]
    %v201 = vperm.slane %v199, 0
    %v202 = vperm.slane %v199, 1
    %v203 = vperm.slane %v199, 2
    %v204 = vperm.slane %v199, 3
    %v225 = vunpack.c.l.b16 %v183
    %v226 = vunpack.c.h.b16 %v183
    %v227 = vunpack.c.l.b16 %v184
    %v228 = vunpack.c.h.b16 %v184
    %v229 = vunpack.c.l.b16 %v185
    %v230 = vunpack.c.h.b16 %v185
    %v231 = vunpack.c.l.b16 %v186
    %v232 = vunpack.c.h.b16 %v186
    %v233 = vunpack.c.l.b16 %v187
    %v234 = vunpack.c.h.b16 %v187
    %v235 = vunpack.c.l.b16 %v188
    %v236 = vunpack.c.h.b16 %v188
    %v237 = vunpack.c.l.b16 %v189
    %v238 = vunpack.c.h.b16 %v189
    %v239 = vunpack.c.l.b16 %v190
    %v240 = vunpack.c.h.b16 %v190
    %v241 = vunpack.c.l.b16 %v191
    %v242 = vunpack.c.h.b16 %v191
    %v243 = vunpack.c.l.b16 %v192
    %v244 = vunpack.c.h.b16 %v192
    %v245 = vunpack.c.l.b16 %v193
    %v246 = vunpack.c.h.b16 %v193
    %v247 = vunpack.c.l.b16 %v194
    %v248 = vunpack.c.h.b16 %v194
    %v249 = vunpack.c.l.b16 %v195
    %v250 = vunpack.c.h.b16 %v195
    %v251 = vunpack.c.l.b16 %v196
    %v252 = vunpack.c.h.b16 %v196
    %v253 = vunpack.c.l.b16 %v197
    %v254 = vunpack.c.h.b16 %v197
    %v255 = vunpack.c.l.b16 %v198
    %v256 = vunpack.c.h.b16 %v198
    %v257 = vpack.c.b16 %v229, %v225
    %v258 = vpack.c.b16 %v230, %v226
    %v259 = vpack.c.b16 %v231, %v227
    %v260 = vpack.c.b16 %v232, %v228
    %v261 = vpack.c.b16 %v237, %v233
    %v262 = vpack.c.b16 %v238, %v234
    %v263 = vpack.c.b16 %v239, %v235
    %v264 = vpack.c.b16 %v240, %v236
    %v265 = vpack.c.b16 %v245, %v241
    %v266 = vpack.c.b16 %v246, %v242
    %v267 = vpack.c.b16 %v247, %v243
    %v268 = vpack.c.b16 %v248, %v244
    %v269 = vpack.c.b16 %v253, %v249
    %v270 = vpack.c.b16 %v254, %v250
    %v271 = vpack.c.b16 %v255, %v251
    %v272 = vpack.c.b16 %v256, %v252
    %vm289 = vcmask 523264
    %v291 = vsel %vm289, %v179, 0
    %v294 = vsel %vm289, %v180, 0
    %v297 = vsel %vm289, %v181, 0
    %v300 = vsel %vm289, %v182, 0
    %302 = vmatpush.bf16.msra.mxu0 0
    %303 = vmatpush.bf16.msra.mxu0 0
    %304 = vmatpush.bf16.msra.mxu0 0
    %305 = vmatpush.bf16.msra.mxu0 0
    %306 = vmatpush.bf16.msra.mxu0 %v269
    %307 = vmatpush.bf16.msra.mxu0 %v265
    %308 = vmatpush.bf16.msra.mxu0 %v261
    %309 = vmatpush.bf16.msra.mxu0 %v257
    %310 = vmatmul.bf16.gmra.mxu0 %v291
    %v311 = vpop.f32.mrf.mxu0
    %v312 = vadd.f32 %v201, %v311
    %v313 = vpop.f32.mrf.mxu0
    %v314 = vadd.f32 %v201, %v313
    %315 = vmatmul.bf16.gmra.mxu0 %v294
    %v316 = vpop.f32.mrf.mxu0
    %v317 = vadd.f32 %v201, %v316
    %v318 = vpop.f32.mrf.mxu0
    %v319 = vadd.f32 %v201, %v318
    %320 = vmatmul.bf16.gmra.mxu0 %v297
    %v321 = vpop.f32.mrf.mxu0
    %v322 = vadd.f32 %v201, %v321
    %v323 = vpop.f32.mrf.mxu0
    %v324 = vadd.f32 %v201, %v323
    %325 = vmatmul.bf16.gmra.mxu0 %v300
    %v326 = vpop.f32.mrf.mxu0
    %v327 = vadd.f32 %v201, %v326
    %v328 = vpop.f32.mrf.mxu0
    %v329 = vadd.f32 %v201, %v328
    %330 = vdwg.mxu0
    %331 = vmatpush.bf16.msra.mxu0 0
    %332 = vmatpush.bf16.msra.mxu0 0
    %333 = vmatpush.bf16.msra.mxu0 0
    %334 = vmatpush.bf16.msra.mxu0 0
    %335 = vmatpush.bf16.msra.mxu0 %v270
    %336 = vmatpush.bf16.msra.mxu0 %v266
    %337 = vmatpush.bf16.msra.mxu0 %v262
    %338 = vmatpush.bf16.msra.mxu0 %v258
    %339 = vmatmul.bf16.gmra.mxu0 %v291
    %v340 = vpop.f32.mrf.mxu0
    %v341 = vadd.f32 %v202, %v340
    %v342 = vpop.f32.mrf.mxu0
    %v343 = vadd.f32 %v202, %v342
    %344 = vmatmul.bf16.gmra.mxu0 %v294
    %v345 = vpop.f32.mrf.mxu0
    %v346 = vadd.f32 %v202, %v345
    %v347 = vpop.f32.mrf.mxu0
    %v348 = vadd.f32 %v202, %v347
    %349 = vmatmul.bf16.gmra.mxu0 %v297
    %v350 = vpop.f32.mrf.mxu0
    %v351 = vadd.f32 %v202, %v350
    %v352 = vpop.f32.mrf.mxu0
    %v353 = vadd.f32 %v202, %v352
    %354 = vmatmul.bf16.gmra.mxu0 %v300
    %v355 = vpop.f32.mrf.mxu0
    %v356 = vadd.f32 %v202, %v355
    %v357 = vpop.f32.mrf.mxu0
    %v358 = vadd.f32 %v202, %v357
    %359 = vdwg.mxu0
    %360 = vmatpush.bf16.msra.mxu0 0
    %361 = vmatpush.bf16.msra.mxu0 0
    %362 = vmatpush.bf16.msra.mxu0 0
    %363 = vmatpush.bf16.msra.mxu0 0
    %364 = vmatpush.bf16.msra.mxu0 %v271
    %365 = vmatpush.bf16.msra.mxu0 %v267
    %366 = vmatpush.bf16.msra.mxu0 %v263
    %367 = vmatpush.bf16.msra.mxu0 %v259
    %368 = vmatmul.bf16.gmra.mxu0 %v291
    %v369 = vpop.f32.mrf.mxu0
    %v370 = vadd.f32 %v203, %v369
    %v371 = vpop.f32.mrf.mxu0
    %v372 = vadd.f32 %v203, %v371
    %373 = vmatmul.bf16.gmra.mxu0 %v294
    %v374 = vpop.f32.mrf.mxu0
    %v375 = vadd.f32 %v203, %v374
    %v376 = vpop.f32.mrf.mxu0
    %v377 = vadd.f32 %v203, %v376
    %378 = vmatmul.bf16.gmra.mxu0 %v297
    %v379 = vpop.f32.mrf.mxu0
    %v380 = vadd.f32 %v203, %v379
    %v381 = vpop.f32.mrf.mxu0
    %v382 = vadd.f32 %v203, %v381
    %383 = vmatmul.bf16.gmra.mxu0 %v300
    %v384 = vpop.f32.mrf.mxu0
    %v385 = vadd.f32 %v203, %v384
    %v386 = vpop.f32.mrf.mxu0
    %v387 = vadd.f32 %v203, %v386
    %388 = vdwg.mxu0
    %389 = vmatpush.bf16.msra.mxu0 0
    %390 = vmatpush.bf16.msra.mxu0 0
    %391 = vmatpush.bf16.msra.mxu0 0
    %392 = vmatpush.bf16.msra.mxu0 0
    %393 = vmatpush.bf16.msra.mxu0 %v272
    %394 = vmatpush.bf16.msra.mxu0 %v268
    %395 = vmatpush.bf16.msra.mxu0 %v264
    %396 = vmatpush.bf16.msra.mxu0 %v260
    %397 = vmatmul.bf16.gmra.mxu0 %v291
    %v398 = vpop.f32.mrf.mxu0
    %v399 = vadd.f32 %v204, %v398
    %v400 = vpop.f32.mrf.mxu0
    %v401 = vadd.f32 %v204, %v400
    %402 = vmatmul.bf16.gmra.mxu0 %v294
    %v403 = vpop.f32.mrf.mxu0
    %v404 = vadd.f32 %v204, %v403
    %v405 = vpop.f32.mrf.mxu0
    %v406 = vadd.f32 %v204, %v405
    %407 = vmatmul.bf16.gmra.mxu0 %v297
    %v408 = vpop.f32.mrf.mxu0
    %v409 = vadd.f32 %v204, %v408
    %v410 = vpop.f32.mrf.mxu0
    %v411 = vadd.f32 %v204, %v410
    %412 = vmatmul.bf16.gmra.mxu0 %v300
    %v413 = vpop.f32.mrf.mxu0
    %v414 = vadd.f32 %v204, %v413
    %v415 = vpop.f32.mrf.mxu0
    %v416 = vadd.f32 %v204, %v415
    %417 = vdwg.mxu0
    %418 = vst [vmem:[#allocation2] sm:$0xff] %v312
    %419 = vst [vmem:[#allocation2 + $0x8] sm:$0xff] %v341
    %420 = vst [vmem:[#allocation2 + $0x10] sm:$0xff] %v370
    %421 = vst [vmem:[#allocation2 + $0x18] sm:$0xff] %v399
    %422 = vst [vmem:[#allocation2 + $0x20] sm:$0xff] %v314
    %423 = vst [vmem:[#allocation2 + $0x28] sm:$0xff] %v343
    %424 = vst [vmem:[#allocation2 + $0x30] sm:$0xff] %v372
    %425 = vst [vmem:[#allocation2 + $0x38] sm:$0xff] %v401
    %426 = vst [vmem:[#allocation2 + $0x40] sm:$0xff] %v317
    %427 = vst [vmem:[#allocation2 + $0x48] sm:$0xff] %v346
    %428 = vst [vmem:[#allocation2 + $0x50] sm:$0xff] %v375
    %429 = vst [vmem:[#allocation2 + $0x58] sm:$0xff] %v404
    %430 = vst [vmem:[#allocation2 + $0x60] sm:$0xff] %v319
    %431 = vst [vmem:[#allocation2 + $0x68] sm:$0xff] %v348
    %432 = vst [vmem:[#allocation2 + $0x70] sm:$0xff] %v377
    %433 = vst [vmem:[#allocation2 + $0x78] sm:$0xff] %v406
    %434 = vst [vmem:[#allocation2 + $0x80] sm:$0xff] %v322
    %435 = vst [vmem:[#allocation2 + $0x88] sm:$0xff] %v351
    %436 = vst [vmem:[#allocation2 + $0x90] sm:$0xff] %v380
    %437 = vst [vmem:[#allocation2 + $0x98] sm:$0xff] %v409
    %438 = vst [vmem:[#allocation2 + $0xa0] sm:$0xff] %v324
    %439 = vst [vmem:[#allocation2 + $0xa8] sm:$0xff] %v353
    %440 = vst [vmem:[#allocation2 + $0xb0] sm:$0xff] %v382
    %441 = vst [vmem:[#allocation2 + $0xb8] sm:$0xff] %v411
    %442 = vst [vmem:[#allocation2 + $0xc0] sm:$0xff] %v327
    %443 = vst [vmem:[#allocation2 + $0xc8] sm:$0xff] %v356
    %444 = vst [vmem:[#allocation2 + $0xd0] sm:$0xff] %v385
    %445 = vst [vmem:[#allocation2 + $0xd8] sm:$0xff] %v414
    %446 = vst [vmem:[#allocation2 + $0xe0] sm:$0xff] %v329
    %447 = vst [vmem:[#allocation2 + $0xe8] sm:$0xff] %v358
    %448 = vst [vmem:[#allocation2 + $0xf0] sm:$0xff] %v387
    %449 = vst [vmem:[#allocation2 + $0xf8] sm:$0xff] %v416
    %v450 = vld [vmem:[#allocation11] sm:$0xff]
    %v451 = vld [vmem:[#allocation11 + $0x8] sm:$0xff]
    %v452 = vld [vmem:[#allocation11 + $0x10] sm:$0xff]
    %v453 = vld [vmem:[#allocation11 + $0x18] sm:$0xff]
    %v454 = vld [vmem:[#allocation11 + $0x20] sm:$0xff]
    %v455 = vld [vmem:[#allocation11 + $0x28] sm:$0xff]
    %v456 = vld [vmem:[#allocation11 + $0x30] sm:$0xff]
    %v457 = vld [vmem:[#allocation11 + $0x38] sm:$0xff]
    %v458 = vld [vmem:[#allocation11 + $0x40] sm:$0xff]
    %v459 = vld [vmem:[#allocation11 + $0x48] sm:$0xff]
    %v460 = vld [vmem:[#allocation11 + $0x50] sm:$0xff]
    %v461 = vld [vmem:[#allocation11 + $0x58] sm:$0xff]
    %v462 = vld [vmem:[#allocation11 + $0x60] sm:$0xff]
    %v463 = vld [vmem:[#allocation11 + $0x68] sm:$0xff]
    %v464 = vld [vmem:[#allocation11 + $0x70] sm:$0xff]
    %v465 = vld [vmem:[#allocation11 + $0x78] sm:$0xff]
    %v466 = vld [vmem:[#allocation11 + $0x80] sm:$0xff]
    %v467 = vld [vmem:[#allocation11 + $0x88] sm:$0xff]
    %v468 = vld [vmem:[#allocation11 + $0x90] sm:$0xff]
    %v469 = vld [vmem:[#allocation11 + $0x98] sm:$0xff]
    %v470 = vld [vmem:[#allocation11 + $0xa0] sm:$0xff]
    %v471 = vld [vmem:[#allocation11 + $0xa8] sm:$0xff]
    %v472 = vld [vmem:[#allocation11 + $0xb0] sm:$0xff]
    %v473 = vld [vmem:[#allocation11 + $0xb8] sm:$0xff]
    %v474 = vld [vmem:[#allocation11 + $0xc0] sm:$0xff]
    %v475 = vld [vmem:[#allocation11 + $0xc8] sm:$0xff]
    %v476 = vld [vmem:[#allocation11 + $0xd0] sm:$0xff]
    %v477 = vld [vmem:[#allocation11 + $0xd8] sm:$0xff]
    %v478 = vld [vmem:[#allocation11 + $0xe0] sm:$0xff]
    %v479 = vld [vmem:[#allocation11 + $0xe8] sm:$0xff]
    %v480 = vld [vmem:[#allocation11 + $0xf0] sm:$0xff]
    %v481 = vld [vmem:[#allocation11 + $0xf8] sm:$0xff]
    %v482 = vld [vmem:[#allocation15] sm:$0xff]
    %v483 = vld [vmem:[#allocation15 + $0x8] sm:$0xff]
    %v484 = vld [vmem:[#allocation15 + $0x10] sm:$0xff]
    %v485 = vld [vmem:[#allocation15 + $0x18] sm:$0xff]
    %v486 = vld [vmem:[#allocation15 + $0x20] sm:$0xff]
    %v487 = vld [vmem:[#allocation15 + $0x28] sm:$0xff]
    %v488 = vld [vmem:[#allocation15 + $0x30] sm:$0xff]
    %v489 = vld [vmem:[#allocation15 + $0x38] sm:$0xff]
    %v490 = vld [vmem:[#allocation15 + $0x40] sm:$0xff]
    %v491 = vld [vmem:[#allocation15 + $0x48] sm:$0xff]
    %v492 = vld [vmem:[#allocation15 + $0x50] sm:$0xff]
    %v493 = vld [vmem:[#allocation15 + $0x58] sm:$0xff]
    %v494 = vld [vmem:[#allocation15 + $0x60] sm:$0xff]
    %v495 = vld [vmem:[#allocation15 + $0x68] sm:$0xff]
    %v496 = vld [vmem:[#allocation15 + $0x70] sm:$0xff]
    %v497 = vld [vmem:[#allocation15 + $0x78] sm:$0xff]
    %v498 = vld [vmem:[#allocation15 + $0x80] sm:$0xff]
    %v499 = vld [vmem:[#allocation15 + $0x88] sm:$0xff]
    %v500 = vld [vmem:[#allocation15 + $0x90] sm:$0xff]
    %v501 = vld [vmem:[#allocation15 + $0x98] sm:$0xff]
    %v502 = vld [vmem:[#allocation15 + $0xa0] sm:$0xff]
    %v503 = vld [vmem:[#allocation15 + $0xa8] sm:$0xff]
    %v504 = vld [vmem:[#allocation15 + $0xb0] sm:$0xff]
    %v505 = vld [vmem:[#allocation15 + $0xb8] sm:$0xff]
    %v506 = vld [vmem:[#allocation15 + $0xc0] sm:$0xff]
    %v507 = vld [vmem:[#allocation15 + $0xc8] sm:$0xff]
    %v508 = vld [vmem:[#allocation15 + $0xd0] sm:$0xff]
    %v509 = vld [vmem:[#allocation15 + $0xd8] sm:$0xff]
    %v510 = vld [vmem:[#allocation15 + $0xe0] sm:$0xff]
    %v511 = vld [vmem:[#allocation15 + $0xe8] sm:$0xff]
    %v512 = vld [vmem:[#allocation15 + $0xf0] sm:$0xff]
    %v513 = vld [vmem:[#allocation15 + $0xf8] sm:$0xff]
    %v514 = vld [vmem:[#allocation2] sm:$0xff]
    %v515 = vld [vmem:[#allocation2 + $0x8] sm:$0xff]
    %v516 = vld [vmem:[#allocation2 + $0x10] sm:$0xff]
    %v517 = vld [vmem:[#allocation2 + $0x18] sm:$0xff]
    %v550 = vunpack.c.l.b16 %v450
    %v551 = vunpack.c.h.b16 %v450
    %v552 = vunpack.c.l.b16 %v451
    %v553 = vunpack.c.h.b16 %v451
    %v554 = vunpack.c.l.b16 %v452
    %v555 = vunpack.c.h.b16 %v452
    %v556 = vunpack.c.l.b16 %v453
    %v557 = vunpack.c.h.b16 %v453
    %v558 = vunpack.c.l.b16 %v454
    %v559 = vunpack.c.h.b16 %v454
    %v560 = vunpack.c.l.b16 %v455
    %v561 = vunpack.c.h.b16 %v455
    %v562 = vunpack.c.l.b16 %v456
    %v563 = vunpack.c.h.b16 %v456
    %v564 = vunpack.c.l.b16 %v457
    %v565 = vunpack.c.h.b16 %v457
    %v566 = vunpack.c.l.b16 %v458
    %v567 = vunpack.c.h.b16 %v458
    %v568 = vunpack.c.l.b16 %v459
    %v569 = vunpack.c.h.b16 %v459
    %v570 = vunpack.c.l.b16 %v460
    %v571 = vunpack.c.h.b16 %v460
    %v572 = vunpack.c.l.b16 %v461
    %v573 = vunpack.c.h.b16 %v461
    %v574 = vunpack.c.l.b16 %v462
    %v575 = vunpack.c.h.b16 %v462
    %v576 = vunpack.c.l.b16 %v463
    %v577 = vunpack.c.h.b16 %v463
    %v578 = vunpack.c.l.b16 %v464
    %v579 = vunpack.c.h.b16 %v464
    %v580 = vunpack.c.l.b16 %v465
    %v581 = vunpack.c.h.b16 %v465
    %v582 = vunpack.c.l.b16 %v466
    %v583 = vunpack.c.h.b16 %v466
    %v584 = vunpack.c.l.b16 %v467
    %v585 = vunpack.c.h.b16 %v467
    %v586 = vunpack.c.l.b16 %v468
    %v587 = vunpack.c.h.b16 %v468
    %v588 = vunpack.c.l.b16 %v469
    %v589 = vunpack.c.h.b16 %v469
    %v590 = vunpack.c.l.b16 %v470
    %v591 = vunpack.c.h.b16 %v470
    %v592 = vunpack.c.l.b16 %v471
    %v593 = vunpack.c.h.b16 %v471
    %v594 = vunpack.c.l.b16 %v472
    %v595 = vunpack.c.h.b16 %v472
    %v596 = vunpack.c.l.b16 %v473
    %v597 = vunpack.c.h.b16 %v473
    %v598 = vunpack.c.l.b16 %v474
    %v599 = vunpack.c.h.b16 %v474
    %v600 = vunpack.c.l.b16 %v475
    %v601 = vunpack.c.h.b16 %v475
    %v602 = vunpack.c.l.b16 %v476
    %v603 = vunpack.c.h.b16 %v476
    %v604 = vunpack.c.l.b16 %v477
    %v605 = vunpack.c.h.b16 %v477
    %v606 = vunpack.c.l.b16 %v478
    %v607 = vunpack.c.h.b16 %v478
    %v608 = vunpack.c.l.b16 %v479
    %v609 = vunpack.c.h.b16 %v479
    %v610 = vunpack.c.l.b16 %v480
    %v611 = vunpack.c.h.b16 %v480
    %v612 = vunpack.c.l.b16 %v481
    %v613 = vunpack.c.h.b16 %v481
    %v614 = vpack.c.b16 %v554, %v550
    %v615 = vpack.c.b16 %v555, %v551
    %v616 = vpack.c.b16 %v556, %v552
    %v617 = vpack.c.b16 %v557, %v553
    %v618 = vpack.c.b16 %v562, %v558
    %v619 = vpack.c.b16 %v563, %v559
    %v620 = vpack.c.b16 %v564, %v560
    %v621 = vpack.c.b16 %v565, %v561
    %v622 = vpack.c.b16 %v570, %v566
    %v623 = vpack.c.b16 %v571, %v567
    %v624 = vpack.c.b16 %v572, %v568
    %v625 = vpack.c.b16 %v573, %v569
    %v626 = vpack.c.b16 %v578, %v574
    %v627 = vpack.c.b16 %v579, %v575
    %v628 = vpack.c.b16 %v580, %v576
    %v629 = vpack.c.b16 %v581, %v577
    %v630 = vpack.c.b16 %v586, %v582
    %v631 = vpack.c.b16 %v587, %v583
    %v632 = vpack.c.b16 %v588, %v584
    %v633 = vpack.c.b16 %v589, %v585
    %v634 = vpack.c.b16 %v594, %v590
    %v635 = vpack.c.b16 %v595, %v591
    %v636 = vpack.c.b16 %v596, %v592
    %v637 = vpack.c.b16 %v597, %v593
    %v638 = vpack.c.b16 %v602, %v598
    %v639 = vpack.c.b16 %v603, %v599
    %v640 = vpack.c.b16 %v604, %v600
    %v641 = vpack.c.b16 %v605, %v601
    %v642 = vpack.c.b16 %v610, %v606
    %v643 = vpack.c.b16 %v611, %v607
    %v644 = vpack.c.b16 %v612, %v608
    %v645 = vpack.c.b16 %v613, %v609
    %678 = vmatpush.bf16.msra.mxu0 %v642
    %679 = vmatpush.bf16.msra.mxu0 %v638
    %680 = vmatpush.bf16.msra.mxu0 %v634
    %681 = vmatpush.bf16.msra.mxu0 %v630
    %682 = vmatpush.bf16.msra.mxu0 %v626
    %683 = vmatpush.bf16.msra.mxu0 %v622
    %684 = vmatpush.bf16.msra.mxu0 %v618
    %685 = vmatpush.bf16.msra.mxu0 %v614
    %686 = vmatmul.bf16.gmra.mxu0 0
    %v687 = vpop.f32.mrf.mxu0
    %v688 = vadd.f32 0.0, %v687
    %v689 = vpop.f32.mrf.mxu0
    %690 = vdwg.mxu0
    %691 = vmatpush.bf16.msra.mxu0 %v643
    %692 = vmatpush.bf16.msra.mxu0 %v639
    %693 = vmatpush.bf16.msra.mxu0 %v635
    %694 = vmatpush.bf16.msra.mxu0 %v631
    %695 = vmatpush.bf16.msra.mxu0 %v627
    %696 = vmatpush.bf16.msra.mxu0 %v623
    %697 = vmatpush.bf16.msra.mxu0 %v619
    %698 = vmatpush.bf16.msra.mxu0 %v615
    %699 = vmatmul.bf16.gmra.mxu0 0
    %v700 = vpop.f32.mrf.mxu0
    %v701 = vadd.f32 0.0, %v700
    %v702 = vpop.f32.mrf.mxu0
    %703 = vdwg.mxu0
    %704 = vmatpush.bf16.msra.mxu0 %v644
    %705 = vmatpush.bf16.msra.mxu0 %v640
    %706 = vmatpush.bf16.msra.mxu0 %v636
    %707 = vmatpush.bf16.msra.mxu0 %v632
    %708 = vmatpush.bf16.msra.mxu0 %v628
    %709 = vmatpush.bf16.msra.mxu0 %v624
    %710 = vmatpush.bf16.msra.mxu0 %v620
    %711 = vmatpush.bf16.msra.mxu0 %v616
    %712 = vmatmul.bf16.gmra.mxu0 0
    %v713 = vpop.f32.mrf.mxu0
    %v714 = vadd.f32 0.0, %v713
    %v715 = vpop.f32.mrf.mxu0
    %716 = vdwg.mxu0
    %717 = vmatpush.bf16.msra.mxu0 %v645
    %718 = vmatpush.bf16.msra.mxu0 %v641
    %719 = vmatpush.bf16.msra.mxu0 %v637
    %720 = vmatpush.bf16.msra.mxu0 %v633
    %721 = vmatpush.bf16.msra.mxu0 %v629
    %722 = vmatpush.bf16.msra.mxu0 %v625
    %723 = vmatpush.bf16.msra.mxu0 %v621
    %724 = vmatpush.bf16.msra.mxu0 %v617
    %725 = vmatmul.bf16.gmra.mxu0 0
    %v726 = vpop.f32.mrf.mxu0
    %v727 = vadd.f32 0.0, %v726
    %v728 = vpop.f32.mrf.mxu0
    %729 = vdwg.mxu0
    %v730 = vadd.f32 %v514, %v688
    %v731 = vadd.f32 %v515, %v701
    %v732 = vadd.f32 %v516, %v714
    %v733 = vadd.f32 %v517, %v727
    %v734 = vmul.f32 %v730, 0.5
    %v735 = vtanh.pop %v734
    %v736 = vmul.f32 %v735, 0.5
    %v737 = vadd.f32 %v736, 0.5
    %v738 = vmul.f32 %v731, 0.5
    %v739 = vtanh.pop %v738
    %v740 = vmul.f32 %v739, 0.5
    %v741 = vadd.f32 %v740, 0.5
    %v742 = vtanh.pop %v732
    %v743 = vmul.f32 %v733, 0.5
    %v744 = vtanh.pop %v743
    %v745 = vmul.f32 %v744, 0.5
    %v746 = vadd.f32 %v745, 0.5
    %v747 = vmul.f32 %v741, 0.0
    %v748 = vmul.f32 %v737, %v742
    %v749 = vadd.f32 %v747, %v748
    %v750 = vtanh.pop %v749
    %v751 = vmul.f32 %v746, %v750
    %v752 = vpack.c.bf16 %v751, %v751
    %753 = vst [vmem:[#allocation4] sm:$0xff] %v751
    %v754 = vld [vmem:[#allocation2 + $0x20] sm:$0xff]
    %v755 = vld [vmem:[#allocation2 + $0x28] sm:$0xff]
    %v756 = vld [vmem:[#allocation2 + $0x30] sm:$0xff]
    %v757 = vld [vmem:[#allocation2 + $0x38] sm:$0xff]
    %758 = vmatpush.bf16.msra.mxu0 %v642
    %759 = vmatpush.bf16.msra.mxu0 %v638
    %760 = vmatpush.bf16.msra.mxu0 %v634
    %761 = vmatpush.bf16.msra.mxu0 %v630
    %762 = vmatpush.bf16.msra.mxu0 %v626
    %763 = vmatpush.bf16.msra.mxu0 %v622
    %764 = vmatpush.bf16.msra.mxu0 %v618
    %765 = vmatpush.bf16.msra.mxu0 %v614
    %766 = vmatmul.bf16.gmra.mxu0 %v752
    %v767 = vpop.f32.mrf.mxu0
    %v768 = vadd.f32 0.0, %v767
    %v769 = vpop.f32.mrf.mxu0
    %770 = vdwg.mxu0
    %771 = vmatpush.bf16.msra.mxu0 %v643
    %772 = vmatpush.bf16.msra.mxu0 %v639
    %773 = vmatpush.bf16.msra.mxu0 %v635
    %774 = vmatpush.bf16.msra.mxu0 %v631
    %775 = vmatpush.bf16.msra.mxu0 %v627
    %776 = vmatpush.bf16.msra.mxu0 %v623
    %777 = vmatpush.bf16.msra.mxu0 %v619
    %778 = vmatpush.bf16.msra.mxu0 %v615
    %779 = vmatmul.bf16.gmra.mxu0 %v752
    %v780 = vpop.f32.mrf.mxu0
    %v781 = vadd.f32 0.0, %v780
    %v782 = vpop.f32.mrf.mxu0
    %783 = vdwg.mxu0
    %784 = vmatpush.bf16.msra.mxu0 %v644
    %785 = vmatpush.bf16.msra.mxu0 %v640
    %786 = vmatpush.bf16.msra.mxu0 %v636
    %787 = vmatpush.bf16.msra.mxu0 %v632
    %788 = vmatpush.bf16.msra.mxu0 %v628
    %789 = vmatpush.bf16.msra.mxu0 %v624
    %790 = vmatpush.bf16.msra.mxu0 %v620
    %791 = vmatpush.bf16.msra.mxu0 %v616
    %792 = vmatmul.bf16.gmra.mxu0 %v752
    %v793 = vpop.f32.mrf.mxu0
    %v794 = vadd.f32 0.0, %v793
    %v795 = vpop.f32.mrf.mxu0
    %796 = vdwg.mxu0
    %797 = vmatpush.bf16.msra.mxu0 %v645
    %798 = vmatpush.bf16.msra.mxu0 %v641
    %799 = vmatpush.bf16.msra.mxu0 %v637
    %800 = vmatpush.bf16.msra.mxu0 %v633
    %801 = vmatpush.bf16.msra.mxu0 %v629
    %802 = vmatpush.bf16.msra.mxu0 %v625
    %803 = vmatpush.bf16.msra.mxu0 %v621
    %804 = vmatpush.bf16.msra.mxu0 %v617
    %805 = vmatmul.bf16.gmra.mxu0 %v752
    %v806 = vpop.f32.mrf.mxu0
    %v807 = vadd.f32 0.0, %v806
    %v808 = vpop.f32.mrf.mxu0
    %809 = vdwg.mxu0
    %v810 = vadd.f32 %v754, %v768
    %v811 = vadd.f32 %v755, %v781
    %v812 = vadd.f32 %v756, %v794
    %v813 = vadd.f32 %v757, %v807
    %v814 = vmul.f32 %v810, 0.5
    %v815 = vtanh.pop %v814
    %v816 = vmul.f32 %v815, 0.5
    %v817 = vadd.f32 %v816, 0.5
    %v818 = vmul.f32 %v811, 0.5
    %v819 = vtanh.pop %v818
    %v820 = vmul.f32 %v819, 0.5
    %v821 = vadd.f32 %v820, 0.5
    %v822 = vtanh.pop %v812
    %v823 = vmul.f32 %v813, 0.5
    %v824 = vtanh.pop %v823
    %v825 = vmul.f32 %v824, 0.5
    %v826 = vadd.f32 %v825, 0.5
    %v827 = vmul.f32 %v821, %v749
    %v828 = vmul.f32 %v817, %v822
    %v829 = vadd.f32 %v827, %v828
    %v830 = vtanh.pop %v829
    %v831 = vmul.f32 %v826, %v830
    %v832 = vpack.c.bf16 %v831, %v831
    %833 = vst [vmem:[#allocation4 + $0x8] sm:$0xff] %v831
    %v834 = vld [vmem:[#allocation2 + $0x40] sm:$0xff]
    %v835 = vld [vmem:[#allocation2 + $0x48] sm:$0xff]
    %v836 = vld [vmem:[#allocation2 + $0x50] sm:$0xff]
    %v837 = vld [vmem:[#allocation2 + $0x58] sm:$0xff]
    %838 = vmatpush.bf16.msra.mxu0 %v642
    %839 = vmatpush.bf16.msra.mxu0 %v638
    %840 = vmatpush.bf16.msra.mxu0 %v634
    %841 = vmatpush.bf16.msra.mxu0 %v630
    %842 = vmatpush.bf16.msra.mxu0 %v626
    %843 = vmatpush.bf16.msra.mxu0 %v622
    %844 = vmatpush.bf16.msra.mxu0 %v618
    %845 = vmatpush.bf16.msra.mxu0 %v614
    %846 = vmatmul.bf16.gmra.mxu0 %v832
    %v847 = vpop.f32.mrf.mxu0
    %v848 = vadd.f32 0.0, %v847
    %v849 = vpop.f32.mrf.mxu0
    %850 = vdwg.mxu0
    %851 = vmatpush.bf16.msra.mxu0 %v643
    %852 = vmatpush.bf16.msra.mxu0 %v639
    %853 = vmatpush.bf16.msra.mxu0 %v635
    %854 = vmatpush.bf16.msra.mxu0 %v631
    %855 = vmatpush.bf16.msra.mxu0 %v627
    %856 = vmatpush.bf16.msra.mxu0 %v623
    %857 = vmatpush.bf16.msra.mxu0 %v619
    %858 = vmatpush.bf16.msra.mxu0 %v615
    %859 = vmatmul.bf16.gmra.mxu0 %v832
    %v860 = vpop.f32.mrf.mxu0
    %v861 = vadd.f32 0.0, %v860
    %v862 = vpop.f32.mrf.mxu0
    %863 = vdwg.mxu0
    %864 = vmatpush.bf16.msra.mxu0 %v644
    %865 = vmatpush.bf16.msra.mxu0 %v640
    %866 = vmatpush.bf16.msra.mxu0 %v636
    %867 = vmatpush.bf16.msra.mxu0 %v632
    %868 = vmatpush.bf16.msra.mxu0 %v628
    %869 = vmatpush.bf16.msra.mxu0 %v624
    %870 = vmatpush.bf16.msra.mxu0 %v620
    %871 = vmatpush.bf16.msra.mxu0 %v616
    %872 = vmatmul.bf16.gmra.mxu0 %v832
    %v873 = vpop.f32.mrf.mxu0
    %v874 = vadd.f32 0.0, %v873
    %v875 = vpop.f32.mrf.mxu0
    %876 = vdwg.mxu0
    %877 = vmatpush.bf16.msra.mxu0 %v645
    %878 = vmatpush.bf16.msra.mxu0 %v641
    %879 = vmatpush.bf16.msra.mxu0 %v637
    %880 = vmatpush.bf16.msra.mxu0 %v633
    %881 = vmatpush.bf16.msra.mxu0 %v629
    %882 = vmatpush.bf16.msra.mxu0 %v625
    %883 = vmatpush.bf16.msra.mxu0 %v621
    %884 = vmatpush.bf16.msra.mxu0 %v617
    %885 = vmatmul.bf16.gmra.mxu0 %v832
    %v886 = vpop.f32.mrf.mxu0
    %v887 = vadd.f32 0.0, %v886
    %v888 = vpop.f32.mrf.mxu0
    %889 = vdwg.mxu0
    %v890 = vadd.f32 %v834, %v848
    %v891 = vadd.f32 %v835, %v861
    %v892 = vadd.f32 %v836, %v874
    %v893 = vadd.f32 %v837, %v887
    %v894 = vmul.f32 %v890, 0.5
    %v895 = vtanh.pop %v894
    %v896 = vmul.f32 %v895, 0.5
    %v897 = vadd.f32 %v896, 0.5
    %v898 = vmul.f32 %v891, 0.5
    %v899 = vtanh.pop %v898
    %v900 = vmul.f32 %v899, 0.5
    %v901 = vadd.f32 %v900, 0.5
    %v902 = vtanh.pop %v892
    %v903 = vmul.f32 %v893, 0.5
    %v904 = vtanh.pop %v903
    %v905 = vmul.f32 %v904, 0.5
    %v906 = vadd.f32 %v905, 0.5
    %v907 = vmul.f32 %v901, %v829
    %v908 = vmul.f32 %v897, %v902
    %v909 = vadd.f32 %v907, %v908
    %v910 = vtanh.pop %v909
    %v911 = vmul.f32 %v906, %v910
    %v912 = vpack.c.bf16 %v911, %v911
    %913 = vst [vmem:[#allocation4 + $0x10] sm:$0xff] %v911
    %v914 = vld [vmem:[#allocation2 + $0x60] sm:$0xff]
    %v915 = vld [vmem:[#allocation2 + $0x68] sm:$0xff]
    %v916 = vld [vmem:[#allocation2 + $0x70] sm:$0xff]
    %v917 = vld [vmem:[#allocation2 + $0x78] sm:$0xff]
    %918 = vmatpush.bf16.msra.mxu0 %v642
    %919 = vmatpush.bf16.msra.mxu0 %v638
    %920 = vmatpush.bf16.msra.mxu0 %v634
    %921 = vmatpush.bf16.msra.mxu0 %v630
    %922 = vmatpush.bf16.msra.mxu0 %v626
    %923 = vmatpush.bf16.msra.mxu0 %v622
    %924 = vmatpush.bf16.msra.mxu0 %v618
    %925 = vmatpush.bf16.msra.mxu0 %v614
    %926 = vmatmul.bf16.gmra.mxu0 %v912
    %v927 = vpop.f32.mrf.mxu0
    %v928 = vadd.f32 0.0, %v927
    %v929 = vpop.f32.mrf.mxu0
    %930 = vdwg.mxu0
    %931 = vmatpush.bf16.msra.mxu0 %v643
    %932 = vmatpush.bf16.msra.mxu0 %v639
    %933 = vmatpush.bf16.msra.mxu0 %v635
    %934 = vmatpush.bf16.msra.mxu0 %v631
    %935 = vmatpush.bf16.msra.mxu0 %v627
    %936 = vmatpush.bf16.msra.mxu0 %v623
    %937 = vmatpush.bf16.msra.mxu0 %v619
    %938 = vmatpush.bf16.msra.mxu0 %v615
    %939 = vmatmul.bf16.gmra.mxu0 %v912
    %v940 = vpop.f32.mrf.mxu0
    %v941 = vadd.f32 0.0, %v940
    %v942 = vpop.f32.mrf.mxu0
    %943 = vdwg.mxu0
    %944 = vmatpush.bf16.msra.mxu0 %v644
    %945 = vmatpush.bf16.msra.mxu0 %v640
    %946 = vmatpush.bf16.msra.mxu0 %v636
    %947 = vmatpush.bf16.msra.mxu0 %v632
    %948 = vmatpush.bf16.msra.mxu0 %v628
    %949 = vmatpush.bf16.msra.mxu0 %v624
    %950 = vmatpush.bf16.msra.mxu0 %v620
    %951 = vmatpush.bf16.msra.mxu0 %v616
    %952 = vmatmul.bf16.gmra.mxu0 %v912
    %v953 = vpop.f32.mrf.mxu0
    %v954 = vadd.f32 0.0, %v953
    %v955 = vpop.f32.mrf.mxu0
    %956 = vdwg.mxu0
    %957 = vmatpush.bf16.msra.mxu0 %v645
    %958 = vmatpush.bf16.msra.mxu0 %v641
    %959 = vmatpush.bf16.msra.mxu0 %v637
    %960 = vmatpush.bf16.msra.mxu0 %v633
    %961 = vmatpush.bf16.msra.mxu0 %v629
    %962 = vmatpush.bf16.msra.mxu0 %v625
    %963 = vmatpush.bf16.msra.mxu0 %v621
    %964 = vmatpush.bf16.msra.mxu0 %v617
    %965 = vmatmul.bf16.gmra.mxu0 %v912
    %v966 = vpop.f32.mrf.mxu0
    %v967 = vadd.f32 0.0, %v966
    %v968 = vpop.f32.mrf.mxu0
    %969 = vdwg.mxu0
    %v970 = vadd.f32 %v914, %v928
    %v971 = vadd.f32 %v915, %v941
    %v972 = vadd.f32 %v916, %v954
    %v973 = vadd.f32 %v917, %v967
    %v974 = vmul.f32 %v970, 0.5
    %v975 = vtanh.pop %v974
    %v976 = vmul.f32 %v975, 0.5
    %v977 = vadd.f32 %v976, 0.5
    %v978 = vmul.f32 %v971, 0.5
    %v979 = vtanh.pop %v978
    %v980 = vmul.f32 %v979, 0.5
    %v981 = vadd.f32 %v980, 0.5
    %v982 = vtanh.pop %v972
    %v983 = vmul.f32 %v973, 0.5
    %v984 = vtanh.pop %v983
    %v985 = vmul.f32 %v984, 0.5
    %v986 = vadd.f32 %v985, 0.5
    %v987 = vmul.f32 %v981, %v909
    %v988 = vmul.f32 %v977, %v982
    %v989 = vadd.f32 %v987, %v988
    %v990 = vtanh.pop %v989
    %v991 = vmul.f32 %v986, %v990
    %v992 = vpack.c.bf16 %v991, %v991
    %993 = vst [vmem:[#allocation4 + $0x18] sm:$0xff] %v991
    %v994 = vld [vmem:[#allocation2 + $0x80] sm:$0xff]
    %v995 = vld [vmem:[#allocation2 + $0x88] sm:$0xff]
    %v996 = vld [vmem:[#allocation2 + $0x90] sm:$0xff]
    %v997 = vld [vmem:[#allocation2 + $0x98] sm:$0xff]
    %998 = vmatpush.bf16.msra.mxu0 %v642
    %999 = vmatpush.bf16.msra.mxu0 %v638
    %1000 = vmatpush.bf16.msra.mxu0 %v634
    %1001 = vmatpush.bf16.msra.mxu0 %v630
    %1002 = vmatpush.bf16.msra.mxu0 %v626
    %1003 = vmatpush.bf16.msra.mxu0 %v622
    %1004 = vmatpush.bf16.msra.mxu0 %v618
    %1005 = vmatpush.bf16.msra.mxu0 %v614
    %1006 = vmatmul.bf16.gmra.mxu0 %v992
    %v1007 = vpop.f32.mrf.mxu0
    %v1008 = vadd.f32 0.0, %v1007
    %v1009 = vpop.f32.mrf.mxu0
    %1010 = vdwg.mxu0
    %1011 = vmatpush.bf16.msra.mxu0 %v643
    %1012 = vmatpush.bf16.msra.mxu0 %v639
    %1013 = vmatpush.bf16.msra.mxu0 %v635
    %1014 = vmatpush.bf16.msra.mxu0 %v631
    %1015 = vmatpush.bf16.msra.mxu0 %v627
    %1016 = vmatpush.bf16.msra.mxu0 %v623
    %1017 = vmatpush.bf16.msra.mxu0 %v619
    %1018 = vmatpush.bf16.msra.mxu0 %v615
    %1019 = vmatmul.bf16.gmra.mxu0 %v992
    %v1020 = vpop.f32.mrf.mxu0
    %v1021 = vadd.f32 0.0, %v1020
    %v1022 = vpop.f32.mrf.mxu0
    %1023 = vdwg.mxu0
    %1024 = vmatpush.bf16.msra.mxu0 %v644
    %1025 = vmatpush.bf16.msra.mxu0 %v640
    %1026 = vmatpush.bf16.msra.mxu0 %v636
    %1027 = vmatpush.bf16.msra.mxu0 %v632
    %1028 = vmatpush.bf16.msra.mxu0 %v628
    %1029 = vmatpush.bf16.msra.mxu0 %v624
    %1030 = vmatpush.bf16.msra.mxu0 %v620
    %1031 = vmatpush.bf16.msra.mxu0 %v616
    %1032 = vmatmul.bf16.gmra.mxu0 %v992
    %v1033 = vpop.f32.mrf.mxu0
    %v1034 = vadd.f32 0.0, %v1033
    %v1035 = vpop.f32.mrf.mxu0
    %1036 = vdwg.mxu0
    %1037 = vmatpush.bf16.msra.mxu0 %v645
    %1038 = vmatpush.bf16.msra.mxu0 %v641
    %1039 = vmatpush.bf16.msra.mxu0 %v637
    %1040 = vmatpush.bf16.msra.mxu0 %v633
    %1041 = vmatpush.bf16.msra.mxu0 %v629
    %1042 = vmatpush.bf16.msra.mxu0 %v625
    %1043 = vmatpush.bf16.msra.mxu0 %v621
    %1044 = vmatpush.bf16.msra.mxu0 %v617
    %1045 = vmatmul.bf16.gmra.mxu0 %v992
    %v1046 = vpop.f32.mrf.mxu0
    %v1047 = vadd.f32 0.0, %v1046
    %v1048 = vpop.f32.mrf.mxu0
    %1049 = vdwg.mxu0
    %v1050 = vadd.f32 %v994, %v1008
    %v1051 = vadd.f32 %v995, %v1021
    %v1052 = vadd.f32 %v996, %v1034
    %v1053 = vadd.f32 %v997, %v1047
    %v1054 = vmul.f32 %v1050, 0.5
    %v1055 = vtanh.pop %v1054
    %v1056 = vmul.f32 %v1055, 0.5
    %v1057 = vadd.f32 %v1056, 0.5
    %v1058 = vmul.f32 %v1051, 0.5
    %v1059 = vtanh.pop %v1058
    %v1060 = vmul.f32 %v1059, 0.5
    %v1061 = vadd.f32 %v1060, 0.5
    %v1062 = vtanh.pop %v1052
    %v1063 = vmul.f32 %v1053, 0.5
    %v1064 = vtanh.pop %v1063
    %v1065 = vmul.f32 %v1064, 0.5
    %v1066 = vadd.f32 %v1065, 0.5
    %v1067 = vmul.f32 %v1061, %v989
    %v1068 = vmul.f32 %v1057, %v1062
    %v1069 = vadd.f32 %v1067, %v1068
    %v1070 = vtanh.pop %v1069
    %v1071 = vmul.f32 %v1066, %v1070
    %v1072 = vpack.c.bf16 %v1071, %v1071
    %1073 = vst [vmem:[#allocation4 + $0x20] sm:$0xff] %v1071
    %v1074 = vld [vmem:[#allocation2 + $0xa0] sm:$0xff]
    %v1075 = vld [vmem:[#allocation2 + $0xa8] sm:$0xff]
    %v1076 = vld [vmem:[#allocation2 + $0xb0] sm:$0xff]
    %v1077 = vld [vmem:[#allocation2 + $0xb8] sm:$0xff]
    %1078 = vmatpush.bf16.msra.mxu0 %v642
    %1079 = vmatpush.bf16.msra.mxu0 %v638
    %1080 = vmatpush.bf16.msra.mxu0 %v634
    %1081 = vmatpush.bf16.msra.mxu0 %v630
    %1082 = vmatpush.bf16.msra.mxu0 %v626
    %1083 = vmatpush.bf16.msra.mxu0 %v622
    %1084 = vmatpush.bf16.msra.mxu0 %v618
    %1085 = vmatpush.bf16.msra.mxu0 %v614
    %1086 = vmatmul.bf16.gmra.mxu0 %v1072
    %v1087 = vpop.f32.mrf.mxu0
    %v1088 = vadd.f32 0.0, %v1087
    %v1089 = vpop.f32.mrf.mxu0
    %1090 = vdwg.mxu0
    %1091 = vmatpush.bf16.msra.mxu0 %v643
    %1092 = vmatpush.bf16.msra.mxu0 %v639
    %1093 = vmatpush.bf16.msra.mxu0 %v635
    %1094 = vmatpush.bf16.msra.mxu0 %v631
    %1095 = vmatpush.bf16.msra.mxu0 %v627
    %1096 = vmatpush.bf16.msra.mxu0 %v623
    %1097 = vmatpush.bf16.msra.mxu0 %v619
    %1098 = vmatpush.bf16.msra.mxu0 %v615
    %1099 = vmatmul.bf16.gmra.mxu0 %v1072
    %v1100 = vpop.f32.mrf.mxu0
    %v1101 = vadd.f32 0.0, %v1100
    %v1102 = vpop.f32.mrf.mxu0
    %1103 = vdwg.mxu0
    %1104 = vmatpush.bf16.msra.mxu0 %v644
    %1105 = vmatpush.bf16.msra.mxu0 %v640
    %1106 = vmatpush.bf16.msra.mxu0 %v636
    %1107 = vmatpush.bf16.msra.mxu0 %v632
    %1108 = vmatpush.bf16.msra.mxu0 %v628
    %1109 = vmatpush.bf16.msra.mxu0 %v624
    %1110 = vmatpush.bf16.msra.mxu0 %v620
    %1111 = vmatpush.bf16.msra.mxu0 %v616
    %1112 = vmatmul.bf16.gmra.mxu0 %v1072
    %v1113 = vpop.f32.mrf.mxu0
    %v1114 = vadd.f32 0.0, %v1113
    %v1115 = vpop.f32.mrf.mxu0
    %1116 = vdwg.mxu0
    %1117 = vmatpush.bf16.msra.mxu0 %v645
    %1118 = vmatpush.bf16.msra.mxu0 %v641
    %1119 = vmatpush.bf16.msra.mxu0 %v637
    %1120 = vmatpush.bf16.msra.mxu0 %v633
    %1121 = vmatpush.bf16.msra.mxu0 %v629
    %1122 = vmatpush.bf16.msra.mxu0 %v625
    %1123 = vmatpush.bf16.msra.mxu0 %v621
    %1124 = vmatpush.bf16.msra.mxu0 %v617
    %1125 = vmatmul.bf16.gmra.mxu0 %v1072
    %v1126 = vpop.f32.mrf.mxu0
    %v1127 = vadd.f32 0.0, %v1126
    %v1128 = vpop.f32.mrf.mxu0
    %1129 = vdwg.mxu0
    %v1130 = vadd.f32 %v1074, %v1088
    %v1131 = vadd.f32 %v1075, %v1101
    %v1132 = vadd.f32 %v1076, %v1114
    %v1133 = vadd.f32 %v1077, %v1127
    %v1134 = vmul.f32 %v1130, 0.5
    %v1135 = vtanh.pop %v1134
    %v1136 = vmul.f32 %v1135, 0.5
    %v1137 = vadd.f32 %v1136, 0.5
    %v1138 = vmul.f32 %v1131, 0.5
    %v1139 = vtanh.pop %v1138
    %v1140 = vmul.f32 %v1139, 0.5
    %v1141 = vadd.f32 %v1140, 0.5
    %v1142 = vtanh.pop %v1132
    %v1143 = vmul.f32 %v1133, 0.5
    %v1144 = vtanh.pop %v1143
    %v1145 = vmul.f32 %v1144, 0.5
    %v1146 = vadd.f32 %v1145, 0.5
    %v1147 = vmul.f32 %v1141, %v1069
    %v1148 = vmul.f32 %v1137, %v1142
    %v1149 = vadd.f32 %v1147, %v1148
    %v1150 = vtanh.pop %v1149
    %v1151 = vmul.f32 %v1146, %v1150
    %v1152 = vpack.c.bf16 %v1151, %v1151
    %1153 = vst [vmem:[#allocation4 + $0x28] sm:$0xff] %v1151
    %v1154 = vld [vmem:[#allocation2 + $0xc0] sm:$0xff]
    %v1155 = vld [vmem:[#allocation2 + $0xc8] sm:$0xff]
    %v1156 = vld [vmem:[#allocation2 + $0xd0] sm:$0xff]
    %v1157 = vld [vmem:[#allocation2 + $0xd8] sm:$0xff]
    %1158 = vmatpush.bf16.msra.mxu0 %v642
    %1159 = vmatpush.bf16.msra.mxu0 %v638
    %1160 = vmatpush.bf16.msra.mxu0 %v634
    %1161 = vmatpush.bf16.msra.mxu0 %v630
    %1162 = vmatpush.bf16.msra.mxu0 %v626
    %1163 = vmatpush.bf16.msra.mxu0 %v622
    %1164 = vmatpush.bf16.msra.mxu0 %v618
    %1165 = vmatpush.bf16.msra.mxu0 %v614
    %1166 = vmatmul.bf16.gmra.mxu0 %v1152
    %v1167 = vpop.f32.mrf.mxu0
    %v1168 = vadd.f32 0.0, %v1167
    %v1169 = vpop.f32.mrf.mxu0
    %1170 = vdwg.mxu0
    %1171 = vmatpush.bf16.msra.mxu0 %v643
    %1172 = vmatpush.bf16.msra.mxu0 %v639
    %1173 = vmatpush.bf16.msra.mxu0 %v635
    %1174 = vmatpush.bf16.msra.mxu0 %v631
    %1175 = vmatpush.bf16.msra.mxu0 %v627
    %1176 = vmatpush.bf16.msra.mxu0 %v623
    %1177 = vmatpush.bf16.msra.mxu0 %v619
    %1178 = vmatpush.bf16.msra.mxu0 %v615
    %1179 = vmatmul.bf16.gmra.mxu0 %v1152
    %v1180 = vpop.f32.mrf.mxu0
    %v1181 = vadd.f32 0.0, %v1180
    %v1182 = vpop.f32.mrf.mxu0
    %1183 = vdwg.mxu0
    %1184 = vmatpush.bf16.msra.mxu0 %v644
    %1185 = vmatpush.bf16.msra.mxu0 %v640
    %1186 = vmatpush.bf16.msra.mxu0 %v636
    %1187 = vmatpush.bf16.msra.mxu0 %v632
    %1188 = vmatpush.bf16.msra.mxu0 %v628
    %1189 = vmatpush.bf16.msra.mxu0 %v624
    %1190 = vmatpush.bf16.msra.mxu0 %v620
    %1191 = vmatpush.bf16.msra.mxu0 %v616
    %1192 = vmatmul.bf16.gmra.mxu0 %v1152
    %v1193 = vpop.f32.mrf.mxu0
    %v1194 = vadd.f32 0.0, %v1193
    %v1195 = vpop.f32.mrf.mxu0
    %1196 = vdwg.mxu0
    %1197 = vmatpush.bf16.msra.mxu0 %v645
    %1198 = vmatpush.bf16.msra.mxu0 %v641
    %1199 = vmatpush.bf16.msra.mxu0 %v637
    %1200 = vmatpush.bf16.msra.mxu0 %v633
    %1201 = vmatpush.bf16.msra.mxu0 %v629
    %1202 = vmatpush.bf16.msra.mxu0 %v625
    %1203 = vmatpush.bf16.msra.mxu0 %v621
    %1204 = vmatpush.bf16.msra.mxu0 %v617
    %1205 = vmatmul.bf16.gmra.mxu0 %v1152
    %v1206 = vpop.f32.mrf.mxu0
    %v1207 = vadd.f32 0.0, %v1206
    %v1208 = vpop.f32.mrf.mxu0
    %1209 = vdwg.mxu0
    %v1210 = vadd.f32 %v1154, %v1168
    %v1211 = vadd.f32 %v1155, %v1181
    %v1212 = vadd.f32 %v1156, %v1194
    %v1213 = vadd.f32 %v1157, %v1207
    %v1214 = vmul.f32 %v1210, 0.5
    %v1215 = vtanh.pop %v1214
    %v1216 = vmul.f32 %v1215, 0.5
    %v1217 = vadd.f32 %v1216, 0.5
    %v1218 = vmul.f32 %v1211, 0.5
    %v1219 = vtanh.pop %v1218
    %v1220 = vmul.f32 %v1219, 0.5
    %v1221 = vadd.f32 %v1220, 0.5
    %v1222 = vtanh.pop %v1212
    %v1223 = vmul.f32 %v1213, 0.5
    %v1224 = vtanh.pop %v1223
    %v1225 = vmul.f32 %v1224, 0.5
    %v1226 = vadd.f32 %v1225, 0.5
    %v1227 = vmul.f32 %v1221, %v1149
    %v1228 = vmul.f32 %v1217, %v1222
    %v1229 = vadd.f32 %v1227, %v1228
    %v1230 = vtanh.pop %v1229
    %v1231 = vmul.f32 %v1226, %v1230
    %v1232 = vpack.c.bf16 %v1231, %v1231
    %1233 = vst [vmem:[#allocation4 + $0x30] sm:$0xff] %v1231
    %v1234 = vld [vmem:[#allocation2 + $0xe0] sm:$0xff]
    %v1235 = vld [vmem:[#allocation2 + $0xe8] sm:$0xff]
    %v1236 = vld [vmem:[#allocation2 + $0xf0] sm:$0xff]
    %v1237 = vld [vmem:[#allocation2 + $0xf8] sm:$0xff]
    %1238 = vmatpush.bf16.msra.mxu0 %v642
    %1239 = vmatpush.bf16.msra.mxu0 %v638
    %1240 = vmatpush.bf16.msra.mxu0 %v634
    %1241 = vmatpush.bf16.msra.mxu0 %v630
    %1242 = vmatpush.bf16.msra.mxu0 %v626
    %1243 = vmatpush.bf16.msra.mxu0 %v622
    %1244 = vmatpush.bf16.msra.mxu0 %v618
    %1245 = vmatpush.bf16.msra.mxu0 %v614
    %1246 = vmatmul.bf16.gmra.mxu0 %v1232
    %v1247 = vpop.f32.mrf.mxu0
    %v1248 = vadd.f32 0.0, %v1247
    %v1249 = vpop.f32.mrf.mxu0
    %1250 = vdwg.mxu0
    %1251 = vmatpush.bf16.msra.mxu0 %v643
    %1252 = vmatpush.bf16.msra.mxu0 %v639
    %1253 = vmatpush.bf16.msra.mxu0 %v635
    %1254 = vmatpush.bf16.msra.mxu0 %v631
    %1255 = vmatpush.bf16.msra.mxu0 %v627
    %1256 = vmatpush.bf16.msra.mxu0 %v623
    %1257 = vmatpush.bf16.msra.mxu0 %v619
    %1258 = vmatpush.bf16.msra.mxu0 %v615
    %1259 = vmatmul.bf16.gmra.mxu0 %v1232
    %v1260 = vpop.f32.mrf.mxu0
    %v1261 = vadd.f32 0.0, %v1260
    %v1262 = vpop.f32.mrf.mxu0
    %1263 = vdwg.mxu0
    %1264 = vmatpush.bf16.msra.mxu0 %v644
    %1265 = vmatpush.bf16.msra.mxu0 %v640
    %1266 = vmatpush.bf16.msra.mxu0 %v636
    %1267 = vmatpush.bf16.msra.mxu0 %v632
    %1268 = vmatpush.bf16.msra.mxu0 %v628
    %1269 = vmatpush.bf16.msra.mxu0 %v624
    %1270 = vmatpush.bf16.msra.mxu0 %v620
    %1271 = vmatpush.bf16.msra.mxu0 %v616
    %1272 = vmatmul.bf16.gmra.mxu0 %v1232
    %v1273 = vpop.f32.mrf.mxu0
    %v1274 = vadd.f32 0.0, %v1273
    %v1275 = vpop.f32.mrf.mxu0
    %1276 = vdwg.mxu0
    %1277 = vmatpush.bf16.msra.mxu0 %v645
    %1278 = vmatpush.bf16.msra.mxu0 %v641
    %1279 = vmatpush.bf16.msra.mxu0 %v637
    %1280 = vmatpush.bf16.msra.mxu0 %v633
    %1281 = vmatpush.bf16.msra.mxu0 %v629
    %1282 = vmatpush.bf16.msra.mxu0 %v625
    %1283 = vmatpush.bf16.msra.mxu0 %v621
    %1284 = vmatpush.bf16.msra.mxu0 %v617
    %1285 = vmatmul.bf16.gmra.mxu0 %v1232
    %v1286 = vpop.f32.mrf.mxu0
    %v1287 = vadd.f32 0.0, %v1286
    %v1288 = vpop.f32.mrf.mxu0
    %1289 = vdwg.mxu0
    %v1290 = vadd.f32 %v1234, %v1248
    %v1291 = vadd.f32 %v1235, %v1261
    %v1292 = vadd.f32 %v1236, %v1274
    %v1293 = vadd.f32 %v1237, %v1287
    %v1294 = vmul.f32 %v1290, 0.5
    %v1295 = vtanh.pop %v1294
    %v1296 = vmul.f32 %v1295, 0.5
    %v1297 = vadd.f32 %v1296, 0.5
    %v1298 = vmul.f32 %v1291, 0.5
    %v1299 = vtanh.pop %v1298
    %v1300 = vmul.f32 %v1299, 0.5
    %v1301 = vadd.f32 %v1300, 0.5
    %v1302 = vtanh.pop %v1292
    %v1303 = vmul.f32 %v1293, 0.5
    %v1304 = vtanh.pop %v1303
    %v1305 = vmul.f32 %v1304, 0.5
    %v1306 = vadd.f32 %v1305, 0.5
    %v1307 = vmul.f32 %v1301, %v1229
    %v1308 = vmul.f32 %v1297, %v1302
    %v1309 = vadd.f32 %v1307, %v1308
    %v1310 = vtanh.pop %v1309
    %v1311 = vmul.f32 %v1306, %v1310
    %1312 = vst [vmem:[#allocation4 + $0x38] sm:$0xff] %v1311
    %v1313 = vld [vmem:[#allocation4] sm:$0xff]
    %v1314 = vld [vmem:[#allocation4 + $0x8] sm:$0xff]
    %v1315 = vld [vmem:[#allocation4 + $0x10] sm:$0xff]
    %v1316 = vld [vmem:[#allocation4 + $0x18] sm:$0xff]
    %v1317 = vld [vmem:[#allocation4 + $0x20] sm:$0xff]
    %v1318 = vld [vmem:[#allocation4 + $0x28] sm:$0xff]
    %v1319 = vld [vmem:[#allocation4 + $0x30] sm:$0xff]
    %v1320 = vld [vmem:[#allocation4 + $0x38] sm:$0xff]
    %v1321 = vpack.c.bf16 %v1314, %v1313
    %v1322 = vpack.c.bf16 %v1316, %v1315
    %v1323 = vpack.c.bf16 %v1318, %v1317
    %v1324 = vpack.c.bf16 %v1320, %v1319
    %v1325 = vld [vmem:[#allocation14] sm:$0xff]
    %v1326 = vld [vmem:[#allocation14 + $0x8] sm:$0xff]
    %v1327 = vld [vmem:[#allocation14 + $0x10] sm:$0xff]
    %v1328 = vld [vmem:[#allocation14 + $0x18] sm:$0xff]
    %v1329 = vld [vmem:[#allocation14 + $0x20] sm:$0xff]
    %v1330 = vld [vmem:[#allocation14 + $0x28] sm:$0xff]
    %v1331 = vld [vmem:[#allocation14 + $0x30] sm:$0xff]
    %v1332 = vld [vmem:[#allocation14 + $0x38] sm:$0xff]
    %v1333 = vld [vmem:[#allocation14 + $0x40] sm:$0xff]
    %v1334 = vld [vmem:[#allocation14 + $0x48] sm:$0xff]
    %v1335 = vld [vmem:[#allocation14 + $0x50] sm:$0xff]
    %v1336 = vld [vmem:[#allocation14 + $0x58] sm:$0xff]
    %v1337 = vld [vmem:[#allocation14 + $0x60] sm:$0xff]
    %v1338 = vld [vmem:[#allocation14 + $0x68] sm:$0xff]
    %v1339 = vld [vmem:[#allocation14 + $0x70] sm:$0xff]
    %v1340 = vld [vmem:[#allocation14 + $0x78] sm:$0xff]
    %v1341 = vld [vmem:[#allocation14 + $0x80] sm:$0xff]
    %v1342 = vld [vmem:[#allocation14 + $0x88] sm:$0xff]
    %v1343 = vld [vmem:[#allocation14 + $0x90] sm:$0xff]
    %v1344 = vld [vmem:[#allocation14 + $0x98] sm:$0xff]
    %v1345 = vld [vmem:[#allocation14 + $0xa0] sm:$0xff]
    %v1346 = vld [vmem:[#allocation14 + $0xa8] sm:$0xff]
    %v1347 = vld [vmem:[#allocation14 + $0xb0] sm:$0xff]
    %v1348 = vld [vmem:[#allocation14 + $0xb8] sm:$0xff]
    %v1349 = vld [vmem:[#allocation14 + $0xc0] sm:$0xff]
    %v1350 = vld [vmem:[#allocation14 + $0xc8] sm:$0xff]
    %v1351 = vld [vmem:[#allocation14 + $0xd0] sm:$0xff]
    %v1352 = vld [vmem:[#allocation14 + $0xd8] sm:$0xff]
    %v1353 = vld [vmem:[#allocation14 + $0xe0] sm:$0xff]
    %v1354 = vld [vmem:[#allocation14 + $0xe8] sm:$0xff]
    %v1355 = vld [vmem:[#allocation14 + $0xf0] sm:$0xff]
    %v1356 = vld [vmem:[#allocation14 + $0xf8] sm:$0xff]
    %v1357 = vld [vmem:[%s6] sm:$0xf]
    %v1359 = vperm.slane %v1357, 0
    %v1360 = vperm.slane %v1357, 1
    %v1361 = vperm.slane %v1357, 2
    %v1362 = vperm.slane %v1357, 3
    %v1399 = vunpack.c.l.b16 %v1325
    %v1400 = vunpack.c.h.b16 %v1325
    %v1401 = vunpack.c.l.b16 %v1326
    %v1402 = vunpack.c.h.b16 %v1326
    %v1403 = vunpack.c.l.b16 %v1327
    %v1404 = vunpack.c.h.b16 %v1327
    %v1405 = vunpack.c.l.b16 %v1328
    %v1406 = vunpack.c.h.b16 %v1328
    %v1407 = vunpack.c.l.b16 %v1329
    %v1408 = vunpack.c.h.b16 %v1329
    %v1409 = vunpack.c.l.b16 %v1330
    %v1410 = vunpack.c.h.b16 %v1330
    %v1411 = vunpack.c.l.b16 %v1331
    %v1412 = vunpack.c.h.b16 %v1331
    %v1413 = vunpack.c.l.b16 %v1332
    %v1414 = vunpack.c.h.b16 %v1332
    %v1415 = vunpack.c.l.b16 %v1333
    %v1416 = vunpack.c.h.b16 %v1333
    %v1417 = vunpack.c.l.b16 %v1334
    %v1418 = vunpack.c.h.b16 %v1334
    %v1419 = vunpack.c.l.b16 %v1335
    %v1420 = vunpack.c.h.b16 %v1335
    %v1421 = vunpack.c.l.b16 %v1336
    %v1422 = vunpack.c.h.b16 %v1336
    %v1423 = vunpack.c.l.b16 %v1337
    %v1424 = vunpack.c.h.b16 %v1337
    %v1425 = vunpack.c.l.b16 %v1338
    %v1426 = vunpack.c.h.b16 %v1338
    %v1427 = vunpack.c.l.b16 %v1339
    %v1428 = vunpack.c.h.b16 %v1339
    %v1429 = vunpack.c.l.b16 %v1340
    %v1430 = vunpack.c.h.b16 %v1340
    %v1431 = vunpack.c.l.b16 %v1341
    %v1432 = vunpack.c.h.b16 %v1341
    %v1433 = vunpack.c.l.b16 %v1342
    %v1434 = vunpack.c.h.b16 %v1342
    %v1435 = vunpack.c.l.b16 %v1343
    %v1436 = vunpack.c.h.b16 %v1343
    %v1437 = vunpack.c.l.b16 %v1344
    %v1438 = vunpack.c.h.b16 %v1344
    %v1439 = vunpack.c.l.b16 %v1345
    %v1440 = vunpack.c.h.b16 %v1345
    %v1441 = vunpack.c.l.b16 %v1346
    %v1442 = vunpack.c.h.b16 %v1346
    %v1443 = vunpack.c.l.b16 %v1347
    %v1444 = vunpack.c.h.b16 %v1347
    %v1445 = vunpack.c.l.b16 %v1348
    %v1446 = vunpack.c.h.b16 %v1348
    %v1447 = vunpack.c.l.b16 %v1349
    %v1448 = vunpack.c.h.b16 %v1349
    %v1449 = vunpack.c.l.b16 %v1350
    %v1450 = vunpack.c.h.b16 %v1350
    %v1451 = vunpack.c.l.b16 %v1351
    %v1452 = vunpack.c.h.b16 %v1351
    %v1453 = vunpack.c.l.b16 %v1352
    %v1454 = vunpack.c.h.b16 %v1352
    %v1455 = vunpack.c.l.b16 %v1353
    %v1456 = vunpack.c.h.b16 %v1353
    %v1457 = vunpack.c.l.b16 %v1354
    %v1458 = vunpack.c.h.b16 %v1354
    %v1459 = vunpack.c.l.b16 %v1355
    %v1460 = vunpack.c.h.b16 %v1355
    %v1461 = vunpack.c.l.b16 %v1356
    %v1462 = vunpack.c.h.b16 %v1356
    %v1463 = vpack.c.b16 %v1403, %v1399
    %v1464 = vpack.c.b16 %v1404, %v1400
    %v1465 = vpack.c.b16 %v1405, %v1401
    %v1466 = vpack.c.b16 %v1406, %v1402
    %v1467 = vpack.c.b16 %v1411, %v1407
    %v1468 = vpack.c.b16 %v1412, %v1408
    %v1469 = vpack.c.b16 %v1413, %v1409
    %v1470 = vpack.c.b16 %v1414, %v1410
    %v1471 = vpack.c.b16 %v1419, %v1415
    %v1472 = vpack.c.b16 %v1420, %v1416
    %v1473 = vpack.c.b16 %v1421, %v1417
    %v1474 = vpack.c.b16 %v1422, %v1418
    %v1475 = vpack.c.b16 %v1427, %v1423
    %v1476 = vpack.c.b16 %v1428, %v1424
    %v1477 = vpack.c.b16 %v1429, %v1425
    %v1478 = vpack.c.b16 %v1430, %v1426
    %v1479 = vpack.c.b16 %v1435, %v1431
    %v1480 = vpack.c.b16 %v1436, %v1432
    %v1481 = vpack.c.b16 %v1437, %v1433
    %v1482 = vpack.c.b16 %v1438, %v1434
    %v1483 = vpack.c.b16 %v1443, %v1439
    %v1484 = vpack.c.b16 %v1444, %v1440
    %v1485 = vpack.c.b16 %v1445, %v1441
    %v1486 = vpack.c.b16 %v1446, %v1442
    %v1487 = vpack.c.b16 %v1451, %v1447
    %v1488 = vpack.c.b16 %v1452, %v1448
    %v1489 = vpack.c.b16 %v1453, %v1449
    %v1490 = vpack.c.b16 %v1454, %v1450
    %v1491 = vpack.c.b16 %v1459, %v1455
    %v1492 = vpack.c.b16 %v1460, %v1456
    %v1493 = vpack.c.b16 %v1461, %v1457
    %v1494 = vpack.c.b16 %v1462, %v1458
    %1527 = vmatpush.bf16.msra.mxu0 %v1491
    %1528 = vmatpush.bf16.msra.mxu0 %v1487
    %1529 = vmatpush.bf16.msra.mxu0 %v1483
    %1530 = vmatpush.bf16.msra.mxu0 %v1479
    %1531 = vmatpush.bf16.msra.mxu0 %v1475
    %1532 = vmatpush.bf16.msra.mxu0 %v1471
    %1533 = vmatpush.bf16.msra.mxu0 %v1467
    %1534 = vmatpush.bf16.msra.mxu0 %v1463
    %1535 = vmatmul.bf16.gmra.mxu0 %v1321
    %v1536 = vpop.f32.mrf.mxu0
    %v1537 = vadd.f32 %v1359, %v1536
    %v1538 = vpop.f32.mrf.mxu0
    %v1539 = vadd.f32 %v1359, %v1538
    %1540 = vmatmul.bf16.gmra.mxu0 %v1322
    %v1541 = vpop.f32.mrf.mxu0
    %v1542 = vadd.f32 %v1359, %v1541
    %v1543 = vpop.f32.mrf.mxu0
    %v1544 = vadd.f32 %v1359, %v1543
    %1545 = vmatmul.bf16.gmra.mxu0 %v1323
    %v1546 = vpop.f32.mrf.mxu0
    %v1547 = vadd.f32 %v1359, %v1546
    %v1548 = vpop.f32.mrf.mxu0
    %v1549 = vadd.f32 %v1359, %v1548
    %1550 = vmatmul.bf16.gmra.mxu0 %v1324
    %v1551 = vpop.f32.mrf.mxu0
    %v1552 = vadd.f32 %v1359, %v1551
    %v1553 = vpop.f32.mrf.mxu0
    %v1554 = vadd.f32 %v1359, %v1553
    %1555 = vdwg.mxu0
    %1556 = vmatpush.bf16.msra.mxu0 %v1492
    %1557 = vmatpush.bf16.msra.mxu0 %v1488
    %1558 = vmatpush.bf16.msra.mxu0 %v1484
    %1559 = vmatpush.bf16.msra.mxu0 %v1480
    %1560 = vmatpush.bf16.msra.mxu0 %v1476
    %1561 = vmatpush.bf16.msra.mxu0 %v1472
    %1562 = vmatpush.bf16.msra.mxu0 %v1468
    %1563 = vmatpush.bf16.msra.mxu0 %v1464
    %1564 = vmatmul.bf16.gmra.mxu0 %v1321
    %v1565 = vpop.f32.mrf.mxu0
    %v1566 = vadd.f32 %v1360, %v1565
    %v1567 = vpop.f32.mrf.mxu0
    %v1568 = vadd.f32 %v1360, %v1567
    %1569 = vmatmul.bf16.gmra.mxu0 %v1322
    %v1570 = vpop.f32.mrf.mxu0
    %v1571 = vadd.f32 %v1360, %v1570
    %v1572 = vpop.f32.mrf.mxu0
    %v1573 = vadd.f32 %v1360, %v1572
    %1574 = vmatmul.bf16.gmra.mxu0 %v1323
    %v1575 = vpop.f32.mrf.mxu0
    %v1576 = vadd.f32 %v1360, %v1575
    %v1577 = vpop.f32.mrf.mxu0
    %v1578 = vadd.f32 %v1360, %v1577
    %1579 = vmatmul.bf16.gmra.mxu0 %v1324
    %v1580 = vpop.f32.mrf.mxu0
    %v1581 = vadd.f32 %v1360, %v1580
    %v1582 = vpop.f32.mrf.mxu0
    %v1583 = vadd.f32 %v1360, %v1582
    %1584 = vdwg.mxu0
    %1585 = vmatpush.bf16.msra.mxu0 %v1493
    %1586 = vmatpush.bf16.msra.mxu0 %v1489
    %1587 = vmatpush.bf16.msra.mxu0 %v1485
    %1588 = vmatpush.bf16.msra.mxu0 %v1481
    %1589 = vmatpush.bf16.msra.mxu0 %v1477
    %1590 = vmatpush.bf16.msra.mxu0 %v1473
    %1591 = vmatpush.bf16.msra.mxu0 %v1469
    %1592 = vmatpush.bf16.msra.mxu0 %v1465
    %1593 = vmatmul.bf16.gmra.mxu0 %v1321
    %v1594 = vpop.f32.mrf.mxu0
    %v1595 = vadd.f32 %v1361, %v1594
    %v1596 = vpop.f32.mrf.mxu0
    %v1597 = vadd.f32 %v1361, %v1596
    %1598 = vmatmul.bf16.gmra.mxu0 %v1322
    %v1599 = vpop.f32.mrf.mxu0
    %v1600 = vadd.f32 %v1361, %v1599
    %v1601 = vpop.f32.mrf.mxu0
    %v1602 = vadd.f32 %v1361, %v1601
    %1603 = vmatmul.bf16.gmra.mxu0 %v1323
    %v1604 = vpop.f32.mrf.mxu0
    %v1605 = vadd.f32 %v1361, %v1604
    %v1606 = vpop.f32.mrf.mxu0
    %v1607 = vadd.f32 %v1361, %v1606
    %1608 = vmatmul.bf16.gmra.mxu0 %v1324
    %v1609 = vpop.f32.mrf.mxu0
    %v1610 = vadd.f32 %v1361, %v1609
    %v1611 = vpop.f32.mrf.mxu0
    %v1612 = vadd.f32 %v1361, %v1611
    %1613 = vdwg.mxu0
    %1614 = vmatpush.bf16.msra.mxu0 %v1494
    %1615 = vmatpush.bf16.msra.mxu0 %v1490
    %1616 = vmatpush.bf16.msra.mxu0 %v1486
    %1617 = vmatpush.bf16.msra.mxu0 %v1482
    %1618 = vmatpush.bf16.msra.mxu0 %v1478
    %1619 = vmatpush.bf16.msra.mxu0 %v1474
    %1620 = vmatpush.bf16.msra.mxu0 %v1470
    %1621 = vmatpush.bf16.msra.mxu0 %v1466
    %1622 = vmatmul.bf16.gmra.mxu0 %v1321
    %v1623 = vpop.f32.mrf.mxu0
    %v1624 = vadd.f32 %v1362, %v1623
    %v1625 = vpop.f32.mrf.mxu0
    %v1626 = vadd.f32 %v1362, %v1625
    %1627 = vmatmul.bf16.gmra.mxu0 %v1322
    %v1628 = vpop.f32.mrf.mxu0
    %v1629 = vadd.f32 %v1362, %v1628
    %v1630 = vpop.f32.mrf.mxu0
    %v1631 = vadd.f32 %v1362, %v1630
    %1632 = vmatmul.bf16.gmra.mxu0 %v1323
    %v1633 = vpop.f32.mrf.mxu0
    %v1634 = vadd.f32 %v1362, %v1633
    %v1635 = vpop.f32.mrf.mxu0
    %v1636 = vadd.f32 %v1362, %v1635
    %1637 = vmatmul.bf16.gmra.mxu0 %v1324
    %v1638 = vpop.f32.mrf.mxu0
    %v1639 = vadd.f32 %v1362, %v1638
    %v1640 = vpop.f32.mrf.mxu0
    %v1641 = vadd.f32 %v1362, %v1640
    %1642 = vdwg.mxu0
    %1643 = vst [vmem:[#allocation3] sm:$0xff] %v1537
    %1644 = vst [vmem:[#allocation3 + $0x8] sm:$0xff] %v1566
    %1645 = vst [vmem:[#allocation3 + $0x10] sm:$0xff] %v1595
    %1646 = vst [vmem:[#allocation3 + $0x18] sm:$0xff] %v1624
    %1647 = vst [vmem:[#allocation3 + $0x20] sm:$0xff] %v1539
    %1648 = vst [vmem:[#allocation3 + $0x28] sm:$0xff] %v1568
    %1649 = vst [vmem:[#allocation3 + $0x30] sm:$0xff] %v1597
    %1650 = vst [vmem:[#allocation3 + $0x38] sm:$0xff] %v1626
    %1651 = vst [vmem:[#allocation3 + $0x40] sm:$0xff] %v1542
    %1652 = vst [vmem:[#allocation3 + $0x48] sm:$0xff] %v1571
    %1653 = vst [vmem:[#allocation3 + $0x50] sm:$0xff] %v1600
    %1654 = vst [vmem:[#allocation3 + $0x58] sm:$0xff] %v1629
    %1655 = vst [vmem:[#allocation3 + $0x60] sm:$0xff] %v1544
    %1656 = vst [vmem:[#allocation3 + $0x68] sm:$0xff] %v1573
    %1657 = vst [vmem:[#allocation3 + $0x70] sm:$0xff] %v1602
    %1658 = vst [vmem:[#allocation3 + $0x78] sm:$0xff] %v1631
    %1659 = vst [vmem:[#allocation3 + $0x80] sm:$0xff] %v1547
    %1660 = vst [vmem:[#allocation3 + $0x88] sm:$0xff] %v1576
    %1661 = vst [vmem:[#allocation3 + $0x90] sm:$0xff] %v1605
    %1662 = vst [vmem:[#allocation3 + $0x98] sm:$0xff] %v1634
    %1663 = vst [vmem:[#allocation3 + $0xa0] sm:$0xff] %v1549
    %1664 = vst [vmem:[#allocation3 + $0xa8] sm:$0xff] %v1578
    %1665 = vst [vmem:[#allocation3 + $0xb0] sm:$0xff] %v1607
    %1666 = vst [vmem:[#allocation3 + $0xb8] sm:$0xff] %v1636
    %1667 = vst [vmem:[#allocation3 + $0xc0] sm:$0xff] %v1552
    %1668 = vst [vmem:[#allocation3 + $0xc8] sm:$0xff] %v1581
    %1669 = vst [vmem:[#allocation3 + $0xd0] sm:$0xff] %v1610
    %1670 = vst [vmem:[#allocation3 + $0xd8] sm:$0xff] %v1639
    %1671 = vst [vmem:[#allocation3 + $0xe0] sm:$0xff] %v1554
    %1672 = vst [vmem:[#allocation3 + $0xe8] sm:$0xff] %v1583
    %1673 = vst [vmem:[#allocation3 + $0xf0] sm:$0xff] %v1612
    %1674 = vst [vmem:[#allocation3 + $0xf8] sm:$0xff] %v1641
    %v1675 = vld [vmem:[#allocation3] sm:$0xff]
    %v1676 = vld [vmem:[#allocation3 + $0x8] sm:$0xff]
    %v1677 = vld [vmem:[#allocation3 + $0x10] sm:$0xff]
    %v1678 = vld [vmem:[#allocation3 + $0x18] sm:$0xff]
    %v1711 = vunpack.c.l.b16 %v482
    %v1712 = vunpack.c.h.b16 %v482
    %v1713 = vunpack.c.l.b16 %v483
    %v1714 = vunpack.c.h.b16 %v483
    %v1715 = vunpack.c.l.b16 %v484
    %v1716 = vunpack.c.h.b16 %v484
    %v1717 = vunpack.c.l.b16 %v485
    %v1718 = vunpack.c.h.b16 %v485
    %v1719 = vunpack.c.l.b16 %v486
    %v1720 = vunpack.c.h.b16 %v486
    %v1721 = vunpack.c.l.b16 %v487
    %v1722 = vunpack.c.h.b16 %v487
    %v1723 = vunpack.c.l.b16 %v488
    %v1724 = vunpack.c.h.b16 %v488
    %v1725 = vunpack.c.l.b16 %v489
    %v1726 = vunpack.c.h.b16 %v489
    %v1727 = vunpack.c.l.b16 %v490
    %v1728 = vunpack.c.h.b16 %v490
    %v1729 = vunpack.c.l.b16 %v491
    %v1730 = vunpack.c.h.b16 %v491
    %v1731 = vunpack.c.l.b16 %v492
    %v1732 = vunpack.c.h.b16 %v492
    %v1733 = vunpack.c.l.b16 %v493
    %v1734 = vunpack.c.h.b16 %v493
    %v1735 = vunpack.c.l.b16 %v494
    %v1736 = vunpack.c.h.b16 %v494
    %v1737 = vunpack.c.l.b16 %v495
    %v1738 = vunpack.c.h.b16 %v495
    %v1739 = vunpack.c.l.b16 %v496
    %v1740 = vunpack.c.h.b16 %v496
    %v1741 = vunpack.c.l.b16 %v497
    %v1742 = vunpack.c.h.b16 %v497
    %v1743 = vunpack.c.l.b16 %v498
    %v1744 = vunpack.c.h.b16 %v498
    %v1745 = vunpack.c.l.b16 %v499
    %v1746 = vunpack.c.h.b16 %v499
    %v1747 = vunpack.c.l.b16 %v500
    %v1748 = vunpack.c.h.b16 %v500
    %v1749 = vunpack.c.l.b16 %v501
    %v1750 = vunpack.c.h.b16 %v501
    %v1751 = vunpack.c.l.b16 %v502
    %v1752 = vunpack.c.h.b16 %v502
    %v1753 = vunpack.c.l.b16 %v503
    %v1754 = vunpack.c.h.b16 %v503
    %v1755 = vunpack.c.l.b16 %v504
    %v1756 = vunpack.c.h.b16 %v504
    %v1757 = vunpack.c.l.b16 %v505
    %v1758 = vunpack.c.h.b16 %v505
    %v1759 = vunpack.c.l.b16 %v506
    %v1760 = vunpack.c.h.b16 %v506
    %v1761 = vunpack.c.l.b16 %v507
    %v1762 = vunpack.c.h.b16 %v507
    %v1763 = vunpack.c.l.b16 %v508
    %v1764 = vunpack.c.h.b16 %v508
    %v1765 = vunpack.c.l.b16 %v509
    %v1766 = vunpack.c.h.b16 %v509
    %v1767 = vunpack.c.l.b16 %v510
    %v1768 = vunpack.c.h.b16 %v510
    %v1769 = vunpack.c.l.b16 %v511
    %v1770 = vunpack.c.h.b16 %v511
    %v1771 = vunpack.c.l.b16 %v512
    %v1772 = vunpack.c.h.b16 %v512
    %v1773 = vunpack.c.l.b16 %v513
    %v1774 = vunpack.c.h.b16 %v513
    %v1775 = vpack.c.b16 %v1715, %v1711
    %v1776 = vpack.c.b16 %v1716, %v1712
    %v1777 = vpack.c.b16 %v1717, %v1713
    %v1778 = vpack.c.b16 %v1718, %v1714
    %v1779 = vpack.c.b16 %v1723, %v1719
    %v1780 = vpack.c.b16 %v1724, %v1720
    %v1781 = vpack.c.b16 %v1725, %v1721
    %v1782 = vpack.c.b16 %v1726, %v1722
    %v1783 = vpack.c.b16 %v1731, %v1727
    %v1784 = vpack.c.b16 %v1732, %v1728
    %v1785 = vpack.c.b16 %v1733, %v1729
    %v1786 = vpack.c.b16 %v1734, %v1730
    %v1787 = vpack.c.b16 %v1739, %v1735
    %v1788 = vpack.c.b16 %v1740, %v1736
    %v1789 = vpack.c.b16 %v1741, %v1737
    %v1790 = vpack.c.b16 %v1742, %v1738
    %v1791 = vpack.c.b16 %v1747, %v1743
    %v1792 = vpack.c.b16 %v1748, %v1744
    %v1793 = vpack.c.b16 %v1749, %v1745
    %v1794 = vpack.c.b16 %v1750, %v1746
    %v1795 = vpack.c.b16 %v1755, %v1751
    %v1796 = vpack.c.b16 %v1756, %v1752
    %v1797 = vpack.c.b16 %v1757, %v1753
    %v1798 = vpack.c.b16 %v1758, %v1754
    %v1799 = vpack.c.b16 %v1763, %v1759
    %v1800 = vpack.c.b16 %v1764, %v1760
    %v1801 = vpack.c.b16 %v1765, %v1761
    %v1802 = vpack.c.b16 %v1766, %v1762
    %v1803 = vpack.c.b16 %v1771, %v1767
    %v1804 = vpack.c.b16 %v1772, %v1768
    %v1805 = vpack.c.b16 %v1773, %v1769
    %v1806 = vpack.c.b16 %v1774, %v1770
    %1839 = vmatpush.bf16.msra.mxu0 %v1803
    %1840 = vmatpush.bf16.msra.mxu0 %v1799
    %1841 = vmatpush.bf16.msra.mxu0 %v1795
    %1842 = vmatpush.bf16.msra.mxu0 %v1791
    %1843 = vmatpush.bf16.msra.mxu0 %v1787
    %1844 = vmatpush.bf16.msra.mxu0 %v1783
    %1845 = vmatpush.bf16.msra.mxu0 %v1779
    %1846 = vmatpush.bf16.msra.mxu0 %v1775
    %1847 = vmatmul.bf16.gmra.mxu0 0
    %v1848 = vpop.f32.mrf.mxu0
    %v1849 = vadd.f32 0.0, %v1848
    %v1850 = vpop.f32.mrf.mxu0
    %1851 = vdwg.mxu0
    %1852 = vmatpush.bf16.msra.mxu0 %v1804
    %1853 = vmatpush.bf16.msra.mxu0 %v1800
    %1854 = vmatpush.bf16.msra.mxu0 %v1796
    %1855 = vmatpush.bf16.msra.mxu0 %v1792
    %1856 = vmatpush.bf16.msra.mxu0 %v1788
    %1857 = vmatpush.bf16.msra.mxu0 %v1784
    %1858 = vmatpush.bf16.msra.mxu0 %v1780
    %1859 = vmatpush.bf16.msra.mxu0 %v1776
    %1860 = vmatmul.bf16.gmra.mxu0 0
    %v1861 = vpop.f32.mrf.mxu0
    %v1862 = vadd.f32 0.0, %v1861
    %v1863 = vpop.f32.mrf.mxu0
    %1864 = vdwg.mxu0
    %1865 = vmatpush.bf16.msra.mxu0 %v1805
    %1866 = vmatpush.bf16.msra.mxu0 %v1801
    %1867 = vmatpush.bf16.msra.mxu0 %v1797
    %1868 = vmatpush.bf16.msra.mxu0 %v1793
    %1869 = vmatpush.bf16.msra.mxu0 %v1789
    %1870 = vmatpush.bf16.msra.mxu0 %v1785
    %1871 = vmatpush.bf16.msra.mxu0 %v1781
    %1872 = vmatpush.bf16.msra.mxu0 %v1777
    %1873 = vmatmul.bf16.gmra.mxu0 0
    %v1874 = vpop.f32.mrf.mxu0
    %v1875 = vadd.f32 0.0, %v1874
    %v1876 = vpop.f32.mrf.mxu0
    %1877 = vdwg.mxu0
    %1878 = vmatpush.bf16.msra.mxu0 %v1806
    %1879 = vmatpush.bf16.msra.mxu0 %v1802
    %1880 = vmatpush.bf16.msra.mxu0 %v1798
    %1881 = vmatpush.bf16.msra.mxu0 %v1794
    %1882 = vmatpush.bf16.msra.mxu0 %v1790
    %1883 = vmatpush.bf16.msra.mxu0 %v1786
    %1884 = vmatpush.bf16.msra.mxu0 %v1782
    %1885 = vmatpush.bf16.msra.mxu0 %v1778
    %1886 = vmatmul.bf16.gmra.mxu0 0
    %v1887 = vpop.f32.mrf.mxu0
    %v1888 = vadd.f32 0.0, %v1887
    %v1889 = vpop.f32.mrf.mxu0
    %1890 = vdwg.mxu0
    %v1891 = vadd.f32 %v1675, %v1849
    %v1892 = vadd.f32 %v1676, %v1862
    %v1893 = vadd.f32 %v1677, %v1875
    %v1894 = vadd.f32 %v1678, %v1888
    %v1895 = vmul.f32 %v1891, 0.5
    %v1896 = vtanh.pop %v1895
    %v1897 = vmul.f32 %v1896, 0.5
    %v1898 = vadd.f32 %v1897, 0.5
    %v1899 = vmul.f32 %v1892, 0.5
    %v1900 = vtanh.pop %v1899
    %v1901 = vmul.f32 %v1900, 0.5
    %v1902 = vadd.f32 %v1901, 0.5
    %v1903 = vtanh.pop %v1893
    %v1904 = vmul.f32 %v1894, 0.5
    %v1905 = vtanh.pop %v1904
    %v1906 = vmul.f32 %v1905, 0.5
    %v1907 = vadd.f32 %v1906, 0.5
    %v1908 = vmul.f32 %v1902, 0.0
    %v1909 = vmul.f32 %v1898, %v1903
    %v1910 = vadd.f32 %v1908, %v1909
    %v1911 = vtanh.pop %v1910
    %v1912 = vmul.f32 %v1907, %v1911
    %v1913 = vpack.c.bf16 %v1912, %v1912
    %v1914 = vmax.f32 %v1912, 0.0
    %1915 = vst [vmem:[#allocation5] sm:$0xff] %v1914
    %v1916 = vld [vmem:[#allocation3 + $0x20] sm:$0xff]
    %v1917 = vld [vmem:[#allocation3 + $0x28] sm:$0xff]
    %v1918 = vld [vmem:[#allocation3 + $0x30] sm:$0xff]
    %v1919 = vld [vmem:[#allocation3 + $0x38] sm:$0xff]
    %1920 = vmatpush.bf16.msra.mxu0 %v1803
    %1921 = vmatpush.bf16.msra.mxu0 %v1799
    %1922 = vmatpush.bf16.msra.mxu0 %v1795
    %1923 = vmatpush.bf16.msra.mxu0 %v1791
    %1924 = vmatpush.bf16.msra.mxu0 %v1787
    %1925 = vmatpush.bf16.msra.mxu0 %v1783
    %1926 = vmatpush.bf16.msra.mxu0 %v1779
    %1927 = vmatpush.bf16.msra.mxu0 %v1775
    %1928 = vmatmul.bf16.gmra.mxu0 %v1913
    %v1929 = vpop.f32.mrf.mxu0
    %v1930 = vadd.f32 0.0, %v1929
    %v1931 = vpop.f32.mrf.mxu0
    %1932 = vdwg.mxu0
    %1933 = vmatpush.bf16.msra.mxu0 %v1804
    %1934 = vmatpush.bf16.msra.mxu0 %v1800
    %1935 = vmatpush.bf16.msra.mxu0 %v1796
    %1936 = vmatpush.bf16.msra.mxu0 %v1792
    %1937 = vmatpush.bf16.msra.mxu0 %v1788
    %1938 = vmatpush.bf16.msra.mxu0 %v1784
    %1939 = vmatpush.bf16.msra.mxu0 %v1780
    %1940 = vmatpush.bf16.msra.mxu0 %v1776
    %1941 = vmatmul.bf16.gmra.mxu0 %v1913
    %v1942 = vpop.f32.mrf.mxu0
    %v1943 = vadd.f32 0.0, %v1942
    %v1944 = vpop.f32.mrf.mxu0
    %1945 = vdwg.mxu0
    %1946 = vmatpush.bf16.msra.mxu0 %v1805
    %1947 = vmatpush.bf16.msra.mxu0 %v1801
    %1948 = vmatpush.bf16.msra.mxu0 %v1797
    %1949 = vmatpush.bf16.msra.mxu0 %v1793
    %1950 = vmatpush.bf16.msra.mxu0 %v1789
    %1951 = vmatpush.bf16.msra.mxu0 %v1785
    %1952 = vmatpush.bf16.msra.mxu0 %v1781
    %1953 = vmatpush.bf16.msra.mxu0 %v1777
    %1954 = vmatmul.bf16.gmra.mxu0 %v1913
    %v1955 = vpop.f32.mrf.mxu0
    %v1956 = vadd.f32 0.0, %v1955
    %v1957 = vpop.f32.mrf.mxu0
    %1958 = vdwg.mxu0
    %1959 = vmatpush.bf16.msra.mxu0 %v1806
    %1960 = vmatpush.bf16.msra.mxu0 %v1802
    %1961 = vmatpush.bf16.msra.mxu0 %v1798
    %1962 = vmatpush.bf16.msra.mxu0 %v1794
    %1963 = vmatpush.bf16.msra.mxu0 %v1790
    %1964 = vmatpush.bf16.msra.mxu0 %v1786
    %1965 = vmatpush.bf16.msra.mxu0 %v1782
    %1966 = vmatpush.bf16.msra.mxu0 %v1778
    %1967 = vmatmul.bf16.gmra.mxu0 %v1913
    %v1968 = vpop.f32.mrf.mxu0
    %v1969 = vadd.f32 0.0, %v1968
    %v1970 = vpop.f32.mrf.mxu0
    %1971 = vdwg.mxu0
    %v1972 = vadd.f32 %v1916, %v1930
    %v1973 = vadd.f32 %v1917, %v1943
    %v1974 = vadd.f32 %v1918, %v1956
    %v1975 = vadd.f32 %v1919, %v1969
    %v1976 = vmul.f32 %v1972, 0.5
    %v1977 = vtanh.pop %v1976
    %v1978 = vmul.f32 %v1977, 0.5
    %v1979 = vadd.f32 %v1978, 0.5
    %v1980 = vmul.f32 %v1973, 0.5
    %v1981 = vtanh.pop %v1980
    %v1982 = vmul.f32 %v1981, 0.5
    %v1983 = vadd.f32 %v1982, 0.5
    %v1984 = vtanh.pop %v1974
    %v1985 = vmul.f32 %v1975, 0.5
    %v1986 = vtanh.pop %v1985
    %v1987 = vmul.f32 %v1986, 0.5
    %v1988 = vadd.f32 %v1987, 0.5
    %v1989 = vmul.f32 %v1983, %v1910
    %v1990 = vmul.f32 %v1979, %v1984
    %v1991 = vadd.f32 %v1989, %v1990
    %v1992 = vtanh.pop %v1991
    %v1993 = vmul.f32 %v1988, %v1992
    %v1994 = vpack.c.bf16 %v1993, %v1993
    %v1995 = vmax.f32 %v1993, 0.0
    %1996 = vst [vmem:[#allocation5 + $0x8] sm:$0xff] %v1995
    %v1997 = vld [vmem:[#allocation3 + $0x40] sm:$0xff]
    %v1998 = vld [vmem:[#allocation3 + $0x48] sm:$0xff]
    %v1999 = vld [vmem:[#allocation3 + $0x50] sm:$0xff]
    %v2000 = vld [vmem:[#allocation3 + $0x58] sm:$0xff]
    %2001 = vmatpush.bf16.msra.mxu0 %v1803
    %2002 = vmatpush.bf16.msra.mxu0 %v1799
    %2003 = vmatpush.bf16.msra.mxu0 %v1795
    %2004 = vmatpush.bf16.msra.mxu0 %v1791
    %2005 = vmatpush.bf16.msra.mxu0 %v1787
    %2006 = vmatpush.bf16.msra.mxu0 %v1783
    %2007 = vmatpush.bf16.msra.mxu0 %v1779
    %2008 = vmatpush.bf16.msra.mxu0 %v1775
    %2009 = vmatmul.bf16.gmra.mxu0 %v1994
    %v2010 = vpop.f32.mrf.mxu0
    %v2011 = vadd.f32 0.0, %v2010
    %v2012 = vpop.f32.mrf.mxu0
    %2013 = vdwg.mxu0
    %2014 = vmatpush.bf16.msra.mxu0 %v1804
    %2015 = vmatpush.bf16.msra.mxu0 %v1800
    %2016 = vmatpush.bf16.msra.mxu0 %v1796
    %2017 = vmatpush.bf16.msra.mxu0 %v1792
    %2018 = vmatpush.bf16.msra.mxu0 %v1788
    %2019 = vmatpush.bf16.msra.mxu0 %v1784
    %2020 = vmatpush.bf16.msra.mxu0 %v1780
    %2021 = vmatpush.bf16.msra.mxu0 %v1776
    %2022 = vmatmul.bf16.gmra.mxu0 %v1994
    %v2023 = vpop.f32.mrf.mxu0
    %v2024 = vadd.f32 0.0, %v2023
    %v2025 = vpop.f32.mrf.mxu0
    %2026 = vdwg.mxu0
    %2027 = vmatpush.bf16.msra.mxu0 %v1805
    %2028 = vmatpush.bf16.msra.mxu0 %v1801
    %2029 = vmatpush.bf16.msra.mxu0 %v1797
    %2030 = vmatpush.bf16.msra.mxu0 %v1793
    %2031 = vmatpush.bf16.msra.mxu0 %v1789
    %2032 = vmatpush.bf16.msra.mxu0 %v1785
    %2033 = vmatpush.bf16.msra.mxu0 %v1781
    %2034 = vmatpush.bf16.msra.mxu0 %v1777
    %2035 = vmatmul.bf16.gmra.mxu0 %v1994
    %v2036 = vpop.f32.mrf.mxu0
    %v2037 = vadd.f32 0.0, %v2036
    %v2038 = vpop.f32.mrf.mxu0
    %2039 = vdwg.mxu0
    %2040 = vmatpush.bf16.msra.mxu0 %v1806
    %2041 = vmatpush.bf16.msra.mxu0 %v1802
    %2042 = vmatpush.bf16.msra.mxu0 %v1798
    %2043 = vmatpush.bf16.msra.mxu0 %v1794
    %2044 = vmatpush.bf16.msra.mxu0 %v1790
    %2045 = vmatpush.bf16.msra.mxu0 %v1786
    %2046 = vmatpush.bf16.msra.mxu0 %v1782
    %2047 = vmatpush.bf16.msra.mxu0 %v1778
    %2048 = vmatmul.bf16.gmra.mxu0 %v1994
    %v2049 = vpop.f32.mrf.mxu0
    %v2050 = vadd.f32 0.0, %v2049
    %v2051 = vpop.f32.mrf.mxu0
    %2052 = vdwg.mxu0
    %v2053 = vadd.f32 %v1997, %v2011
    %v2054 = vadd.f32 %v1998, %v2024
    %v2055 = vadd.f32 %v1999, %v2037
    %v2056 = vadd.f32 %v2000, %v2050
    %v2057 = vmul.f32 %v2053, 0.5
    %v2058 = vtanh.pop %v2057
    %v2059 = vmul.f32 %v2058, 0.5
    %v2060 = vadd.f32 %v2059, 0.5
    %v2061 = vmul.f32 %v2054, 0.5
    %v2062 = vtanh.pop %v2061
    %v2063 = vmul.f32 %v2062, 0.5
    %v2064 = vadd.f32 %v2063, 0.5
    %v2065 = vtanh.pop %v2055
    %v2066 = vmul.f32 %v2056, 0.5
    %v2067 = vtanh.pop %v2066
    %v2068 = vmul.f32 %v2067, 0.5
    %v2069 = vadd.f32 %v2068, 0.5
    %v2070 = vmul.f32 %v2064, %v1991
    %v2071 = vmul.f32 %v2060, %v2065
    %v2072 = vadd.f32 %v2070, %v2071
    %v2073 = vtanh.pop %v2072
    %v2074 = vmul.f32 %v2069, %v2073
    %v2075 = vpack.c.bf16 %v2074, %v2074
    %v2076 = vmax.f32 %v2074, 0.0
    %2077 = vst [vmem:[#allocation5 + $0x10] sm:$0xff] %v2076
    %v2078 = vld [vmem:[#allocation3 + $0x60] sm:$0xff]
    %v2079 = vld [vmem:[#allocation3 + $0x68] sm:$0xff]
    %v2080 = vld [vmem:[#allocation3 + $0x70] sm:$0xff]
    %v2081 = vld [vmem:[#allocation3 + $0x78] sm:$0xff]
    %2082 = vmatpush.bf16.msra.mxu0 %v1803
    %2083 = vmatpush.bf16.msra.mxu0 %v1799
    %2084 = vmatpush.bf16.msra.mxu0 %v1795
    %2085 = vmatpush.bf16.msra.mxu0 %v1791
    %2086 = vmatpush.bf16.msra.mxu0 %v1787
    %2087 = vmatpush.bf16.msra.mxu0 %v1783
    %2088 = vmatpush.bf16.msra.mxu0 %v1779
    %2089 = vmatpush.bf16.msra.mxu0 %v1775
    %2090 = vmatmul.bf16.gmra.mxu0 %v2075
    %v2091 = vpop.f32.mrf.mxu0
    %v2092 = vadd.f32 0.0, %v2091
    %v2093 = vpop.f32.mrf.mxu0
    %2094 = vdwg.mxu0
    %2095 = vmatpush.bf16.msra.mxu0 %v1804
    %2096 = vmatpush.bf16.msra.mxu0 %v1800
    %2097 = vmatpush.bf16.msra.mxu0 %v1796
    %2098 = vmatpush.bf16.msra.mxu0 %v1792
    %2099 = vmatpush.bf16.msra.mxu0 %v1788
    %2100 = vmatpush.bf16.msra.mxu0 %v1784
    %2101 = vmatpush.bf16.msra.mxu0 %v1780
    %2102 = vmatpush.bf16.msra.mxu0 %v1776
    %2103 = vmatmul.bf16.gmra.mxu0 %v2075
    %v2104 = vpop.f32.mrf.mxu0
    %v2105 = vadd.f32 0.0, %v2104
    %v2106 = vpop.f32.mrf.mxu0
    %2107 = vdwg.mxu0
    %2108 = vmatpush.bf16.msra.mxu0 %v1805
    %2109 = vmatpush.bf16.msra.mxu0 %v1801
    %2110 = vmatpush.bf16.msra.mxu0 %v1797
    %2111 = vmatpush.bf16.msra.mxu0 %v1793
    %2112 = vmatpush.bf16.msra.mxu0 %v1789
    %2113 = vmatpush.bf16.msra.mxu0 %v1785
    %2114 = vmatpush.bf16.msra.mxu0 %v1781
    %2115 = vmatpush.bf16.msra.mxu0 %v1777
    %2116 = vmatmul.bf16.gmra.mxu0 %v2075
    %v2117 = vpop.f32.mrf.mxu0
    %v2118 = vadd.f32 0.0, %v2117
    %v2119 = vpop.f32.mrf.mxu0
    %2120 = vdwg.mxu0
    %2121 = vmatpush.bf16.msra.mxu0 %v1806
    %2122 = vmatpush.bf16.msra.mxu0 %v1802
    %2123 = vmatpush.bf16.msra.mxu0 %v1798
    %2124 = vmatpush.bf16.msra.mxu0 %v1794
    %2125 = vmatpush.bf16.msra.mxu0 %v1790
    %2126 = vmatpush.bf16.msra.mxu0 %v1786
    %2127 = vmatpush.bf16.msra.mxu0 %v1782
    %2128 = vmatpush.bf16.msra.mxu0 %v1778
    %2129 = vmatmul.bf16.gmra.mxu0 %v2075
    %v2130 = vpop.f32.mrf.mxu0
    %v2131 = vadd.f32 0.0, %v2130
    %v2132 = vpop.f32.mrf.mxu0
    %2133 = vdwg.mxu0
    %v2134 = vadd.f32 %v2078, %v2092
    %v2135 = vadd.f32 %v2079, %v2105
    %v2136 = vadd.f32 %v2080, %v2118
    %v2137 = vadd.f32 %v2081, %v2131
    %v2138 = vmul.f32 %v2134, 0.5
    %v2139 = vtanh.pop %v2138
    %v2140 = vmul.f32 %v2139, 0.5
    %v2141 = vadd.f32 %v2140, 0.5
    %v2142 = vmul.f32 %v2135, 0.5
    %v2143 = vtanh.pop %v2142
    %v2144 = vmul.f32 %v2143, 0.5
    %v2145 = vadd.f32 %v2144, 0.5
    %v2146 = vtanh.pop %v2136
    %v2147 = vmul.f32 %v2137, 0.5
    %v2148 = vtanh.pop %v2147
    %v2149 = vmul.f32 %v2148, 0.5
    %v2150 = vadd.f32 %v2149, 0.5
    %v2151 = vmul.f32 %v2145, %v2072
    %v2152 = vmul.f32 %v2141, %v2146
    %v2153 = vadd.f32 %v2151, %v2152
    %v2154 = vtanh.pop %v2153
    %v2155 = vmul.f32 %v2150, %v2154
    %v2156 = vpack.c.bf16 %v2155, %v2155
    %v2157 = vmax.f32 %v2155, 0.0
    %2158 = vst [vmem:[#allocation5 + $0x18] sm:$0xff] %v2157
    %v2159 = vld [vmem:[#allocation3 + $0x80] sm:$0xff]
    %v2160 = vld [vmem:[#allocation3 + $0x88] sm:$0xff]
    %v2161 = vld [vmem:[#allocation3 + $0x90] sm:$0xff]
    %v2162 = vld [vmem:[#allocation3 + $0x98] sm:$0xff]
    %2163 = vmatpush.bf16.msra.mxu0 %v1803
    %2164 = vmatpush.bf16.msra.mxu0 %v1799
    %2165 = vmatpush.bf16.msra.mxu0 %v1795
    %2166 = vmatpush.bf16.msra.mxu0 %v1791
    %2167 = vmatpush.bf16.msra.mxu0 %v1787
    %2168 = vmatpush.bf16.msra.mxu0 %v1783
    %2169 = vmatpush.bf16.msra.mxu0 %v1779
    %2170 = vmatpush.bf16.msra.mxu0 %v1775
    %2171 = vmatmul.bf16.gmra.mxu0 %v2156
    %v2172 = vpop.f32.mrf.mxu0
    %v2173 = vadd.f32 0.0, %v2172
    %v2174 = vpop.f32.mrf.mxu0
    %2175 = vdwg.mxu0
    %2176 = vmatpush.bf16.msra.mxu0 %v1804
    %2177 = vmatpush.bf16.msra.mxu0 %v1800
    %2178 = vmatpush.bf16.msra.mxu0 %v1796
    %2179 = vmatpush.bf16.msra.mxu0 %v1792
    %2180 = vmatpush.bf16.msra.mxu0 %v1788
    %2181 = vmatpush.bf16.msra.mxu0 %v1784
    %2182 = vmatpush.bf16.msra.mxu0 %v1780
    %2183 = vmatpush.bf16.msra.mxu0 %v1776
    %2184 = vmatmul.bf16.gmra.mxu0 %v2156
    %v2185 = vpop.f32.mrf.mxu0
    %v2186 = vadd.f32 0.0, %v2185
    %v2187 = vpop.f32.mrf.mxu0
    %2188 = vdwg.mxu0
    %2189 = vmatpush.bf16.msra.mxu0 %v1805
    %2190 = vmatpush.bf16.msra.mxu0 %v1801
    %2191 = vmatpush.bf16.msra.mxu0 %v1797
    %2192 = vmatpush.bf16.msra.mxu0 %v1793
    %2193 = vmatpush.bf16.msra.mxu0 %v1789
    %2194 = vmatpush.bf16.msra.mxu0 %v1785
    %2195 = vmatpush.bf16.msra.mxu0 %v1781
    %2196 = vmatpush.bf16.msra.mxu0 %v1777
    %2197 = vmatmul.bf16.gmra.mxu0 %v2156
    %v2198 = vpop.f32.mrf.mxu0
    %v2199 = vadd.f32 0.0, %v2198
    %v2200 = vpop.f32.mrf.mxu0
    %2201 = vdwg.mxu0
    %2202 = vmatpush.bf16.msra.mxu0 %v1806
    %2203 = vmatpush.bf16.msra.mxu0 %v1802
    %2204 = vmatpush.bf16.msra.mxu0 %v1798
    %2205 = vmatpush.bf16.msra.mxu0 %v1794
    %2206 = vmatpush.bf16.msra.mxu0 %v1790
    %2207 = vmatpush.bf16.msra.mxu0 %v1786
    %2208 = vmatpush.bf16.msra.mxu0 %v1782
    %2209 = vmatpush.bf16.msra.mxu0 %v1778
    %2210 = vmatmul.bf16.gmra.mxu0 %v2156
    %v2211 = vpop.f32.mrf.mxu0
    %v2212 = vadd.f32 0.0, %v2211
    %v2213 = vpop.f32.mrf.mxu0
    %2214 = vdwg.mxu0
    %v2215 = vadd.f32 %v2159, %v2173
    %v2216 = vadd.f32 %v2160, %v2186
    %v2217 = vadd.f32 %v2161, %v2199
    %v2218 = vadd.f32 %v2162, %v2212
    %v2219 = vmul.f32 %v2215, 0.5
    %v2220 = vtanh.pop %v2219
    %v2221 = vmul.f32 %v2220, 0.5
    %v2222 = vadd.f32 %v2221, 0.5
    %v2223 = vmul.f32 %v2216, 0.5
    %v2224 = vtanh.pop %v2223
    %v2225 = vmul.f32 %v2224, 0.5
    %v2226 = vadd.f32 %v2225, 0.5
    %v2227 = vtanh.pop %v2217
    %v2228 = vmul.f32 %v2218, 0.5
    %v2229 = vtanh.pop %v2228
    %v2230 = vmul.f32 %v2229, 0.5
    %v2231 = vadd.f32 %v2230, 0.5
    %v2232 = vmul.f32 %v2226, %v2153
    %v2233 = vmul.f32 %v2222, %v2227
    %v2234 = vadd.f32 %v2232, %v2233
    %v2235 = vtanh.pop %v2234
    %v2236 = vmul.f32 %v2231, %v2235
    %v2237 = vpack.c.bf16 %v2236, %v2236
    %v2238 = vmax.f32 %v2236, 0.0
    %2239 = vst [vmem:[#allocation5 + $0x20] sm:$0xff] %v2238
    %v2240 = vld [vmem:[#allocation3 + $0xa0] sm:$0xff]
    %v2241 = vld [vmem:[#allocation3 + $0xa8] sm:$0xff]
    %v2242 = vld [vmem:[#allocation3 + $0xb0] sm:$0xff]
    %v2243 = vld [vmem:[#allocation3 + $0xb8] sm:$0xff]
    %2244 = vmatpush.bf16.msra.mxu0 %v1803
    %2245 = vmatpush.bf16.msra.mxu0 %v1799
    %2246 = vmatpush.bf16.msra.mxu0 %v1795
    %2247 = vmatpush.bf16.msra.mxu0 %v1791
    %2248 = vmatpush.bf16.msra.mxu0 %v1787
    %2249 = vmatpush.bf16.msra.mxu0 %v1783
    %2250 = vmatpush.bf16.msra.mxu0 %v1779
    %2251 = vmatpush.bf16.msra.mxu0 %v1775
    %2252 = vmatmul.bf16.gmra.mxu0 %v2237
    %v2253 = vpop.f32.mrf.mxu0
    %v2254 = vadd.f32 0.0, %v2253
    %v2255 = vpop.f32.mrf.mxu0
    %2256 = vdwg.mxu0
    %2257 = vmatpush.bf16.msra.mxu0 %v1804
    %2258 = vmatpush.bf16.msra.mxu0 %v1800
    %2259 = vmatpush.bf16.msra.mxu0 %v1796
    %2260 = vmatpush.bf16.msra.mxu0 %v1792
    %2261 = vmatpush.bf16.msra.mxu0 %v1788
    %2262 = vmatpush.bf16.msra.mxu0 %v1784
    %2263 = vmatpush.bf16.msra.mxu0 %v1780
    %2264 = vmatpush.bf16.msra.mxu0 %v1776
    %2265 = vmatmul.bf16.gmra.mxu0 %v2237
    %v2266 = vpop.f32.mrf.mxu0
    %v2267 = vadd.f32 0.0, %v2266
    %v2268 = vpop.f32.mrf.mxu0
    %2269 = vdwg.mxu0
    %2270 = vmatpush.bf16.msra.mxu0 %v1805
    %2271 = vmatpush.bf16.msra.mxu0 %v1801
    %2272 = vmatpush.bf16.msra.mxu0 %v1797
    %2273 = vmatpush.bf16.msra.mxu0 %v1793
    %2274 = vmatpush.bf16.msra.mxu0 %v1789
    %2275 = vmatpush.bf16.msra.mxu0 %v1785
    %2276 = vmatpush.bf16.msra.mxu0 %v1781
    %2277 = vmatpush.bf16.msra.mxu0 %v1777
    %2278 = vmatmul.bf16.gmra.mxu0 %v2237
    %v2279 = vpop.f32.mrf.mxu0
    %v2280 = vadd.f32 0.0, %v2279
    %v2281 = vpop.f32.mrf.mxu0
    %2282 = vdwg.mxu0
    %2283 = vmatpush.bf16.msra.mxu0 %v1806
    %2284 = vmatpush.bf16.msra.mxu0 %v1802
    %2285 = vmatpush.bf16.msra.mxu0 %v1798
    %2286 = vmatpush.bf16.msra.mxu0 %v1794
    %2287 = vmatpush.bf16.msra.mxu0 %v1790
    %2288 = vmatpush.bf16.msra.mxu0 %v1786
    %2289 = vmatpush.bf16.msra.mxu0 %v1782
    %2290 = vmatpush.bf16.msra.mxu0 %v1778
    %2291 = vmatmul.bf16.gmra.mxu0 %v2237
    %v2292 = vpop.f32.mrf.mxu0
    %v2293 = vadd.f32 0.0, %v2292
    %v2294 = vpop.f32.mrf.mxu0
    %2295 = vdwg.mxu0
    %v2296 = vadd.f32 %v2240, %v2254
    %v2297 = vadd.f32 %v2241, %v2267
    %v2298 = vadd.f32 %v2242, %v2280
    %v2299 = vadd.f32 %v2243, %v2293
    %v2300 = vmul.f32 %v2296, 0.5
    %v2301 = vtanh.pop %v2300
    %v2302 = vmul.f32 %v2301, 0.5
    %v2303 = vadd.f32 %v2302, 0.5
    %v2304 = vmul.f32 %v2297, 0.5
    %v2305 = vtanh.pop %v2304
    %v2306 = vmul.f32 %v2305, 0.5
    %v2307 = vadd.f32 %v2306, 0.5
    %v2308 = vtanh.pop %v2298
    %v2309 = vmul.f32 %v2299, 0.5
    %v2310 = vtanh.pop %v2309
    %v2311 = vmul.f32 %v2310, 0.5
    %v2312 = vadd.f32 %v2311, 0.5
    %v2313 = vmul.f32 %v2307, %v2234
    %v2314 = vmul.f32 %v2303, %v2308
    %v2315 = vadd.f32 %v2313, %v2314
    %v2316 = vtanh.pop %v2315
    %v2317 = vmul.f32 %v2312, %v2316
    %v2318 = vpack.c.bf16 %v2317, %v2317
    %v2319 = vmax.f32 %v2317, 0.0
    %2320 = vst [vmem:[#allocation5 + $0x28] sm:$0xff] %v2319
    %v2321 = vld [vmem:[#allocation3 + $0xc0] sm:$0xff]
    %v2322 = vld [vmem:[#allocation3 + $0xc8] sm:$0xff]
    %v2323 = vld [vmem:[#allocation3 + $0xd0] sm:$0xff]
    %v2324 = vld [vmem:[#allocation3 + $0xd8] sm:$0xff]
    %2325 = vmatpush.bf16.msra.mxu0 %v1803
    %2326 = vmatpush.bf16.msra.mxu0 %v1799
    %2327 = vmatpush.bf16.msra.mxu0 %v1795
    %2328 = vmatpush.bf16.msra.mxu0 %v1791
    %2329 = vmatpush.bf16.msra.mxu0 %v1787
    %2330 = vmatpush.bf16.msra.mxu0 %v1783
    %2331 = vmatpush.bf16.msra.mxu0 %v1779
    %2332 = vmatpush.bf16.msra.mxu0 %v1775
    %2333 = vmatmul.bf16.gmra.mxu0 %v2318
    %v2334 = vpop.f32.mrf.mxu0
    %v2335 = vadd.f32 0.0, %v2334
    %v2336 = vpop.f32.mrf.mxu0
    %2337 = vdwg.mxu0
    %2338 = vmatpush.bf16.msra.mxu0 %v1804
    %2339 = vmatpush.bf16.msra.mxu0 %v1800
    %2340 = vmatpush.bf16.msra.mxu0 %v1796
    %2341 = vmatpush.bf16.msra.mxu0 %v1792
    %2342 = vmatpush.bf16.msra.mxu0 %v1788
    %2343 = vmatpush.bf16.msra.mxu0 %v1784
    %2344 = vmatpush.bf16.msra.mxu0 %v1780
    %2345 = vmatpush.bf16.msra.mxu0 %v1776
    %2346 = vmatmul.bf16.gmra.mxu0 %v2318
    %v2347 = vpop.f32.mrf.mxu0
    %v2348 = vadd.f32 0.0, %v2347
    %v2349 = vpop.f32.mrf.mxu0
    %2350 = vdwg.mxu0
    %2351 = vmatpush.bf16.msra.mxu0 %v1805
    %2352 = vmatpush.bf16.msra.mxu0 %v1801
    %2353 = vmatpush.bf16.msra.mxu0 %v1797
    %2354 = vmatpush.bf16.msra.mxu0 %v1793
    %2355 = vmatpush.bf16.msra.mxu0 %v1789
    %2356 = vmatpush.bf16.msra.mxu0 %v1785
    %2357 = vmatpush.bf16.msra.mxu0 %v1781
    %2358 = vmatpush.bf16.msra.mxu0 %v1777
    %2359 = vmatmul.bf16.gmra.mxu0 %v2318
    %v2360 = vpop.f32.mrf.mxu0
    %v2361 = vadd.f32 0.0, %v2360
    %v2362 = vpop.f32.mrf.mxu0
    %2363 = vdwg.mxu0
    %2364 = vmatpush.bf16.msra.mxu0 %v1806
    %2365 = vmatpush.bf16.msra.mxu0 %v1802
    %2366 = vmatpush.bf16.msra.mxu0 %v1798
    %2367 = vmatpush.bf16.msra.mxu0 %v1794
    %2368 = vmatpush.bf16.msra.mxu0 %v1790
    %2369 = vmatpush.bf16.msra.mxu0 %v1786
    %2370 = vmatpush.bf16.msra.mxu0 %v1782
    %2371 = vmatpush.bf16.msra.mxu0 %v1778
    %2372 = vmatmul.bf16.gmra.mxu0 %v2318
    %v2373 = vpop.f32.mrf.mxu0
    %v2374 = vadd.f32 0.0, %v2373
    %v2375 = vpop.f32.mrf.mxu0
    %2376 = vdwg.mxu0
    %v2377 = vadd.f32 %v2321, %v2335
    %v2378 = vadd.f32 %v2322, %v2348
    %v2379 = vadd.f32 %v2323, %v2361
    %v2380 = vadd.f32 %v2324, %v2374
    %v2381 = vmul.f32 %v2377, 0.5
    %v2382 = vtanh.pop %v2381
    %v2383 = vmul.f32 %v2382, 0.5
    %v2384 = vadd.f32 %v2383, 0.5
    %v2385 = vmul.f32 %v2378, 0.5
    %v2386 = vtanh.pop %v2385
    %v2387 = vmul.f32 %v2386, 0.5
    %v2388 = vadd.f32 %v2387, 0.5
    %v2389 = vtanh.pop %v2379
    %v2390 = vmul.f32 %v2380, 0.5
    %v2391 = vtanh.pop %v2390
    %v2392 = vmul.f32 %v2391, 0.5
    %v2393 = vadd.f32 %v2392, 0.5
    %v2394 = vmul.f32 %v2388, %v2315
    %v2395 = vmul.f32 %v2384, %v2389
    %v2396 = vadd.f32 %v2394, %v2395
    %v2397 = vtanh.pop %v2396
    %v2398 = vmul.f32 %v2393, %v2397
    %v2399 = vpack.c.bf16 %v2398, %v2398
    %v2400 = vmax.f32 %v2398, 0.0
    %2401 = vst [vmem:[#allocation5 + $0x30] sm:$0xff] %v2400
    %v2402 = vld [vmem:[#allocation3 + $0xe0] sm:$0xff]
    %v2403 = vld [vmem:[#allocation3 + $0xe8] sm:$0xff]
    %v2404 = vld [vmem:[#allocation3 + $0xf0] sm:$0xff]
    %v2405 = vld [vmem:[#allocation3 + $0xf8] sm:$0xff]
    %2406 = vmatpush.bf16.msra.mxu0 %v1803
    %2407 = vmatpush.bf16.msra.mxu0 %v1799
    %2408 = vmatpush.bf16.msra.mxu0 %v1795
    %2409 = vmatpush.bf16.msra.mxu0 %v1791
    %2410 = vmatpush.bf16.msra.mxu0 %v1787
    %2411 = vmatpush.bf16.msra.mxu0 %v1783
    %2412 = vmatpush.bf16.msra.mxu0 %v1779
    %2413 = vmatpush.bf16.msra.mxu0 %v1775
    %2414 = vmatmul.bf16.gmra.mxu0 %v2399
    %v2415 = vpop.f32.mrf.mxu0
    %v2416 = vadd.f32 0.0, %v2415
    %v2417 = vpop.f32.mrf.mxu0
    %2418 = vdwg.mxu0
    %2419 = vmatpush.bf16.msra.mxu0 %v1804
    %2420 = vmatpush.bf16.msra.mxu0 %v1800
    %2421 = vmatpush.bf16.msra.mxu0 %v1796
    %2422 = vmatpush.bf16.msra.mxu0 %v1792
    %2423 = vmatpush.bf16.msra.mxu0 %v1788
    %2424 = vmatpush.bf16.msra.mxu0 %v1784
    %2425 = vmatpush.bf16.msra.mxu0 %v1780
    %2426 = vmatpush.bf16.msra.mxu0 %v1776
    %2427 = vmatmul.bf16.gmra.mxu0 %v2399
    %v2428 = vpop.f32.mrf.mxu0
    %v2429 = vadd.f32 0.0, %v2428
    %v2430 = vpop.f32.mrf.mxu0
    %2431 = vdwg.mxu0
    %2432 = vmatpush.bf16.msra.mxu0 %v1805
    %2433 = vmatpush.bf16.msra.mxu0 %v1801
    %2434 = vmatpush.bf16.msra.mxu0 %v1797
    %2435 = vmatpush.bf16.msra.mxu0 %v1793
    %2436 = vmatpush.bf16.msra.mxu0 %v1789
    %2437 = vmatpush.bf16.msra.mxu0 %v1785
    %2438 = vmatpush.bf16.msra.mxu0 %v1781
    %2439 = vmatpush.bf16.msra.mxu0 %v1777
    %2440 = vmatmul.bf16.gmra.mxu0 %v2399
    %v2441 = vpop.f32.mrf.mxu0
    %v2442 = vadd.f32 0.0, %v2441
    %v2443 = vpop.f32.mrf.mxu0
    %2444 = vdwg.mxu0
    %2445 = vmatpush.bf16.msra.mxu0 %v1806
    %2446 = vmatpush.bf16.msra.mxu0 %v1802
    %2447 = vmatpush.bf16.msra.mxu0 %v1798
    %2448 = vmatpush.bf16.msra.mxu0 %v1794
    %2449 = vmatpush.bf16.msra.mxu0 %v1790
    %2450 = vmatpush.bf16.msra.mxu0 %v1786
    %2451 = vmatpush.bf16.msra.mxu0 %v1782
    %2452 = vmatpush.bf16.msra.mxu0 %v1778
    %2453 = vmatmul.bf16.gmra.mxu0 %v2399
    %v2454 = vpop.f32.mrf.mxu0
    %v2455 = vadd.f32 0.0, %v2454
    %v2456 = vpop.f32.mrf.mxu0
    %2457 = vdwg.mxu0
    %v2458 = vadd.f32 %v2402, %v2416
    %v2459 = vadd.f32 %v2403, %v2429
    %v2460 = vadd.f32 %v2404, %v2442
    %v2461 = vadd.f32 %v2405, %v2455
    %v2462 = vmul.f32 %v2458, 0.5
    %v2463 = vtanh.pop %v2462
    %v2464 = vmul.f32 %v2463, 0.5
    %v2465 = vadd.f32 %v2464, 0.5
    %v2466 = vmul.f32 %v2459, 0.5
    %v2467 = vtanh.pop %v2466
    %v2468 = vmul.f32 %v2467, 0.5
    %v2469 = vadd.f32 %v2468, 0.5
    %v2470 = vtanh.pop %v2460
    %v2471 = vmul.f32 %v2461, 0.5
    %v2472 = vtanh.pop %v2471
    %v2473 = vmul.f32 %v2472, 0.5
    %v2474 = vadd.f32 %v2473, 0.5
    %v2475 = vmul.f32 %v2469, %v2396
    %v2476 = vmul.f32 %v2465, %v2470
    %v2477 = vadd.f32 %v2475, %v2476
    %v2478 = vtanh.pop %v2477
    %v2479 = vmul.f32 %v2474, %v2478
    %v2480 = vmax.f32 %v2479, 0.0
    %2481 = vst [vmem:[#allocation5 + $0x38] sm:$0xff] %v2480
    %v2482 = vld [vmem:[#allocation5] sm:$0xff]
    %v2483 = vld [vmem:[#allocation5 + $0x8] sm:$0xff]
    %v2484 = vld [vmem:[#allocation5 + $0x10] sm:$0xff]
    %v2485 = vld [vmem:[#allocation5 + $0x18] sm:$0xff]
    %v2486 = vld [vmem:[#allocation5 + $0x20] sm:$0xff]
    %v2487 = vld [vmem:[#allocation5 + $0x28] sm:$0xff]
    %v2488 = vld [vmem:[#allocation5 + $0x30] sm:$0xff]
    %v2489 = vld [vmem:[#allocation5 + $0x38] sm:$0xff]
    %v2490 = vpack.c.bf16 %v2482, %v2482
    %v2491 = vpack.c.bf16 %v2483, %v2483
    %v2492 = vpack.c.bf16 %v2484, %v2484
    %v2493 = vpack.c.bf16 %v2485, %v2485
    %v2494 = vpack.c.bf16 %v2486, %v2486
    %v2495 = vpack.c.bf16 %v2487, %v2487
    %v2496 = vpack.c.bf16 %v2488, %v2488
    %v2497 = vpack.c.bf16 %v2489, %v2489
    %v2498 = vld [vmem:[#allocation17] sm:$0xf]
    %v2499 = vld [vmem:[#allocation17 + $0x4] sm:$0xf]
    %v2500 = vld [vmem:[#allocation17 + $0x8] sm:$0xf]
    %v2501 = vld [vmem:[#allocation17 + $0xc] sm:$0xf]
    %v2502 = vld [vmem:[#allocation17 + $0x10] sm:$0xf]
    %v2503 = vld [vmem:[#allocation17 + $0x14] sm:$0xf]
    %v2504 = vld [vmem:[#allocation17 + $0x18] sm:$0xf]
    %v2505 = vld [vmem:[#allocation17 + $0x1c] sm:$0xf]
    %v2506 = vld [vmem:[#allocation17 + $0x20] sm:$0xf]
    %v2507 = vld [vmem:[#allocation17 + $0x24] sm:$0xf]
    %v2508 = vld [vmem:[#allocation17 + $0x28] sm:$0xf]
    %v2509 = vld [vmem:[#allocation17 + $0x2c] sm:$0xf]
    %v2510 = vld [vmem:[#allocation17 + $0x30] sm:$0xf]
    %v2511 = vld [vmem:[#allocation17 + $0x34] sm:$0xf]
    %v2512 = vld [vmem:[#allocation17 + $0x38] sm:$0xf]
    %v2513 = vld [vmem:[#allocation17 + $0x3c] sm:$0xf]
    %v2514 = vld [vmem:[#allocation17 + $0x40] sm:$0xf]
    %v2515 = vld [vmem:[#allocation17 + $0x44] sm:$0xf]
    %v2516 = vld [vmem:[#allocation17 + $0x48] sm:$0xf]
    %v2517 = vld [vmem:[#allocation17 + $0x4c] sm:$0xf]
    %v2518 = vld [vmem:[#allocation17 + $0x50] sm:$0xf]
    %v2519 = vld [vmem:[#allocation17 + $0x54] sm:$0xf]
    %v2520 = vld [vmem:[#allocation17 + $0x58] sm:$0xf]
    %v2521 = vld [vmem:[#allocation17 + $0x5c] sm:$0xf]
    %v2522 = vld [vmem:[#allocation17 + $0x60] sm:$0xf]
    %v2523 = vld [vmem:[#allocation17 + $0x64] sm:$0xf]
    %v2524 = vld [vmem:[#allocation17 + $0x68] sm:$0xf]
    %v2525 = vld [vmem:[#allocation17 + $0x6c] sm:$0xf]
    %v2526 = vld [vmem:[#allocation17 + $0x70] sm:$0xf]
    %v2527 = vld [vmem:[#allocation17 + $0x74] sm:$0xf]
    %v2528 = vld [vmem:[#allocation17 + $0x78] sm:$0xf]
    %v2529 = vld [vmem:[#allocation17 + $0x7c] sm:$0xf]
    %v2530 = vld [vmem:[#allocation17 + $0x80] sm:$0xf]
    %v2531 = vld [vmem:[#allocation17 + $0x84] sm:$0xf]
    %v2532 = vld [vmem:[#allocation17 + $0x88] sm:$0xf]
    %v2533 = vld [vmem:[#allocation17 + $0x8c] sm:$0xf]
    %v2534 = vld [vmem:[#allocation17 + $0x90] sm:$0xf]
    %v2535 = vld [vmem:[#allocation17 + $0x94] sm:$0xf]
    %v2536 = vld [vmem:[#allocation17 + $0x98] sm:$0xf]
    %v2537 = vld [vmem:[#allocation17 + $0x9c] sm:$0xf]
    %v2538 = vld [vmem:[#allocation17 + $0xa0] sm:$0xf]
    %v2539 = vld [vmem:[#allocation17 + $0xa4] sm:$0xf]
    %v2540 = vld [vmem:[#allocation17 + $0xa8] sm:$0xf]
    %v2541 = vld [vmem:[#allocation17 + $0xac] sm:$0xf]
    %v2542 = vld [vmem:[#allocation17 + $0xb0] sm:$0xf]
    %v2543 = vld [vmem:[#allocation17 + $0xb4] sm:$0xf]
    %v2544 = vld [vmem:[#allocation17 + $0xb8] sm:$0xf]
    %v2545 = vld [vmem:[#allocation17 + $0xbc] sm:$0xf]
    %v2546 = vld [vmem:[#allocation17 + $0xc0] sm:$0xf]
    %v2547 = vld [vmem:[#allocation17 + $0xc4] sm:$0xf]
    %v2548 = vld [vmem:[#allocation17 + $0xc8] sm:$0xf]
    %v2549 = vld [vmem:[#allocation17 + $0xcc] sm:$0xf]
    %v2550 = vld [vmem:[#allocation17 + $0xd0] sm:$0xf]
    %v2551 = vld [vmem:[#allocation17 + $0xd4] sm:$0xf]
    %v2552 = vld [vmem:[#allocation17 + $0xd8] sm:$0xf]
    %v2553 = vld [vmem:[#allocation17 + $0xdc] sm:$0xf]
    %v2554 = vld [vmem:[#allocation17 + $0xe0] sm:$0xf]
    %v2555 = vld [vmem:[#allocation17 + $0xe4] sm:$0xf]
    %v2556 = vld [vmem:[#allocation17 + $0xe8] sm:$0xf]
    %v2557 = vld [vmem:[#allocation17 + $0xec] sm:$0xf]
    %v2558 = vld [vmem:[#allocation17 + $0xf0] sm:$0xf]
    %v2559 = vld [vmem:[#allocation17 + $0xf4] sm:$0xf]
    %v2560 = vld [vmem:[#allocation17 + $0xf8] sm:$0xf]
    %v2561 = vld [vmem:[#allocation17 + $0xfc] sm:$0xf]
    %v2562 = vld [vmem:[#allocation17 + $0x100] sm:$0xf]
    %v2563 = vld [vmem:[#allocation17 + $0x104] sm:$0xf]
    %v2564 = vld [vmem:[#allocation17 + $0x108] sm:$0xf]
    %v2565 = vld [vmem:[#allocation17 + $0x10c] sm:$0xf]
    %v2566 = vld [vmem:[#allocation17 + $0x110] sm:$0xf]
    %v2567 = vld [vmem:[#allocation17 + $0x114] sm:$0xf]
    %v2568 = vld [vmem:[#allocation17 + $0x118] sm:$0xf]
    %v2569 = vld [vmem:[#allocation17 + $0x11c] sm:$0xf]
    %v2570 = vld [vmem:[#allocation17 + $0x120] sm:$0xf]
    %v2571 = vld [vmem:[#allocation17 + $0x124] sm:$0xf]
    %v2572 = vld [vmem:[#allocation17 + $0x128] sm:$0xf]
    %v2573 = vld [vmem:[#allocation17 + $0x12c] sm:$0xf]
    %v2574 = vld [vmem:[#allocation17 + $0x130] sm:$0xf]
    %v2575 = vld [vmem:[#allocation17 + $0x134] sm:$0xf]
    %v2576 = vld [vmem:[#allocation17 + $0x138] sm:$0xf]
    %v2577 = vld [vmem:[#allocation17 + $0x13c] sm:$0xf]
    %v2578 = vld [vmem:[#allocation17 + $0x140] sm:$0xf]
    %v2579 = vld [vmem:[#allocation17 + $0x144] sm:$0xf]
    %v2580 = vld [vmem:[#allocation17 + $0x148] sm:$0xf]
    %v2581 = vld [vmem:[#allocation17 + $0x14c] sm:$0xf]
    %v2582 = vld [vmem:[#allocation17 + $0x150] sm:$0xf]
    %v2583 = vld [vmem:[#allocation17 + $0x154] sm:$0xf]
    %v2584 = vld [vmem:[#allocation17 + $0x158] sm:$0xf]
    %v2585 = vld [vmem:[#allocation17 + $0x15c] sm:$0xf]
    %v2586 = vld [vmem:[#allocation17 + $0x160] sm:$0xf]
    %v2587 = vld [vmem:[#allocation17 + $0x164] sm:$0xf]
    %v2588 = vld [vmem:[#allocation17 + $0x168] sm:$0xf]
    %v2589 = vld [vmem:[#allocation17 + $0x16c] sm:$0xf]
    %v2590 = vld [vmem:[#allocation17 + $0x170] sm:$0xf]
    %v2591 = vld [vmem:[#allocation17 + $0x174] sm:$0xf]
    %v2592 = vld [vmem:[#allocation17 + $0x178] sm:$0xf]
    %v2593 = vld [vmem:[#allocation17 + $0x17c] sm:$0xf]
    %v2594 = vld [vmem:[#allocation17 + $0x180] sm:$0xf]
    %v2595 = vld [vmem:[#allocation17 + $0x184] sm:$0xf]
    %v2596 = vld [vmem:[#allocation17 + $0x188] sm:$0xf]
    %v2597 = vld [vmem:[#allocation17 + $0x18c] sm:$0xf]
    %v2598 = vld [vmem:[#allocation17 + $0x190] sm:$0xf]
    %v2599 = vld [vmem:[#allocation17 + $0x194] sm:$0xf]
    %v2600 = vld [vmem:[#allocation17 + $0x198] sm:$0xf]
    %v2601 = vld [vmem:[#allocation17 + $0x19c] sm:$0xf]
    %v2602 = vld [vmem:[#allocation17 + $0x1a0] sm:$0xf]
    %v2603 = vld [vmem:[#allocation17 + $0x1a4] sm:$0xf]
    %v2604 = vld [vmem:[#allocation17 + $0x1a8] sm:$0xf]
    %v2605 = vld [vmem:[#allocation17 + $0x1ac] sm:$0xf]
    %v2606 = vld [vmem:[#allocation17 + $0x1b0] sm:$0xf]
    %v2607 = vld [vmem:[#allocation17 + $0x1b4] sm:$0xf]
    %v2608 = vld [vmem:[#allocation17 + $0x1b8] sm:$0xf]
    %v2609 = vld [vmem:[#allocation17 + $0x1bc] sm:$0xf]
    %v2610 = vld [vmem:[#allocation17 + $0x1c0] sm:$0xf]
    %v2611 = vld [vmem:[#allocation17 + $0x1c4] sm:$0xf]
    %v2612 = vld [vmem:[#allocation17 + $0x1c8] sm:$0xf]
    %v2613 = vld [vmem:[#allocation17 + $0x1cc] sm:$0xf]
    %v2614 = vld [vmem:[#allocation17 + $0x1d0] sm:$0xf]
    %v2615 = vld [vmem:[#allocation17 + $0x1d4] sm:$0xf]
    %v2616 = vld [vmem:[#allocation17 + $0x1d8] sm:$0xf]
    %v2617 = vld [vmem:[#allocation17 + $0x1dc] sm:$0xf]
    %v2618 = vld [vmem:[#allocation17 + $0x1e0] sm:$0xf]
    %v2619 = vld [vmem:[#allocation17 + $0x1e4] sm:$0xf]
    %v2620 = vld [vmem:[#allocation17 + $0x1e8] sm:$0xf]
    %v2621 = vld [vmem:[#allocation17 + $0x1ec] sm:$0xf]
    %v2622 = vld [vmem:[#allocation17 + $0x1f0] sm:$0xf]
    %v2623 = vld [vmem:[#allocation17 + $0x1f4] sm:$0xf]
    %v2624 = vld [vmem:[#allocation17 + $0x1f8] sm:$0xf]
    %v2625 = vld [vmem:[#allocation17 + $0x1fc] sm:$0xf]
    %v2626 = vld [vmem:[%s8] sm:$0x1]
    %v2628 = vperm.slane %v2626, 0
    %v2758 = vunpack.c.l.b16 %v2498
    %v2759 = vunpack.c.l.b16 %v2499
    %v2760 = vunpack.c.l.b16 %v2500
    %v2761 = vunpack.c.l.b16 %v2501
    %v2762 = vunpack.c.l.b16 %v2502
    %v2763 = vunpack.c.l.b16 %v2503
    %v2764 = vunpack.c.l.b16 %v2504
    %v2765 = vunpack.c.l.b16 %v2505
    %v2766 = vunpack.c.l.b16 %v2506
    %v2767 = vunpack.c.l.b16 %v2507
    %v2768 = vunpack.c.l.b16 %v2508
    %v2769 = vunpack.c.l.b16 %v2509
    %v2770 = vunpack.c.l.b16 %v2510
    %v2771 = vunpack.c.l.b16 %v2511
    %v2772 = vunpack.c.l.b16 %v2512
    %v2773 = vunpack.c.l.b16 %v2513
    %v2774 = vunpack.c.l.b16 %v2514
    %v2775 = vunpack.c.l.b16 %v2515
    %v2776 = vunpack.c.l.b16 %v2516
    %v2777 = vunpack.c.l.b16 %v2517
    %v2778 = vunpack.c.l.b16 %v2518
    %v2779 = vunpack.c.l.b16 %v2519
    %v2780 = vunpack.c.l.b16 %v2520
    %v2781 = vunpack.c.l.b16 %v2521
    %v2782 = vunpack.c.l.b16 %v2522
    %v2783 = vunpack.c.l.b16 %v2523
    %v2784 = vunpack.c.l.b16 %v2524
    %v2785 = vunpack.c.l.b16 %v2525
    %v2786 = vunpack.c.l.b16 %v2526
    %v2787 = vunpack.c.l.b16 %v2527
    %v2788 = vunpack.c.l.b16 %v2528
    %v2789 = vunpack.c.l.b16 %v2529
    %v2790 = vunpack.c.l.b16 %v2530
    %v2791 = vunpack.c.l.b16 %v2531
    %v2792 = vunpack.c.l.b16 %v2532
    %v2793 = vunpack.c.l.b16 %v2533
    %v2794 = vunpack.c.l.b16 %v2534
    %v2795 = vunpack.c.l.b16 %v2535
    %v2796 = vunpack.c.l.b16 %v2536
    %v2797 = vunpack.c.l.b16 %v2537
    %v2798 = vunpack.c.l.b16 %v2538
    %v2799 = vunpack.c.l.b16 %v2539
    %v2800 = vunpack.c.l.b16 %v2540
    %v2801 = vunpack.c.l.b16 %v2541
    %v2802 = vunpack.c.l.b16 %v2542
    %v2803 = vunpack.c.l.b16 %v2543
    %v2804 = vunpack.c.l.b16 %v2544
    %v2805 = vunpack.c.l.b16 %v2545
    %v2806 = vunpack.c.l.b16 %v2546
    %v2807 = vunpack.c.l.b16 %v2547
    %v2808 = vunpack.c.l.b16 %v2548
    %v2809 = vunpack.c.l.b16 %v2549
    %v2810 = vunpack.c.l.b16 %v2550
    %v2811 = vunpack.c.l.b16 %v2551
    %v2812 = vunpack.c.l.b16 %v2552
    %v2813 = vunpack.c.l.b16 %v2553
    %v2814 = vunpack.c.l.b16 %v2554
    %v2815 = vunpack.c.l.b16 %v2555
    %v2816 = vunpack.c.l.b16 %v2556
    %v2817 = vunpack.c.l.b16 %v2557
    %v2818 = vunpack.c.l.b16 %v2558
    %v2819 = vunpack.c.l.b16 %v2559
    %v2820 = vunpack.c.l.b16 %v2560
    %v2821 = vunpack.c.l.b16 %v2561
    %v2822 = vunpack.c.l.b16 %v2562
    %v2823 = vunpack.c.l.b16 %v2563
    %v2824 = vunpack.c.l.b16 %v2564
    %v2825 = vunpack.c.l.b16 %v2565
    %v2826 = vunpack.c.l.b16 %v2566
    %v2827 = vunpack.c.l.b16 %v2567
    %v2828 = vunpack.c.l.b16 %v2568
    %v2829 = vunpack.c.l.b16 %v2569
    %v2830 = vunpack.c.l.b16 %v2570
    %v2831 = vunpack.c.l.b16 %v2571
    %v2832 = vunpack.c.l.b16 %v2572
    %v2833 = vunpack.c.l.b16 %v2573
    %v2834 = vunpack.c.l.b16 %v2574
    %v2835 = vunpack.c.l.b16 %v2575
    %v2836 = vunpack.c.l.b16 %v2576
    %v2837 = vunpack.c.l.b16 %v2577
    %v2838 = vunpack.c.l.b16 %v2578
    %v2839 = vunpack.c.l.b16 %v2579
    %v2840 = vunpack.c.l.b16 %v2580
    %v2841 = vunpack.c.l.b16 %v2581
    %v2842 = vunpack.c.l.b16 %v2582
    %v2843 = vunpack.c.l.b16 %v2583
    %v2844 = vunpack.c.l.b16 %v2584
    %v2845 = vunpack.c.l.b16 %v2585
    %v2846 = vunpack.c.l.b16 %v2586
    %v2847 = vunpack.c.l.b16 %v2587
    %v2848 = vunpack.c.l.b16 %v2588
    %v2849 = vunpack.c.l.b16 %v2589
    %v2850 = vunpack.c.l.b16 %v2590
    %v2851 = vunpack.c.l.b16 %v2591
    %v2852 = vunpack.c.l.b16 %v2592
    %v2853 = vunpack.c.l.b16 %v2593
    %v2854 = vunpack.c.l.b16 %v2594
    %v2855 = vunpack.c.l.b16 %v2595
    %v2856 = vunpack.c.l.b16 %v2596
    %v2857 = vunpack.c.l.b16 %v2597
    %v2858 = vunpack.c.l.b16 %v2598
    %v2859 = vunpack.c.l.b16 %v2599
    %v2860 = vunpack.c.l.b16 %v2600
    %v2861 = vunpack.c.l.b16 %v2601
    %v2862 = vunpack.c.l.b16 %v2602
    %v2863 = vunpack.c.l.b16 %v2603
    %v2864 = vunpack.c.l.b16 %v2604
    %v2865 = vunpack.c.l.b16 %v2605
    %v2866 = vunpack.c.l.b16 %v2606
    %v2867 = vunpack.c.l.b16 %v2607
    %v2868 = vunpack.c.l.b16 %v2608
    %v2869 = vunpack.c.l.b16 %v2609
    %v2870 = vunpack.c.l.b16 %v2610
    %v2871 = vunpack.c.l.b16 %v2611
    %v2872 = vunpack.c.l.b16 %v2612
    %v2873 = vunpack.c.l.b16 %v2613
    %v2874 = vunpack.c.l.b16 %v2614
    %v2875 = vunpack.c.l.b16 %v2615
    %v2876 = vunpack.c.l.b16 %v2616
    %v2877 = vunpack.c.l.b16 %v2617
    %v2878 = vunpack.c.l.b16 %v2618
    %v2879 = vunpack.c.l.b16 %v2619
    %v2880 = vunpack.c.l.b16 %v2620
    %v2881 = vunpack.c.l.b16 %v2621
    %v2882 = vunpack.c.l.b16 %v2622
    %v2883 = vunpack.c.l.b16 %v2623
    %v2884 = vunpack.c.l.b16 %v2624
    %v2885 = vunpack.c.l.b16 %v2625
    %v2886 = vpack.c.b16 %v2759, %v2758
    %v2887 = vpack.c.b16 %v2761, %v2760
    %v2888 = vpack.c.b16 %v2763, %v2762
    %v2889 = vpack.c.b16 %v2765, %v2764
    %v2890 = vpack.c.b16 %v2767, %v2766
    %v2891 = vpack.c.b16 %v2769, %v2768
    %v2892 = vpack.c.b16 %v2771, %v2770
    %v2893 = vpack.c.b16 %v2773, %v2772
    %v2894 = vpack.c.b16 %v2775, %v2774
    %v2895 = vpack.c.b16 %v2777, %v2776
    %v2896 = vpack.c.b16 %v2779, %v2778
    %v2897 = vpack.c.b16 %v2781, %v2780
    %v2898 = vpack.c.b16 %v2783, %v2782
    %v2899 = vpack.c.b16 %v2785, %v2784
    %v2900 = vpack.c.b16 %v2787, %v2786
    %v2901 = vpack.c.b16 %v2789, %v2788
    %v2902 = vpack.c.b16 %v2791, %v2790
    %v2903 = vpack.c.b16 %v2793, %v2792
    %v2904 = vpack.c.b16 %v2795, %v2794
    %v2905 = vpack.c.b16 %v2797, %v2796
    %v2906 = vpack.c.b16 %v2799, %v2798
    %v2907 = vpack.c.b16 %v2801, %v2800
    %v2908 = vpack.c.b16 %v2803, %v2802
    %v2909 = vpack.c.b16 %v2805, %v2804
    %v2910 = vpack.c.b16 %v2807, %v2806
    %v2911 = vpack.c.b16 %v2809, %v2808
    %v2912 = vpack.c.b16 %v2811, %v2810
    %v2913 = vpack.c.b16 %v2813, %v2812
    %v2914 = vpack.c.b16 %v2815, %v2814
    %v2915 = vpack.c.b16 %v2817, %v2816
    %v2916 = vpack.c.b16 %v2819, %v2818
    %v2917 = vpack.c.b16 %v2821, %v2820
    %v2918 = vpack.c.b16 %v2823, %v2822
    %v2919 = vpack.c.b16 %v2825, %v2824
    %v2920 = vpack.c.b16 %v2827, %v2826
    %v2921 = vpack.c.b16 %v2829, %v2828
    %v2922 = vpack.c.b16 %v2831, %v2830
    %v2923 = vpack.c.b16 %v2833, %v2832
    %v2924 = vpack.c.b16 %v2835, %v2834
    %v2925 = vpack.c.b16 %v2837, %v2836
    %v2926 = vpack.c.b16 %v2839, %v2838
    %v2927 = vpack.c.b16 %v2841, %v2840
    %v2928 = vpack.c.b16 %v2843, %v2842
    %v2929 = vpack.c.b16 %v2845, %v2844
    %v2930 = vpack.c.b16 %v2847, %v2846
    %v2931 = vpack.c.b16 %v2849, %v2848
    %v2932 = vpack.c.b16 %v2851, %v2850
    %v2933 = vpack.c.b16 %v2853, %v2852
    %v2934 = vpack.c.b16 %v2855, %v2854
    %v2935 = vpack.c.b16 %v2857, %v2856
    %v2936 = vpack.c.b16 %v2859, %v2858
    %v2937 = vpack.c.b16 %v2861, %v2860
    %v2938 = vpack.c.b16 %v2863, %v2862
    %v2939 = vpack.c.b16 %v2865, %v2864
    %v2940 = vpack.c.b16 %v2867, %v2866
    %v2941 = vpack.c.b16 %v2869, %v2868
    %v2942 = vpack.c.b16 %v2871, %v2870
    %v2943 = vpack.c.b16 %v2873, %v2872
    %v2944 = vpack.c.b16 %v2875, %v2874
    %v2945 = vpack.c.b16 %v2877, %v2876
    %v2946 = vpack.c.b16 %v2879, %v2878
    %v2947 = vpack.c.b16 %v2881, %v2880
    %v2948 = vpack.c.b16 %v2883, %v2882
    %v2949 = vpack.c.b16 %v2885, %v2884
    %3014 = vmatpush.bf16.msra.mxu0 %v2893
    %3015 = vmatpush.bf16.msra.mxu0 %v2892
    %3016 = vmatpush.bf16.msra.mxu0 %v2891
    %3017 = vmatpush.bf16.msra.mxu0 %v2890
    %3018 = vmatpush.bf16.msra.mxu0 %v2889
    %3019 = vmatpush.bf16.msra.mxu0 %v2888
    %3020 = vmatpush.bf16.msra.mxu0 %v2887
    %3021 = vmatpush.bf16.msra.mxu0 %v2886
    %3022 = vmatmul.bf16.gmra.mxu0 %v2490
    %v3023 = vpop.f32.mrf.mxu0
    %v3024 = vadd.f32 %v2628, %v3023
    %v3025 = vpop.f32.mrf.mxu0
    %3026 = vdwg.mxu0
    %3027 = vmatpush.bf16.msra.mxu0 %v2901
    %3028 = vmatpush.bf16.msra.mxu0 %v2900
    %3029 = vmatpush.bf16.msra.mxu0 %v2899
    %3030 = vmatpush.bf16.msra.mxu0 %v2898
    %3031 = vmatpush.bf16.msra.mxu0 %v2897
    %3032 = vmatpush.bf16.msra.mxu0 %v2896
    %3033 = vmatpush.bf16.msra.mxu0 %v2895
    %3034 = vmatpush.bf16.msra.mxu0 %v2894
    %3035 = vmatmul.bf16.gmra.mxu0 %v2491
    %v3036 = vpop.f32.mrf.mxu0
    %v3037 = vadd.f32 %v3024, %v3036
    %v3038 = vpop.f32.mrf.mxu0
    %3039 = vdwg.mxu0
    %3040 = vmatpush.bf16.msra.mxu0 %v2909
    %3041 = vmatpush.bf16.msra.mxu0 %v2908
    %3042 = vmatpush.bf16.msra.mxu0 %v2907
    %3043 = vmatpush.bf16.msra.mxu0 %v2906
    %3044 = vmatpush.bf16.msra.mxu0 %v2905
    %3045 = vmatpush.bf16.msra.mxu0 %v2904
    %3046 = vmatpush.bf16.msra.mxu0 %v2903
    %3047 = vmatpush.bf16.msra.mxu0 %v2902
    %3048 = vmatmul.bf16.gmra.mxu0 %v2492
    %v3049 = vpop.f32.mrf.mxu0
    %v3050 = vadd.f32 %v3037, %v3049
    %v3051 = vpop.f32.mrf.mxu0
    %3052 = vdwg.mxu0
    %3053 = vmatpush.bf16.msra.mxu0 %v2917
    %3054 = vmatpush.bf16.msra.mxu0 %v2916
    %3055 = vmatpush.bf16.msra.mxu0 %v2915
    %3056 = vmatpush.bf16.msra.mxu0 %v2914
    %3057 = vmatpush.bf16.msra.mxu0 %v2913
    %3058 = vmatpush.bf16.msra.mxu0 %v2912
    %3059 = vmatpush.bf16.msra.mxu0 %v2911
    %3060 = vmatpush.bf16.msra.mxu0 %v2910
    %3061 = vmatmul.bf16.gmra.mxu0 %v2493
    %v3062 = vpop.f32.mrf.mxu0
    %v3063 = vadd.f32 %v3050, %v3062
    %v3064 = vpop.f32.mrf.mxu0
    %3065 = vdwg.mxu0
    %3066 = vmatpush.bf16.msra.mxu0 %v2925
    %3067 = vmatpush.bf16.msra.mxu0 %v2924
    %3068 = vmatpush.bf16.msra.mxu0 %v2923
    %3069 = vmatpush.bf16.msra.mxu0 %v2922
    %3070 = vmatpush.bf16.msra.mxu0 %v2921
    %3071 = vmatpush.bf16.msra.mxu0 %v2920
    %3072 = vmatpush.bf16.msra.mxu0 %v2919
    %3073 = vmatpush.bf16.msra.mxu0 %v2918
    %3074 = vmatmul.bf16.gmra.mxu0 %v2494
    %v3075 = vpop.f32.mrf.mxu0
    %v3076 = vadd.f32 %v3063, %v3075
    %v3077 = vpop.f32.mrf.mxu0
    %3078 = vdwg.mxu0
    %3079 = vmatpush.bf16.msra.mxu0 %v2933
    %3080 = vmatpush.bf16.msra.mxu0 %v2932
    %3081 = vmatpush.bf16.msra.mxu0 %v2931
    %3082 = vmatpush.bf16.msra.mxu0 %v2930
    %3083 = vmatpush.bf16.msra.mxu0 %v2929
    %3084 = vmatpush.bf16.msra.mxu0 %v2928
    %3085 = vmatpush.bf16.msra.mxu0 %v2927
    %3086 = vmatpush.bf16.msra.mxu0 %v2926
    %3087 = vmatmul.bf16.gmra.mxu0 %v2495
    %v3088 = vpop.f32.mrf.mxu0
    %v3089 = vadd.f32 %v3076, %v3088
    %v3090 = vpop.f32.mrf.mxu0
    %3091 = vdwg.mxu0
    %3092 = vmatpush.bf16.msra.mxu0 %v2941
    %3093 = vmatpush.bf16.msra.mxu0 %v2940
    %3094 = vmatpush.bf16.msra.mxu0 %v2939
    %3095 = vmatpush.bf16.msra.mxu0 %v2938
    %3096 = vmatpush.bf16.msra.mxu0 %v2937
    %3097 = vmatpush.bf16.msra.mxu0 %v2936
    %3098 = vmatpush.bf16.msra.mxu0 %v2935
    %3099 = vmatpush.bf16.msra.mxu0 %v2934
    %3100 = vmatmul.bf16.gmra.mxu0 %v2496
    %v3101 = vpop.f32.mrf.mxu0
    %v3102 = vadd.f32 %v3089, %v3101
    %v3103 = vpop.f32.mrf.mxu0
    %3104 = vdwg.mxu0
    %3105 = vmatpush.bf16.msra.mxu0 %v2949
    %3106 = vmatpush.bf16.msra.mxu0 %v2948
    %3107 = vmatpush.bf16.msra.mxu0 %v2947
    %3108 = vmatpush.bf16.msra.mxu0 %v2946
    %3109 = vmatpush.bf16.msra.mxu0 %v2945
    %3110 = vmatpush.bf16.msra.mxu0 %v2944
    %3111 = vmatpush.bf16.msra.mxu0 %v2943
    %3112 = vmatpush.bf16.msra.mxu0 %v2942
    %3113 = vmatmul.bf16.gmra.mxu0 %v2497
    %v3114 = vpop.f32.mrf.mxu0
    %v3115 = vadd.f32 %v3102, %v3114
    %v3116 = vpop.f32.mrf.mxu0
    %3117 = vdwg.mxu0
    %v3118 = vmax.f32 %v3115, 0.0
    %v3119 = vpack.c.bf16 %v3118, %v3118
    %v3120 = vld [vmem:[#allocation18] sm:$0xf]
    %v3121 = vld [vmem:[#allocation18 + $0x4] sm:$0xf]
    %v3122 = vld [vmem:[#allocation18 + $0x8] sm:$0xf]
    %v3123 = vld [vmem:[#allocation18 + $0xc] sm:$0xf]
    %v3124 = vld [vmem:[#allocation18 + $0x10] sm:$0xf]
    %v3125 = vld [vmem:[#allocation18 + $0x14] sm:$0xf]
    %v3126 = vld [vmem:[#allocation18 + $0x18] sm:$0xf]
    %v3127 = vld [vmem:[#allocation18 + $0x1c] sm:$0xf]
    %v3128 = vld [vmem:[#allocation18 + $0x20] sm:$0xf]
    %v3129 = vld [vmem:[#allocation18 + $0x24] sm:$0xf]
    %v3130 = vld [vmem:[#allocation18 + $0x28] sm:$0xf]
    %v3131 = vld [vmem:[#allocation18 + $0x2c] sm:$0xf]
    %v3132 = vld [vmem:[#allocation18 + $0x30] sm:$0xf]
    %v3133 = vld [vmem:[#allocation18 + $0x34] sm:$0xf]
    %v3134 = vld [vmem:[#allocation18 + $0x38] sm:$0xf]
    %v3135 = vld [vmem:[#allocation18 + $0x3c] sm:$0xf]
    %v3136 = vld [vmem:[%s10] sm:$0x1]
    %v3138 = vperm.slane %v3136, 0
    %v3156 = vunpack.c.l.b16 %v3120
    %v3157 = vunpack.c.l.b16 %v3121
    %v3158 = vunpack.c.l.b16 %v3122
    %v3159 = vunpack.c.l.b16 %v3123
    %v3160 = vunpack.c.l.b16 %v3124
    %v3161 = vunpack.c.l.b16 %v3125
    %v3162 = vunpack.c.l.b16 %v3126
    %v3163 = vunpack.c.l.b16 %v3127
    %v3164 = vunpack.c.l.b16 %v3128
    %v3165 = vunpack.c.l.b16 %v3129
    %v3166 = vunpack.c.l.b16 %v3130
    %v3167 = vunpack.c.l.b16 %v3131
    %v3168 = vunpack.c.l.b16 %v3132
    %v3169 = vunpack.c.l.b16 %v3133
    %v3170 = vunpack.c.l.b16 %v3134
    %v3171 = vunpack.c.l.b16 %v3135
    %v3172 = vpack.c.b16 %v3157, %v3156
    %v3173 = vpack.c.b16 %v3159, %v3158
    %v3174 = vpack.c.b16 %v3161, %v3160
    %v3175 = vpack.c.b16 %v3163, %v3162
    %v3176 = vpack.c.b16 %v3165, %v3164
    %v3177 = vpack.c.b16 %v3167, %v3166
    %v3178 = vpack.c.b16 %v3169, %v3168
    %v3179 = vpack.c.b16 %v3171, %v3170
    %3188 = vmatpush.bf16.msra.mxu0 %v3179
    %3189 = vmatpush.bf16.msra.mxu0 %v3178
    %3190 = vmatpush.bf16.msra.mxu0 %v3177
    %3191 = vmatpush.bf16.msra.mxu0 %v3176
    %3192 = vmatpush.bf16.msra.mxu0 %v3175
    %3193 = vmatpush.bf16.msra.mxu0 %v3174
    %3194 = vmatpush.bf16.msra.mxu0 %v3173
    %3195 = vmatpush.bf16.msra.mxu0 %v3172
    %3196 = vmatmul.bf16.gmra.mxu0 %v3119
    %v3197 = vpop.f32.mrf.mxu0
    %v3198 = vadd.f32 %v3138, %v3197
    %v3199 = vpop.f32.mrf.mxu0
    %3200 = vdwg.mxu0
    %3201 = vmax.xlane.f32.xlu0 %v3198
    %v3202 = vpop.xlane.xlu0 %3201
    %v3203 = vsub.f32 %v3198, %v3202
    %v3204 = vmul.f32 %v3203, 1.442695
    %v3205 = vpow.pop %v3204
    %3206 = vadd.xlane.f32.xlu0 %v3205
    %v3207 = vpop.xlane.xlu0 %3206
    %v3208 = vlog2.pop %v3207
    %v3209 = vmul.f32 %v3208, 0.6931472
    %v3210 = vadd.f32 %v3209, %v3202
    %v3211 = vsub.f32 %v3198, %v3210
    %3212 = vst [vmem:[#allocation20] sm:$0xff] %v3211
    // Predicated region
    $region78: #{tpu_custom_call.1} parent=1 // pred_check
      _
    $region79: #{tpu_custom_call.1} parent=1 // pred_check_branch
      %3214 = sbr.rel (0) target = $region81
    $region80: #{tpu_custom_call.1} parent=1 // pred_region
      %3216 = vsyncadd [#allocation8], 0
      %s3218 = sshll.u32 [#allocation20], 4
      %s3219 = int_to_ptr.vmem [resolvable:$true] %s3218
      %s3220 = sshll.u32 %s11, 4
      %s3221 = int_to_ptr.hbm [resolvable:$true] %s3220
      %3223 = dma.vmem_to_hbm [thread:$0]  %s3219, 128, %s3221, [#allocation8]
    $region81: #{tpu_custom_call.1} parent=1 // pred_fallthru
      _
    // Predicated region
    $region82: #{tpu_custom_call.1} parent=1 // pred_check
      _
    $region83: #{tpu_custom_call.1} parent=1 // pred_check_branch
      %3225 = sbr.rel (0) target = $region85
    $region84: #{tpu_custom_call.1} parent=1 // pred_region
      %3227 = dma.done [#allocation8], 128
    $region85: #{tpu_custom_call.1} parent=1 // pred_fallthru
      _
    %3228 = vsyncpa [#allocation7], 1
    %3229 = vsyncpa [#allocation10], 1
    %3230 = vsyncpa [#allocation13], 1
    %3231 = vsyncpa [#allocation16], 1
    %3232 = vsyncpa [#allocation19], 1
    %3233 = vsyncpa [#allocation8], 1

</llo_original>
